<compile_context>
chip_gen: v6e
topology: v6e:2x2x1
jax: 0.10.0
libtpu: 0.0.40
codegen_flags: <defaults>
</compile_context>

<pallas_src>
import functools

import jax
import jax.numpy as jnp
from jax.experimental import pallas as pl
from jax.experimental.pallas import tpu as pltpu


# ----------------------------------------------------------------------------
# Matmul + bias (+ optional relu/tanh) kernel: used for conv1 (im2col) and the MLP head.
# ----------------------------------------------------------------------------
def _matmul_bias_act_kernel(a_ref, w_ref, b_ref, o_ref, acc_ref, *, activation):
    k = pl.program_id(1)

    @pl.when(k == 0)
    def _():
        acc_ref[...] = jnp.zeros_like(acc_ref)

    acc_ref[...] += jnp.dot(a_ref[...], w_ref[...],
                            preferred_element_type=jnp.float32)

    @pl.when(k == pl.num_programs(1) - 1)
    def _():
        y = acc_ref[...] + b_ref[...]
        if activation == "relu":
            y = jnp.maximum(y, 0.0)
        elif activation == "tanh":
            y = jnp.tanh(y)
        o_ref[...] = y.astype(o_ref.dtype)


def matmul_bias(a, w, b, activation="none", out_dtype=None):
    M, K = a.shape
    K2, Nc = w.shape
    assert K == K2
    out_dtype = out_dtype if out_dtype is not None else a.dtype
    a = a.astype(jnp.bfloat16)            # bf16 MXU operands (f32 accumulator kept)
    w = w.astype(jnp.bfloat16)
    bm = M
    while bm > 4096 and bm % 2 == 0:
        bm //= 2
    assert M % bm == 0
    bk = K
    while bk > 2048 and bk % 2 == 0:
        bk //= 2
    assert K % bk == 0 and (bk == K or bk % 128 == 0)
    bias2d = b.reshape(1, Nc).astype(jnp.float32)
    kern = functools.partial(_matmul_bias_act_kernel, activation=activation)
    return pl.pallas_call(
        kern,
        out_shape=jax.ShapeDtypeStruct((M, Nc), out_dtype),
        grid_spec=pltpu.PrefetchScalarGridSpec(
            num_scalar_prefetch=0,
            grid=(M // bm, K // bk),
            in_specs=[
                pl.BlockSpec((bm, bk), lambda i, k: (i, k)),
                pl.BlockSpec((bk, Nc), lambda i, k: (k, 0)),
                pl.BlockSpec((1, Nc), lambda i, k: (0, 0)),
            ],
            out_specs=pl.BlockSpec((bm, Nc), lambda i, k: (i, 0)),
            scratch_shapes=[pltpu.VMEM((bm, Nc), jnp.float32)],
        ),
        compiler_params=pltpu.CompilerParams(
            dimension_semantics=("parallel", "arbitrary"),
            vmem_limit_bytes=32 << 20,
        ),
    )(a, w, bias2d)


# ----------------------------------------------------------------------------
# Conv1: im2col (K = kh*kw*1 = 9, tiny slab) + matmul kernel.
# ----------------------------------------------------------------------------
def conv2d_im2col(x, w, b, *, stride, pad, out_dtype=jnp.bfloat16):
    N, H, W, Cin = x.shape
    Cout, Cin2, kh, kw = w.shape
    assert Cin == Cin2
    xp = jnp.pad(x, ((0, 0), (pad, pad), (pad, pad), (0, 0)))
    Ho = (H + 2 * pad - kh) // stride + 1
    Wo = (W + 2 * pad - kw) // stride + 1
    patches = [xp[:, dy:dy + stride * Ho:stride, dx:dx + stride * Wo:stride, :]
               for dy in range(kh) for dx in range(kw)]
    a = jnp.concatenate(patches, axis=-1).reshape(N * Ho * Wo, kh * kw * Cin)
    wmat = jnp.transpose(w, (2, 3, 1, 0)).reshape(kh * kw * Cin, Cout)
    y = matmul_bias(a, wmat, b, activation="none", out_dtype=out_dtype)
    return y.reshape(N, Ho, Wo, Cout)


# ----------------------------------------------------------------------------
# Lane-dense GroupNorm+ReLU (used after conv1): operates on the free (N, H*W*C/128, 128)
# reshape, no transposes.  Per-lane sum/sumsq, group aggregation via 128x128 spread matmul.
# ----------------------------------------------------------------------------
def _gn_relu_flat_kernel(x_ref, g_ref, b_ref, sp_ref, o_ref, *, nch, rch, inv_cnt, eps):
    s = jnp.zeros((1, 128), jnp.float32)
    sq = jnp.zeros((1, 128), jnp.float32)
    for c in range(nch):
        xc = x_ref[0, c * rch:(c + 1) * rch, :].astype(jnp.float32)
        s = s + jnp.sum(xc, axis=0, keepdims=True)
        sq = sq + jnp.sum(xc * xc, axis=0, keepdims=True)
    spread = sp_ref[...]
    gm = jnp.dot(s, spread, preferred_element_type=jnp.float32) * inv_cnt
    gsq = jnp.dot(sq, spread, preferred_element_type=jnp.float32) * inv_cnt
    inv = jax.lax.rsqrt(gsq - gm * gm + eps)   # biased variance, one streaming pass
    scale = g_ref[...] * inv
    shift = b_ref[...] - gm * scale
    for c in range(nch):
        xc = x_ref[0, c * rch:(c + 1) * rch, :].astype(jnp.float32)
        o_ref[0, c * rch:(c + 1) * rch, :] = jnp.maximum(
            xc * scale + shift, 0.0).astype(o_ref.dtype)


def gn_relu_flat(x, gamma, beta, groups, eps=1e-5):
    N, H, W, C = x.shape
    G = groups
    Cg = C // G
    assert C % G == 0 and 128 % C == 0 and (H * W * C) % 128 == 0
    R = (H * W * C) // 128
    rch = R
    while rch > 2048 and rch % 2 == 0:
        rch //= 2
    assert R % rch == 0
    xf = x.reshape(N, R, 128)
    rep = 128 // C
    g_l = jnp.tile(gamma, rep).reshape(1, 128).astype(jnp.float32)
    b_l = jnp.tile(beta, rep).reshape(1, 128).astype(jnp.float32)
    lane_grp = (jnp.arange(128) % C) // Cg
    S = (lane_grp[:, None] == lane_grp[None, :]).astype(jnp.float32)
    kern = functools.partial(_gn_relu_flat_kernel, nch=R // rch, rch=rch,
                             inv_cnt=1.0 / float(H * W * Cg), eps=eps)
    out = pl.pallas_call(
        kern,
        out_shape=jax.ShapeDtypeStruct((N, R, 128), x.dtype),
        grid_spec=pltpu.PrefetchScalarGridSpec(
            num_scalar_prefetch=0,
            grid=(N,),
            in_specs=[
                pl.BlockSpec((1, R, 128), lambda n: (n, 0, 0)),
                pl.BlockSpec((1, 128), lambda n: (0, 0)),
                pl.BlockSpec((1, 128), lambda n: (0, 0)),
                pl.BlockSpec((128, 128), lambda n: (0, 0)),
            ],
            out_specs=pl.BlockSpec((1, R, 128), lambda n: (n, 0, 0)),
        ),
        compiler_params=pltpu.CompilerParams(
            dimension_semantics=("parallel",),
            vmem_limit_bytes=32 << 20,
        ),
    )(xf, g_l, b_l, S)
    return out.reshape(N, H, W, C)


# ----------------------------------------------------------------------------
# Fused direct conv + GroupNorm + ReLU kernel (no im2col, no HBM round trip between
# conv and GN).  One grid step = one batch element; padded image resident in VMEM.
# ----------------------------------------------------------------------------
def _conv_gn_relu_kernel(x_ref, w_ref, b_ref, g_ref, bt_ref, sp_ref, o_ref, raw_ref,
                         *, kh, kw, cin, cout, ho, wo, rh, cg, eps):
    nch = ho // rh
    # bf16 operands keep the MXU native; only the tiny 8x8 layer (wo not a multiple of the
    # bf16 sublane tile) falls back to f32 operands to keep the row-merge reshape layout-clean.
    op_dtype = jnp.bfloat16 if (wo % 16 == 0) else jnp.float32
    bias = b_ref[...]
    s_tot = jnp.zeros((1, cout), jnp.float32)
    sq_tot = jnp.zeros((1, cout), jnp.float32)
    # Pass 1: direct conv as sum of shifted tap matmuls, f32 accumulation; stream per-channel
    # sum / sum-of-squares for the GroupNorm statistics at the same time.
    for c in range(nch):
        h0 = c * rh
        acc = jnp.zeros((rh * wo, cout), jnp.float32)
        for dy in range(kh):
            for dx in range(kw):
                t = dy * kw + dx
                xs = x_ref[0, h0 + dy:h0 + dy + rh, dx:dx + wo, :].astype(op_dtype)
                xs = xs.reshape(rh * wo, cin)
                wt = w_ref[t * cin:(t + 1) * cin, :].astype(op_dtype)
                acc = acc + jnp.dot(xs, wt, preferred_element_type=jnp.float32)
        acc = acc + bias
        raw_ref[h0 * wo:(h0 + rh) * wo, :] = acc
        s_tot = s_tot + jnp.sum(acc, axis=0, keepdims=True)
        sq_tot = sq_tot + jnp.sum(acc * acc, axis=0, keepdims=True)
    inv_cnt = 1.0 / float(ho * wo * cg)
    spread = sp_ref[...]                      # (Cout, Cout) block-diagonal group-spread matrix
    gm = jnp.dot(s_tot, spread, preferred_element_type=jnp.float32) * inv_cnt
    gsq = jnp.dot(sq_tot, spread, preferred_element_type=jnp.float32) * inv_cnt
    inv = jax.lax.rsqrt(gsq - gm * gm + eps)
    scale = g_ref[...] * inv
    shift = bt_ref[...] - gm * scale
    # Pass 2: normalize + affine + ReLU straight from the VMEM scratch; write bf16 NHWC.
    for c in range(nch):
        h0 = c * rh
        yc = raw_ref[h0 * wo:(h0 + rh) * wo, :]
        yc = jnp.maximum(yc * scale + shift, 0.0)
        o_ref[0, h0:h0 + rh, :, :] = yc.reshape(rh, wo, cout).astype(o_ref.dtype)


def conv_gn_relu(x, w, b, gamma, beta, *, groups, stride, pad, eps=1e-5):
    N, H, W, Cin = x.shape
    Cout = int(w.shape[0])
    k = int(w.shape[2])
    x = x.astype(jnp.bfloat16)
    if stride == 1:
        xp = jnp.pad(x, ((0, 0), (pad, pad), (pad, pad), (0, 0)))
        wmat = jnp.transpose(w, (2, 3, 1, 0)).reshape(k * k * Cin, Cout)
        kh, kw, cin_e = k, k, Cin
    else:
        # 4x4 stride-2 pad-1 conv -> polyphase split -> 2x2 stride-1 conv over 4*Cin channels.
        assert stride == 2 and k == 4 and pad == 1
        xp0 = jnp.pad(x, ((0, 0), (1, 1), (1, 1), (0, 0)))
        phases = [xp0[:, r::2, s::2, :] for r in (0, 1) for s in (0, 1)]
        xp = jnp.concatenate(phases, axis=-1)                    # (N, Hp/2+1, Wp/2+1, 4*Cin)
        wr = w.reshape(Cout, Cin, 2, 2, 2, 2)                    # (co, ci, a, r, b, s)
        wmat = jnp.transpose(wr, (2, 4, 3, 5, 1, 0)).reshape(2 * 2 * 4 * Cin, Cout)
        kh, kw, cin_e = 2, 2, 4 * Cin
    Hp, Wp = int(xp.shape[1]), int(xp.shape[2])
    Ho, Wo = Hp - kh + 1, Wp - kw + 1
    assert Wo % 8 == 0
    rh = Ho
    while rh * Wo > 4096 and rh % 2 == 0:
        rh //= 2
    assert Ho % rh == 0
    Cg = Cout // groups
    ids = jnp.arange(Cout) // Cg
    spread = (ids[:, None] == ids[None, :]).astype(jnp.float32)
    kern = functools.partial(
        _conv_gn_relu_kernel, kh=kh, kw=kw, cin=cin_e, cout=Cout,
        ho=Ho, wo=Wo, rh=rh, cg=Cg, eps=eps)
    out = pl.pallas_call(
        kern,
        out_shape=jax.ShapeDtypeStruct((N, Ho, Wo, Cout), jnp.bfloat16),
        grid_spec=pltpu.PrefetchScalarGridSpec(
            num_scalar_prefetch=0,
            grid=(N,),
            in_specs=[
                pl.BlockSpec((1, Hp, Wp, cin_e), lambda n: (n, 0, 0, 0)),
                pl.BlockSpec((kh * kw * cin_e, Cout), lambda n: (0, 0)),
                pl.BlockSpec((1, Cout), lambda n: (0, 0)),
                pl.BlockSpec((1, Cout), lambda n: (0, 0)),
                pl.BlockSpec((1, Cout), lambda n: (0, 0)),
                pl.BlockSpec((Cout, Cout), lambda n: (0, 0)),
            ],
            out_specs=pl.BlockSpec((1, Ho, Wo, Cout), lambda n: (n, 0, 0, 0)),
            scratch_shapes=[pltpu.VMEM((Ho * Wo, Cout), jnp.float32)],
        ),
        compiler_params=pltpu.CompilerParams(
            dimension_semantics=("parallel",),
            vmem_limit_bytes=48 << 20,     # fits v7x's 64 MiB physical VMEM
        ),
    )(xp, wmat.astype(jnp.bfloat16),
      b.reshape(1, Cout).astype(jnp.float32),
      gamma.reshape(1, Cout).astype(jnp.float32),
      beta.reshape(1, Cout).astype(jnp.float32),
      spread)
    return out


# ----------------------------------------------------------------------------
# 2x2 average pool (small elementwise kernel over 4 strided slabs).
# ----------------------------------------------------------------------------
def _avgpool_kernel(a_ref, b_ref, c_ref, d_ref, o_ref):
    s = (a_ref[...].astype(jnp.float32) + b_ref[...].astype(jnp.float32)
         + c_ref[...].astype(jnp.float32) + d_ref[...].astype(jnp.float32))
    o_ref[...] = (0.25 * s).astype(o_ref.dtype)


def avgpool2x2(x):
    N, H, W, C = x.shape
    Ho, Wo = H // 2, W // 2
    M = N * Ho * Wo
    slabs = [x[:, dy::2, dx::2, :].reshape(M, C) for dy in (0, 1) for dx in (0, 1)]
    bm = M
    while bm > 4096 and bm % 2 == 0:
        bm //= 2
    assert M % bm == 0
    out = pl.pallas_call(
        _avgpool_kernel,
        out_shape=jax.ShapeDtypeStruct((M, C), x.dtype),
        grid_spec=pltpu.PrefetchScalarGridSpec(
            num_scalar_prefetch=0,
            grid=(M // bm,),
            in_specs=[pl.BlockSpec((bm, C), lambda i: (i, 0))] * 4,
            out_specs=pl.BlockSpec((bm, C), lambda i: (i, 0)),
        ),
        compiler_params=pltpu.CompilerParams(
            dimension_semantics=("parallel",),
            vmem_limit_bytes=32 << 20,
        ),
    )(*slabs)
    return out.reshape(N, Ho, Wo, C)


# ----------------------------------------------------------------------------
# Static layer configuration (NOT traced) and synthetic parameters (arrays only).
# ----------------------------------------------------------------------------
def conv_configs(in_channels, features):
    F = features
    defs = [  # (cin, cout, k, stride, pad)
        (in_channels, F, 3, 1, 1), (F, F, 4, 2, 1), (F, F, 3, 1, 1),
        (F, 2 * F, 3, 1, 1), (2 * F, 2 * F, 3, 1, 1), (2 * F, 2 * F, 3, 1, 1),
        (2 * F, 4 * F, 3, 1, 1), (4 * F, 4 * F, 3, 1, 1), (4 * F, 4 * F, 3, 1, 1),
        (4 * F, 8 * F, 3, 1, 1), (8 * F, 8 * F, 3, 1, 1), (8 * F, 8 * F, 3, 1, 1),
        (8 * F, 16 * F, 3, 1, 1),
    ]
    grp = [F // 16] * 3 + [F // 8] * 3 + [F // 4] * 3 + [F // 2] * 3 + [F]
    return [dict(cin=c[0], cout=c[1], k=c[2], stride=c[3], pad=c[4], groups=g)
            for c, g in zip(defs, grp)]


def _rand(key, idx, shape, scale):
    return scale * jax.random.normal(jax.random.fold_in(key, idx), shape, jnp.float32)


def make_params(key, cfgs, features, z_dim):
    convs = []
    i = 0
    for c in cfgs:
        cin, cout, k = c["cin"], c["cout"], c["k"]
        scale = 1.0 / (cin * k * k) ** 0.5
        w = _rand(key, i, (cout, cin, k, k), scale); i += 1
        b = _rand(key, i, (cout,), 0.01); i += 1
        gamma = 1.0 + _rand(key, i, (cout,), 0.05); i += 1
        beta = _rand(key, i, (cout,), 0.05); i += 1
        convs.append(dict(w=w, b=b, gamma=gamma, beta=beta))
    d_in = 16 * features * 8 * 8
    fc1_w = _rand(key, i, (d_in, 512), 1.0 / d_in ** 0.5); i += 1
    fc1_b = _rand(key, i, (512,), 0.01); i += 1
    fc2_w = _rand(key, i, (512, z_dim), 1.0 / 512 ** 0.5); i += 1
    fc2_b = _rand(key, i, (z_dim,), 0.01); i += 1
    return dict(convs=convs, fc1_w=fc1_w, fc1_b=fc1_b, fc2_w=fc2_w, fc2_b=fc2_b)


# ----------------------------------------------------------------------------
# Forward pass (mirrors Recon_encoder_fusion.forward).  cfgs is static Python config.
# ----------------------------------------------------------------------------
def recon_encoder_fusion_forward(params, x_nchw, cfgs):
    x = jnp.transpose(x_nchw, (0, 2, 3, 1)).astype(jnp.bfloat16)   # NCHW -> NHWC, bf16
    convs = params["convs"]
    # Layer 0: Cin=1 is lane-hostile for the direct kernel -> tiny im2col + lane-dense GN+ReLU.
    c0, p0 = cfgs[0], convs[0]
    x = conv2d_im2col(x, p0["w"], p0["b"], stride=c0["stride"], pad=c0["pad"])
    x = gn_relu_flat(x, p0["gamma"], p0["beta"], c0["groups"])
    # Layers 1..12: fused direct conv + GroupNorm + ReLU; AvgPool after layers 2, 5, 8, 11.
    for idx in range(1, len(cfgs)):
        c, p = cfgs[idx], convs[idx]
        x = conv_gn_relu(x, p["w"], p["b"], p["gamma"], p["beta"],
                         groups=c["groups"], stride=c["stride"], pad=c["pad"])
        if idx in (2, 5, 8, 11):
            x = avgpool2x2(x)
    # Flatten with PyTorch NCHW ordering, then the MLP head.
    n = x.shape[0]
    z = jnp.transpose(x, (0, 3, 1, 2)).reshape(n, -1)
    z = matmul_bias(z, params["fc1_w"], params["fc1_b"], activation="relu",
                    out_dtype=jnp.bfloat16)
    z = matmul_bias(z, params["fc2_w"], params["fc2_b"], activation="tanh",
                    out_dtype=jnp.float32)
    return z


if __name__ == "__main__":
    key = jax.random.PRNGKey(0)
    in_channels, features, z_dim = 1, 16, 64   # small init_features/z_dim; Cg stays 16
    batch, spatial = 2, 256                    # spatial must be 256: Linear hardcodes 16F*8*8
    cfgs = conv_configs(in_channels, features)
    params = make_params(jax.random.fold_in(key, 1), cfgs, features, z_dim)
    x = jax.random.normal(jax.random.fold_in(key, 2),
                          (batch, in_channels, spatial, spatial), jnp.float32)
    fwd = jax.jit(functools.partial(recon_encoder_fusion_forward, cfgs=cfgs))
    z = fwd(params, x)
    jax.block_until_ready(z)
    assert z.shape == (batch, z_dim), z.shape
    assert bool(jnp.all(jnp.isfinite(z)))
    assert bool(jnp.all(jnp.abs(z) <= 1.0 + 1e-4))
    print("KERNEL_OK")
</pallas_src>

<mosaic_0001>
module attributes {stable_mosaic.version = 11 : i64} {
  func.func @_matmul_bias_act_kernel(%arg0: i32, %arg1: i32, %arg2: memref<4096x9xbf16, #tpu.memory_space<vmem>>, %arg3: memref<9x16xbf16, #tpu.memory_space<vmem>>, %arg4: memref<1x16xf32, #tpu.memory_space<vmem>>, %arg5: memref<4096x16xbf16, #tpu.memory_space<vmem>>, %arg6: memref<4096x16xf32, #tpu.memory_space<vmem>>) attributes {dimension_semantics = [#tpu.dimension_semantics<parallel>, #tpu.dimension_semantics<arbitrary>], iteration_bounds = array<i64: 32, 1>, scalar_prefetch = 0 : i64, scratch_operands = 1 : i64, tpu.core_type = #tpu.core_type<tc>, window_params = [{transform_indices = @transform_0, window_bounds = array<i64: 4096, 9>}, {transform_indices = @transform_1, window_bounds = array<i64: 9, 16>}, {pipeline_mode = #tpu.pipeline_mode<synchronous>, transform_indices = @transform_2, window_bounds = array<i64: 1, 16>}, {transform_indices = @transform_3, window_bounds = array<i64: 4096, 16>}]} {
    %c0_i32 = arith.constant 0 : i32
    %0 = arith.cmpi eq, %arg1, %c0_i32 : i32
    %1 = arith.extui %0 : i1 to i32
    %c0_i32_0 = arith.constant 0 : i32
    %2 = arith.cmpi ne, %1, %c0_i32_0 : i32
    scf.if %2 {
      %cst_10 = arith.constant 0.000000e+00 : f32
      %12 = vector.broadcast %cst_10 : f32 to vector<4096x16xf32>
      %c0_11 = arith.constant 0 : index
      %c0_12 = arith.constant 0 : index
      %13 = vector.load %arg6[%c0_11, %c0_12] : memref<4096x16xf32, #tpu.memory_space<vmem>>, vector<4096x16xf32>
      tpu.vector_store %arg6[%c0_11, %c0_12], %12 {strides = array<i32>} : memref<4096x16xf32, #tpu.memory_space<vmem>>, vector<4096x16xf32>,
    } else {
    }
    %c0 = arith.constant 0 : index
    %c0_1 = arith.constant 0 : index
    %3 = vector.load %arg6[%c0, %c0_1] : memref<4096x16xf32, #tpu.memory_space<vmem>>, vector<4096x16xf32>
    %c0_2 = arith.constant 0 : index
    %c0_3 = arith.constant 0 : index
    %4 = vector.load %arg2[%c0_2, %c0_3] : memref<4096x9xbf16, #tpu.memory_space<vmem>>, vector<4096x9xbf16>
    %c0_4 = arith.constant 0 : index
    %c0_5 = arith.constant 0 : index
    %5 = vector.load %arg3[%c0_4, %c0_5] : memref<9x16xbf16, #tpu.memory_space<vmem>>, vector<9x16xbf16>
    %cst = arith.constant dense<0.000000e+00> : vector<4096x16xf32>
    %6 = tpu.matmul %4, %5, %cst {dimension_numbers = #tpu.dot_dimension_numbers<[1], [0], [0], [1], [0, 0, 1, 1], [], []>} : vector<4096x9xbf16>, vector<9x16xbf16>, vector<4096x16xf32> -> vector<4096x16xf32>
    %7 = arith.addf %3, %6 : vector<4096x16xf32>
    %c0_6 = arith.constant 0 : index
    %c0_7 = arith.constant 0 : index
    %8 = vector.load %arg6[%c0_6, %c0_7] : memref<4096x16xf32, #tpu.memory_space<vmem>>, vector<4096x16xf32>
    tpu.vector_store %arg6[%c0_6, %c0_7], %7 {strides = array<i32>} : memref<4096x16xf32, #tpu.memory_space<vmem>>, vector<4096x16xf32>,
    %c0_i32_8 = arith.constant 0 : i32
    %9 = arith.cmpi eq, %arg1, %c0_i32_8 : i32
    %10 = arith.extui %9 : i1 to i32
    %c0_i32_9 = arith.constant 0 : i32
    %11 = arith.cmpi ne, %10, %c0_i32_9 : i32
    scf.if %11 {
      %c0_10 = arith.constant 0 : index
      %c0_11 = arith.constant 0 : index
      %12 = vector.load %arg6[%c0_10, %c0_11] : memref<4096x16xf32, #tpu.memory_space<vmem>>, vector<4096x16xf32>
      %c0_12 = arith.constant 0 : index
      %c0_13 = arith.constant 0 : index
      %13 = vector.load %arg4[%c0_12, %c0_13] : memref<1x16xf32, #tpu.memory_space<vmem>>, vector<1x16xf32>
      %14 = vector.broadcast %13 : vector<1x16xf32> to vector<4096x16xf32>
      %15 = arith.addf %12, %14 : vector<4096x16xf32>
      %16 = arith.truncf %15 : vector<4096x16xf32> to vector<4096x16xbf16>
      %c0_14 = arith.constant 0 : index
      %c0_15 = arith.constant 0 : index
      %17 = vector.load %arg5[%c0_14, %c0_15] : memref<4096x16xbf16, #tpu.memory_space<vmem>>, vector<4096x16xbf16>
      tpu.vector_store %arg5[%c0_14, %c0_15], %16 {strides = array<i32>} : memref<4096x16xbf16, #tpu.memory_space<vmem>>, vector<4096x16xbf16>,
    } else {
    }
    return
  }
  func.func @transform_0(%arg0: i32, %arg1: i32) -> (i32, i32) {
    %c0_i32 = arith.constant 0 : i32
    return %arg0, %arg1 : i32, i32
  }
  func.func @transform_1(%arg0: i32, %arg1: i32) -> (i32, i32) {
    %c0_i32 = arith.constant 0 : i32
    %c0_i32_0 = arith.constant 0 : i32
    return %arg1, %c0_i32 : i32, i32
  }
  func.func @transform_2(%arg0: i32, %arg1: i32) -> (i32, i32) {
    %c0_i32 = arith.constant 0 : i32
    %c0_i32_0 = arith.constant 0 : i32
    %c0_i32_1 = arith.constant 0 : i32
    return %c0_i32, %c0_i32_0 : i32, i32
  }
  func.func @transform_3(%arg0: i32, %arg1: i32) -> (i32, i32) {
    %c0_i32 = arith.constant 0 : i32
    %c0_i32_0 = arith.constant 0 : i32
    return %arg0, %c0_i32 : i32, i32
  }
}

module attributes {stable_mosaic.version = 11 : i64} {
  func.func @_gn_relu_flat_kernel(%arg0: i32, %arg1: memref<1x8192x128xbf16, #tpu.memory_space<vmem>>, %arg2: memref<1x128xf32, #tpu.memory_space<vmem>>, %arg3: memref<1x128xf32, #tpu.memory_space<vmem>>, %arg4: memref<128x128xf32, #tpu.memory_space<vmem>>, %arg5: memref<1x8192x128xbf16, #tpu.memory_space<vmem>>) attributes {dimension_semantics = [#tpu.dimension_semantics<parallel>], iteration_bounds = array<i64: 2>, scalar_prefetch = 0 : i64, scratch_operands = 0 : i64, tpu.core_type = #tpu.core_type<tc>, window_params = [{transform_indices = @transform_0, window_bounds = array<i64: 1, 8192, 128>}, {pipeline_mode = #tpu.pipeline_mode<synchronous>, transform_indices = @transform_1, window_bounds = array<i64: 1, 128>}, {pipeline_mode = #tpu.pipeline_mode<synchronous>, transform_indices = @transform_2, window_bounds = array<i64: 1, 128>}, {pipeline_mode = #tpu.pipeline_mode<synchronous>, transform_indices = @transform_3, window_bounds = array<i64: 128, 128>}, {transform_indices = @transform_4, window_bounds = array<i64: 1, 8192, 128>}]} {
    %cst = arith.constant 0.000000e+00 : f32
    %0 = vector.broadcast %cst : f32 to vector<1x128xf32>
    %cst_0 = arith.constant 0.000000e+00 : f32
    %1 = vector.broadcast %cst_0 : f32 to vector<1x128xf32>
    %c0 = arith.constant 0 : index
    %c0_1 = arith.constant 0 : index
    %c0_2 = arith.constant 0 : index
    %2 = vector.load %arg1[%c0, %c0_1, %c0_2] : memref<1x8192x128xbf16, #tpu.memory_space<vmem>>, vector<1x2048x128xbf16>
    %3 = vector.shape_cast %2 : vector<1x2048x128xbf16> to vector<2048x128xbf16>
    %4 = arith.extf %3 : vector<2048x128xbf16> to vector<2048x128xf32>
    %cst_3 = arith.constant dense<0.000000e+00> : vector<128xf32>
    %5 = vector.multi_reduction <add>, %4, %cst_3 [0] : vector<2048x128xf32> to vector<128xf32>
    %6 = vector.shape_cast %5 : vector<128xf32> to vector<1x128xf32>
    %7 = arith.addf %0, %6 : vector<1x128xf32>
    %8 = arith.mulf %4, %4 : vector<2048x128xf32>
    %cst_4 = arith.constant dense<0.000000e+00> : vector<128xf32>
    %9 = vector.multi_reduction <add>, %8, %cst_4 [0] : vector<2048x128xf32> to vector<128xf32>
    %10 = vector.shape_cast %9 : vector<128xf32> to vector<1x128xf32>
    %11 = arith.addf %1, %10 : vector<1x128xf32>
    %c0_5 = arith.constant 0 : index
    %c2048 = arith.constant 2048 : index
    %c0_6 = arith.constant 0 : index
    %12 = vector.load %arg1[%c0_5, %c2048, %c0_6] : memref<1x8192x128xbf16, #tpu.memory_space<vmem>>, vector<1x2048x128xbf16>
    %13 = vector.shape_cast %12 : vector<1x2048x128xbf16> to vector<2048x128xbf16>
    %14 = arith.extf %13 : vector<2048x128xbf16> to vector<2048x128xf32>
    %cst_7 = arith.constant dense<0.000000e+00> : vector<128xf32>
    %15 = vector.multi_reduction <add>, %14, %cst_7 [0] : vector<2048x128xf32> to vector<128xf32>
    %16 = vector.shape_cast %15 : vector<128xf32> to vector<1x128xf32>
    %17 = arith.addf %7, %16 : vector<1x128xf32>
    %18 = arith.mulf %14, %14 : vector<2048x128xf32>
    %cst_8 = arith.constant dense<0.000000e+00> : vector<128xf32>
    %19 = vector.multi_reduction <add>, %18, %cst_8 [0] : vector<2048x128xf32> to vector<128xf32>
    %20 = vector.shape_cast %19 : vector<128xf32> to vector<1x128xf32>
    %21 = arith.addf %11, %20 : vector<1x128xf32>
    %c0_9 = arith.constant 0 : index
    %c4096 = arith.constant 4096 : index
    %c0_10 = arith.constant 0 : index
    %22 = vector.load %arg1[%c0_9, %c4096, %c0_10] : memref<1x8192x128xbf16, #tpu.memory_space<vmem>>, vector<1x2048x128xbf16>
    %23 = vector.shape_cast %22 : vector<1x2048x128xbf16> to vector<2048x128xbf16>
    %24 = arith.extf %23 : vector<2048x128xbf16> to vector<2048x128xf32>
    %cst_11 = arith.constant dense<0.000000e+00> : vector<128xf32>
    %25 = vector.multi_reduction <add>, %24, %cst_11 [0] : vector<2048x128xf32> to vector<128xf32>
    %26 = vector.shape_cast %25 : vector<128xf32> to vector<1x128xf32>
    %27 = arith.addf %17, %26 : vector<1x128xf32>
    %28 = arith.mulf %24, %24 : vector<2048x128xf32>
    %cst_12 = arith.constant dense<0.000000e+00> : vector<128xf32>
    %29 = vector.multi_reduction <add>, %28, %cst_12 [0] : vector<2048x128xf32> to vector<128xf32>
    %30 = vector.shape_cast %29 : vector<128xf32> to vector<1x128xf32>
    %31 = arith.addf %21, %30 : vector<1x128xf32>
    %c0_13 = arith.constant 0 : index
    %c6144 = arith.constant 6144 : index
    %c0_14 = arith.constant 0 : index
    %32 = vector.load %arg1[%c0_13, %c6144, %c0_14] : memref<1x8192x128xbf16, #tpu.memory_space<vmem>>, vector<1x2048x128xbf16>
    %33 = vector.shape_cast %32 : vector<1x2048x128xbf16> to vector<2048x128xbf16>
    %34 = arith.extf %33 : vector<2048x128xbf16> to vector<2048x128xf32>
    %cst_15 = arith.constant dense<0.000000e+00> : vector<128xf32>
    %35 = vector.multi_reduction <add>, %34, %cst_15 [0] : vector<2048x128xf32> to vector<128xf32>
    %36 = vector.shape_cast %35 : vector<128xf32> to vector<1x128xf32>
    %37 = arith.addf %27, %36 : vector<1x128xf32>
    %38 = arith.mulf %34, %34 : vector<2048x128xf32>
    %cst_16 = arith.constant dense<0.000000e+00> : vector<128xf32>
    %39 = vector.multi_reduction <add>, %38, %cst_16 [0] : vector<2048x128xf32> to vector<128xf32>
    %40 = vector.shape_cast %39 : vector<128xf32> to vector<1x128xf32>
    %41 = arith.addf %31, %40 : vector<1x128xf32>
    %c0_17 = arith.constant 0 : index
    %c0_18 = arith.constant 0 : index
    %42 = vector.load %arg4[%c0_17, %c0_18] : memref<128x128xf32, #tpu.memory_space<vmem>>, vector<128x128xf32>
    %cst_19 = arith.constant dense<0.000000e+00> : vector<1x128xf32>
    %43 = tpu.matmul %37, %42, %cst_19 {dimension_numbers = #tpu.dot_dimension_numbers<[1], [0], [0], [1], [0, 0, 1, 1], [], []>} : vector<1x128xf32>, vector<128x128xf32>, vector<1x128xf32> -> vector<1x128xf32>
    %cst_20 = arith.constant 9.53674316E-7 : f32
    %44 = vector.broadcast %cst_20 : f32 to vector<1x128xf32>
    %45 = arith.mulf %43, %44 : vector<1x128xf32>
    %cst_21 = arith.constant dense<0.000000e+00> : vector<1x128xf32>
    %46 = tpu.matmul %41, %42, %cst_21 {dimension_numbers = #tpu.dot_dimension_numbers<[1], [0], [0], [1], [0, 0, 1, 1], [], []>} : vector<1x128xf32>, vector<128x128xf32>, vector<1x128xf32> -> vector<1x128xf32>
    %cst_22 = arith.constant 9.53674316E-7 : f32
    %47 = vector.broadcast %cst_22 : f32 to vector<1x128xf32>
    %48 = arith.mulf %46, %47 : vector<1x128xf32>
    %49 = arith.mulf %45, %45 : vector<1x128xf32>
    %50 = arith.subf %48, %49 : vector<1x128xf32>
    %cst_23 = arith.constant 9.99999974E-6 : f32
    %51 = vector.broadcast %cst_23 : f32 to vector<1x128xf32>
    %52 = arith.addf %50, %51 : vector<1x128xf32>
    %53 = math.rsqrt %52 : vector<1x128xf32>
    %c0_24 = arith.constant 0 : index
    %c0_25 = arith.constant 0 : index
    %54 = vector.load %arg2[%c0_24, %c0_25] : memref<1x128xf32, #tpu.memory_space<vmem>>, vector<1x128xf32>
    %55 = arith.mulf %54, %53 : vector<1x128xf32>
    %c0_26 = arith.constant 0 : index
    %c0_27 = arith.constant 0 : index
    %56 = vector.load %arg3[%c0_26, %c0_27] : memref<1x128xf32, #tpu.memory_space<vmem>>, vector<1x128xf32>
    %57 = arith.mulf %45, %55 : vector<1x128xf32>
    %58 = arith.subf %56, %57 : vector<1x128xf32>
    %c0_28 = arith.constant 0 : index
    %c0_29 = arith.constant 0 : index
    %c0_30 = arith.constant 0 : index
    %59 = vector.load %arg1[%c0_28, %c0_29, %c0_30] : memref<1x8192x128xbf16, #tpu.memory_space<vmem>>, vector<1x2048x128xbf16>
    %60 = vector.shape_cast %59 : vector<1x2048x128xbf16> to vector<2048x128xbf16>
    %61 = arith.extf %60 : vector<2048x128xbf16> to vector<2048x128xf32>
    %62 = vector.broadcast %55 : vector<1x128xf32> to vector<2048x128xf32>
    %63 = arith.mulf %61, %62 : vector<2048x128xf32>
    %64 = vector.broadcast %58 : vector<1x128xf32> to vector<2048x128xf32>
    %65 = arith.addf %63, %64 : vector<2048x128xf32>
    %cst_31 = arith.constant 0.000000e+00 : f32
    %66 = vector.broadcast %cst_31 : f32 to vector<2048x128xf32>
    %67 = arith.maximumf %65, %66 : vector<2048x128xf32>
    %68 = arith.truncf %67 : vector<2048x128xf32> to vector<2048x128xbf16>
    %c0_32 = arith.constant 0 : index
    %c0_33 = arith.constant 0 : index
    %c0_34 = arith.constant 0 : index
    %69 = vector.load %arg5[%c0_32, %c0_33, %c0_34] : memref<1x8192x128xbf16, #tpu.memory_space<vmem>>, vector<1x2048x128xbf16>
    %70 = vector.shape_cast %69 : vector<1x2048x128xbf16> to vector<2048x128xbf16>
    %71 = vector.shape_cast %68 : vector<2048x128xbf16> to vector<1x2048x128xbf16>
    tpu.vector_store %arg5[%c0_32, %c0_33, %c0_34], %71 {strides = array<i32>} : memref<1x8192x128xbf16, #tpu.memory_space<vmem>>, vector<1x2048x128xbf16>,
    %c0_35 = arith.constant 0 : index
    %c2048_36 = arith.constant 2048 : index
    %c0_37 = arith.constant 0 : index
    %72 = vector.load %arg1[%c0_35, %c2048_36, %c0_37] : memref<1x8192x128xbf16, #tpu.memory_space<vmem>>, vector<1x2048x128xbf16>
    %73 = vector.shape_cast %72 : vector<1x2048x128xbf16> to vector<2048x128xbf16>
    %74 = arith.extf %73 : vector<2048x128xbf16> to vector<2048x128xf32>
    %75 = vector.broadcast %55 : vector<1x128xf32> to vector<2048x128xf32>
    %76 = arith.mulf %74, %75 : vector<2048x128xf32>
    %77 = vector.broadcast %58 : vector<1x128xf32> to vector<2048x128xf32>
    %78 = arith.addf %76, %77 : vector<2048x128xf32>
    %cst_38 = arith.constant 0.000000e+00 : f32
    %79 = vector.broadcast %cst_38 : f32 to vector<2048x128xf32>
    %80 = arith.maximumf %78, %79 : vector<2048x128xf32>
    %81 = arith.truncf %80 : vector<2048x128xf32> to vector<2048x128xbf16>
    %c0_39 = arith.constant 0 : index
    %c2048_40 = arith.constant 2048 : index
    %c0_41 = arith.constant 0 : index
    %82 = vector.load %arg5[%c0_39, %c2048_40, %c0_41] : memref<1x8192x128xbf16, #tpu.memory_space<vmem>>, vector<1x2048x128xbf16>
    %83 = vector.shape_cast %82 : vector<1x2048x128xbf16> to vector<2048x128xbf16>
    %84 = vector.shape_cast %81 : vector<2048x128xbf16> to vector<1x2048x128xbf16>
    tpu.vector_store %arg5[%c0_39, %c2048_40, %c0_41], %84 {strides = array<i32>} : memref<1x8192x128xbf16, #tpu.memory_space<vmem>>, vector<1x2048x128xbf16>,
    %c0_42 = arith.constant 0 : index
    %c4096_43 = arith.constant 4096 : index
    %c0_44 = arith.constant 0 : index
    %85 = vector.load %arg1[%c0_42, %c4096_43, %c0_44] : memref<1x8192x128xbf16, #tpu.memory_space<vmem>>, vector<1x2048x128xbf16>
    %86 = vector.shape_cast %85 : vector<1x2048x128xbf16> to vector<2048x128xbf16>
    %87 = arith.extf %86 : vector<2048x128xbf16> to vector<2048x128xf32>
    %88 = vector.broadcast %55 : vector<1x128xf32> to vector<2048x128xf32>
    %89 = arith.mulf %87, %88 : vector<2048x128xf32>
    %90 = vector.broadcast %58 : vector<1x128xf32> to vector<2048x128xf32>
    %91 = arith.addf %89, %90 : vector<2048x128xf32>
    %cst_45 = arith.constant 0.000000e+00 : f32
    %92 = vector.broadcast %cst_45 : f32 to vector<2048x128xf32>
    %93 = arith.maximumf %91, %92 : vector<2048x128xf32>
    %94 = arith.truncf %93 : vector<2048x128xf32> to vector<2048x128xbf16>
    %c0_46 = arith.constant 0 : index
    %c4096_47 = arith.constant 4096 : index
    %c0_48 = arith.constant 0 : index
    %95 = vector.load %arg5[%c0_46, %c4096_47, %c0_48] : memref<1x8192x128xbf16, #tpu.memory_space<vmem>>, vector<1x2048x128xbf16>
    %96 = vector.shape_cast %95 : vector<1x2048x128xbf16> to vector<2048x128xbf16>
    %97 = vector.shape_cast %94 : vector<2048x128xbf16> to vector<1x2048x128xbf16>
    tpu.vector_store %arg5[%c0_46, %c4096_47, %c0_48], %97 {strides = array<i32>} : memref<1x8192x128xbf16, #tpu.memory_space<vmem>>, vector<1x2048x128xbf16>,
    %c0_49 = arith.constant 0 : index
    %c6144_50 = arith.constant 6144 : index
    %c0_51 = arith.constant 0 : index
    %98 = vector.load %arg1[%c0_49, %c6144_50, %c0_51] : memref<1x8192x128xbf16, #tpu.memory_space<vmem>>, vector<1x2048x128xbf16>
    %99 = vector.shape_cast %98 : vector<1x2048x128xbf16> to vector<2048x128xbf16>
    %100 = arith.extf %99 : vector<2048x128xbf16> to vector<2048x128xf32>
    %101 = vector.broadcast %55 : vector<1x128xf32> to vector<2048x128xf32>
    %102 = arith.mulf %100, %101 : vector<2048x128xf32>
    %103 = vector.broadcast %58 : vector<1x128xf32> to vector<2048x128xf32>
    %104 = arith.addf %102, %103 : vector<2048x128xf32>
    %cst_52 = arith.constant 0.000000e+00 : f32
    %105 = vector.broadcast %cst_52 : f32 to vector<2048x128xf32>
    %106 = arith.maximumf %104, %105 : vector<2048x128xf32>
    %107 = arith.truncf %106 : vector<2048x128xf32> to vector<2048x128xbf16>
    %c0_53 = arith.constant 0 : index
    %c6144_54 = arith.constant 6144 : index
    %c0_55 = arith.constant 0 : index
    %108 = vector.load %arg5[%c0_53, %c6144_54, %c0_55] : memref<1x8192x128xbf16, #tpu.memory_space<vmem>>, vector<1x2048x128xbf16>
    %109 = vector.shape_cast %108 : vector<1x2048x128xbf16> to vector<2048x128xbf16>
    %110 = vector.shape_cast %107 : vector<2048x128xbf16> to vector<1x2048x128xbf16>
    tpu.vector_store %arg5[%c0_53, %c6144_54, %c0_55], %110 {strides = array<i32>} : memref<1x8192x128xbf16, #tpu.memory_space<vmem>>, vector<1x2048x128xbf16>,
    return
  }
  func.func @transform_0(%arg0: i32) -> (i32, i32, i32) {
    %c0_i32 = arith.constant 0 : i32
    %c0_i32_0 = arith.constant 0 : i32
    %c0_i32_1 = arith.constant 0 : i32
    return %arg0, %c0_i32, %c0_i32_0 : i32, i32, i32
  }
  func.func @transform_1(%arg0: i32) -> (i32, i32) {
    %c0_i32 = arith.constant 0 : i32
    %c0_i32_0 = arith.constant 0 : i32
    %c0_i32_1 = arith.constant 0 : i32
    return %c0_i32, %c0_i32_0 : i32, i32
  }
  func.func @transform_2(%arg0: i32) -> (i32, i32) {
    %c0_i32 = arith.constant 0 : i32
    %c0_i32_0 = arith.constant 0 : i32
    %c0_i32_1 = arith.constant 0 : i32
    return %c0_i32, %c0_i32_0 : i32, i32
  }
  func.func @transform_3(%arg0: i32) -> (i32, i32) {
    %c0_i32 = arith.constant 0 : i32
    %c0_i32_0 = arith.constant 0 : i32
    %c0_i32_1 = arith.constant 0 : i32
    return %c0_i32, %c0_i32_0 : i32, i32
  }
  func.func @transform_4(%arg0: i32) -> (i32, i32, i32) {
    %c0_i32 = arith.constant 0 : i32
    %c0_i32_0 = arith.constant 0 : i32
    %c0_i32_1 = arith.constant 0 : i32
    return %arg0, %c0_i32, %c0_i32_0 : i32, i32, i32
  }
}

module attributes {stable_mosaic.version = 11 : i64} {
  func.func @_conv_gn_relu_kernel(%arg0: i32, %arg1: memref<1x129x129x64xbf16, #tpu.memory_space<vmem>>, %arg2: memref<256x16xbf16, #tpu.memory_space<vmem>>, %arg3: memref<1x16xf32, #tpu.memory_space<vmem>>, %arg4: memref<1x16xf32, #tpu.memory_space<vmem>>, %arg5: memref<1x16xf32, #tpu.memory_space<vmem>>, %arg6: memref<16x16xf32, #tpu.memory_space<vmem>>, %arg7: memref<1x128x128x16xbf16, #tpu.memory_space<vmem>>, %arg8: memref<16384x16xf32, #tpu.memory_space<vmem>>) attributes {dimension_semantics = [#tpu.dimension_semantics<parallel>], iteration_bounds = array<i64: 2>, scalar_prefetch = 0 : i64, scratch_operands = 1 : i64, tpu.core_type = #tpu.core_type<tc>, window_params = [{transform_indices = @transform_0, window_bounds = array<i64: 1, 129, 129, 64>}, {pipeline_mode = #tpu.pipeline_mode<synchronous>, transform_indices = @transform_1, window_bounds = array<i64: 256, 16>}, {pipeline_mode = #tpu.pipeline_mode<synchronous>, transform_indices = @transform_2, window_bounds = array<i64: 1, 16>}, {pipeline_mode = #tpu.pipeline_mode<synchronous>, transform_indices = @transform_3, window_bounds = array<i64: 1, 16>}, {pipeline_mode = #tpu.pipeline_mode<synchronous>, transform_indices = @transform_4, window_bounds = array<i64: 1, 16>}, {pipeline_mode = #tpu.pipeline_mode<synchronous>, transform_indices = @transform_5, window_bounds = array<i64: 16, 16>}, {transform_indices = @transform_6, window_bounds = array<i64: 1, 128, 128, 16>}]} {
    %c0 = arith.constant 0 : index
    %c0_0 = arith.constant 0 : index
    %0 = vector.load %arg3[%c0, %c0_0] : memref<1x16xf32, #tpu.memory_space<vmem>>, vector<1x16xf32>
    %cst = arith.constant 0.000000e+00 : f32
    %1 = vector.broadcast %cst : f32 to vector<1x16xf32>
    %cst_1 = arith.constant 0.000000e+00 : f32
    %2 = vector.broadcast %cst_1 : f32 to vector<1x16xf32>
    %cst_2 = arith.constant 0.000000e+00 : f32
    %3 = vector.broadcast %cst_2 : f32 to vector<4096x16xf32>
    %c0_3 = arith.constant 0 : index
    %c0_4 = arith.constant 0 : index
    %c0_5 = arith.constant 0 : index
    %c0_6 = arith.constant 0 : index
    %4 = vector.load %arg1[%c0_3, %c0_4, %c0_5, %c0_6] : memref<1x129x129x64xbf16, #tpu.memory_space<vmem>>, vector<1x32x128x64xbf16>
    %5 = vector.shape_cast %4 : vector<1x32x128x64xbf16> to vector<32x128x64xbf16>
    %6 = vector.shape_cast %5 : vector<32x128x64xbf16> to vector<4096x64xbf16>
    %c0_7 = arith.constant 0 : index
    %c0_8 = arith.constant 0 : index
    %7 = vector.load %arg2[%c0_7, %c0_8] : memref<256x16xbf16, #tpu.memory_space<vmem>>, vector<64x16xbf16>
    %cst_9 = arith.constant dense<0.000000e+00> : vector<4096x16xf32>
    %8 = tpu.matmul %6, %7, %cst_9 {dimension_numbers = #tpu.dot_dimension_numbers<[1], [0], [0], [1], [0, 0, 1, 1], [], []>} : vector<4096x64xbf16>, vector<64x16xbf16>, vector<4096x16xf32> -> vector<4096x16xf32>
    %9 = arith.addf %3, %8 : vector<4096x16xf32>
    %c0_10 = arith.constant 0 : index
    %c0_11 = arith.constant 0 : index
    %c1 = arith.constant 1 : index
    %c0_12 = arith.constant 0 : index
    %10 = vector.load %arg1[%c0_10, %c0_11, %c1, %c0_12] : memref<1x129x129x64xbf16, #tpu.memory_space<vmem>>, vector<1x32x128x64xbf16>
    %11 = vector.shape_cast %10 : vector<1x32x128x64xbf16> to vector<32x128x64xbf16>
    %12 = vector.shape_cast %11 : vector<32x128x64xbf16> to vector<4096x64xbf16>
    %c64 = arith.constant 64 : index
    %c0_13 = arith.constant 0 : index
    %13 = vector.load %arg2[%c64, %c0_13] : memref<256x16xbf16, #tpu.memory_space<vmem>>, vector<64x16xbf16>
    %cst_14 = arith.constant dense<0.000000e+00> : vector<4096x16xf32>
    %14 = tpu.matmul %12, %13, %cst_14 {dimension_numbers = #tpu.dot_dimension_numbers<[1], [0], [0], [1], [0, 0, 1, 1], [], []>} : vector<4096x64xbf16>, vector<64x16xbf16>, vector<4096x16xf32> -> vector<4096x16xf32>
    %15 = arith.addf %9, %14 : vector<4096x16xf32>
    %c0_15 = arith.constant 0 : index
    %c1_16 = arith.constant 1 : index
    %c0_17 = arith.constant 0 : index
    %c0_18 = arith.constant 0 : index
    %16 = vector.load %arg1[%c0_15, %c1_16, %c0_17, %c0_18] : memref<1x129x129x64xbf16, #tpu.memory_space<vmem>>, vector<1x32x128x64xbf16>
    %17 = vector.shape_cast %16 : vector<1x32x128x64xbf16> to vector<32x128x64xbf16>
    %18 = vector.shape_cast %17 : vector<32x128x64xbf16> to vector<4096x64xbf16>
    %c128 = arith.constant 128 : index
    %c0_19 = arith.constant 0 : index
    %19 = vector.load %arg2[%c128, %c0_19] : memref<256x16xbf16, #tpu.memory_space<vmem>>, vector<64x16xbf16>
    %cst_20 = arith.constant dense<0.000000e+00> : vector<4096x16xf32>
    %20 = tpu.matmul %18, %19, %cst_20 {dimension_numbers = #tpu.dot_dimension_numbers<[1], [0], [0], [1], [0, 0, 1, 1], [], []>} : vector<4096x64xbf16>, vector<64x16xbf16>, vector<4096x16xf32> -> vector<4096x16xf32>
    %21 = arith.addf %15, %20 : vector<4096x16xf32>
    %c0_21 = arith.constant 0 : index
    %c1_22 = arith.constant 1 : index
    %c1_23 = arith.constant 1 : index
    %c0_24 = arith.constant 0 : index
    %22 = vector.load %arg1[%c0_21, %c1_22, %c1_23, %c0_24] : memref<1x129x129x64xbf16, #tpu.memory_space<vmem>>, vector<1x32x128x64xbf16>
    %23 = vector.shape_cast %22 : vector<1x32x128x64xbf16> to vector<32x128x64xbf16>
    %24 = vector.shape_cast %23 : vector<32x128x64xbf16> to vector<4096x64xbf16>
    %c192 = arith.constant 192 : index
    %c0_25 = arith.constant 0 : index
    %25 = vector.load %arg2[%c192, %c0_25] : memref<256x16xbf16, #tpu.memory_space<vmem>>, vector<64x16xbf16>
    %cst_26 = arith.constant dense<0.000000e+00> : vector<4096x16xf32>
    %26 = tpu.matmul %24, %25, %cst_26 {dimension_numbers = #tpu.dot_dimension_numbers<[1], [0], [0], [1], [0, 0, 1, 1], [], []>} : vector<4096x64xbf16>, vector<64x16xbf16>, vector<4096x16xf32> -> vector<4096x16xf32>
    %27 = arith.addf %21, %26 : vector<4096x16xf32>
    %28 = vector.broadcast %0 : vector<1x16xf32> to vector<4096x16xf32>
    %29 = arith.addf %27, %28 : vector<4096x16xf32>
    %c0_27 = arith.constant 0 : index
    %c0_28 = arith.constant 0 : index
    %30 = vector.load %arg8[%c0_27, %c0_28] : memref<16384x16xf32, #tpu.memory_space<vmem>>, vector<4096x16xf32>
    tpu.vector_store %arg8[%c0_27, %c0_28], %29 {strides = array<i32>} : memref<16384x16xf32, #tpu.memory_space<vmem>>, vector<4096x16xf32>,
    %cst_29 = arith.constant dense<0.000000e+00> : vector<16xf32>
    %31 = vector.multi_reduction <add>, %29, %cst_29 [0] : vector<4096x16xf32> to vector<16xf32>
    %32 = vector.shape_cast %31 : vector<16xf32> to vector<1x16xf32>
    %33 = arith.addf %1, %32 : vector<1x16xf32>
    %34 = arith.mulf %29, %29 : vector<4096x16xf32>
    %cst_30 = arith.constant dense<0.000000e+00> : vector<16xf32>
    %35 = vector.multi_reduction <add>, %34, %cst_30 [0] : vector<4096x16xf32> to vector<16xf32>
    %36 = vector.shape_cast %35 : vector<16xf32> to vector<1x16xf32>
    %37 = arith.addf %2, %36 : vector<1x16xf32>
    %cst_31 = arith.constant 0.000000e+00 : f32
    %38 = vector.broadcast %cst_31 : f32 to vector<4096x16xf32>
    %c0_32 = arith.constant 0 : index
    %c32 = arith.constant 32 : index
    %c0_33 = arith.constant 0 : index
    %c0_34 = arith.constant 0 : index
    %39 = vector.load %arg1[%c0_32, %c32, %c0_33, %c0_34] : memref<1x129x129x64xbf16, #tpu.memory_space<vmem>>, vector<1x32x128x64xbf16>
    %40 = vector.shape_cast %39 : vector<1x32x128x64xbf16> to vector<32x128x64xbf16>
    %41 = vector.shape_cast %40 : vector<32x128x64xbf16> to vector<4096x64xbf16>
    %c0_35 = arith.constant 0 : index
    %c0_36 = arith.constant 0 : index
    %42 = vector.load %arg2[%c0_35, %c0_36] : memref<256x16xbf16, #tpu.memory_space<vmem>>, vector<64x16xbf16>
    %cst_37 = arith.constant dense<0.000000e+00> : vector<4096x16xf32>
    %43 = tpu.matmul %41, %42, %cst_37 {dimension_numbers = #tpu.dot_dimension_numbers<[1], [0], [0], [1], [0, 0, 1, 1], [], []>} : vector<4096x64xbf16>, vector<64x16xbf16>, vector<4096x16xf32> -> vector<4096x16xf32>
    %44 = arith.addf %38, %43 : vector<4096x16xf32>
    %c0_38 = arith.constant 0 : index
    %c32_39 = arith.constant 32 : index
    %c1_40 = arith.constant 1 : index
    %c0_41 = arith.constant 0 : index
    %45 = vector.load %arg1[%c0_38, %c32_39, %c1_40, %c0_41] : memref<1x129x129x64xbf16, #tpu.memory_space<vmem>>, vector<1x32x128x64xbf16>
    %46 = vector.shape_cast %45 : vector<1x32x128x64xbf16> to vector<32x128x64xbf16>
    %47 = vector.shape_cast %46 : vector<32x128x64xbf16> to vector<4096x64xbf16>
    %c64_42 = arith.constant 64 : index
    %c0_43 = arith.constant 0 : index
    %48 = vector.load %arg2[%c64_42, %c0_43] : memref<256x16xbf16, #tpu.memory_space<vmem>>, vector<64x16xbf16>
    %cst_44 = arith.constant dense<0.000000e+00> : vector<4096x16xf32>
    %49 = tpu.matmul %47, %48, %cst_44 {dimension_numbers = #tpu.dot_dimension_numbers<[1], [0], [0], [1], [0, 0, 1, 1], [], []>} : vector<4096x64xbf16>, vector<64x16xbf16>, vector<4096x16xf32> -> vector<4096x16xf32>
    %50 = arith.addf %44, %49 : vector<4096x16xf32>
    %c0_45 = arith.constant 0 : index
    %c33 = arith.constant 33 : index
    %c0_46 = arith.constant 0 : index
    %c0_47 = arith.constant 0 : index
    %51 = vector.load %arg1[%c0_45, %c33, %c0_46, %c0_47] : memref<1x129x129x64xbf16, #tpu.memory_space<vmem>>, vector<1x32x128x64xbf16>
    %52 = vector.shape_cast %51 : vector<1x32x128x64xbf16> to vector<32x128x64xbf16>
    %53 = vector.shape_cast %52 : vector<32x128x64xbf16> to vector<4096x64xbf16>
    %c128_48 = arith.constant 128 : index
    %c0_49 = arith.constant 0 : index
    %54 = vector.load %arg2[%c128_48, %c0_49] : memref<256x16xbf16, #tpu.memory_space<vmem>>, vector<64x16xbf16>
    %cst_50 = arith.constant dense<0.000000e+00> : vector<4096x16xf32>
    %55 = tpu.matmul %53, %54, %cst_50 {dimension_numbers = #tpu.dot_dimension_numbers<[1], [0], [0], [1], [0, 0, 1, 1], [], []>} : vector<4096x64xbf16>, vector<64x16xbf16>, vector<4096x16xf32> -> vector<4096x16xf32>
    %56 = arith.addf %50, %55 : vector<4096x16xf32>
    %c0_51 = arith.constant 0 : index
    %c33_52 = arith.constant 33 : index
    %c1_53 = arith.constant 1 : index
    %c0_54 = arith.constant 0 : index
    %57 = vector.load %arg1[%c0_51, %c33_52, %c1_53, %c0_54] : memref<1x129x129x64xbf16, #tpu.memory_space<vmem>>, vector<1x32x128x64xbf16>
    %58 = vector.shape_cast %57 : vector<1x32x128x64xbf16> to vector<32x128x64xbf16>
    %59 = vector.shape_cast %58 : vector<32x128x64xbf16> to vector<4096x64xbf16>
    %c192_55 = arith.constant 192 : index
    %c0_56 = arith.constant 0 : index
    %60 = vector.load %arg2[%c192_55, %c0_56] : memref<256x16xbf16, #tpu.memory_space<vmem>>, vector<64x16xbf16>
    %cst_57 = arith.constant dense<0.000000e+00> : vector<4096x16xf32>
    %61 = tpu.matmul %59, %60, %cst_57 {dimension_numbers = #tpu.dot_dimension_numbers<[1], [0], [0], [1], [0, 0, 1, 1], [], []>} : vector<4096x64xbf16>, vector<64x16xbf16>, vector<4096x16xf32> -> vector<4096x16xf32>
    %62 = arith.addf %56, %61 : vector<4096x16xf32>
    %63 = vector.broadcast %0 : vector<1x16xf32> to vector<4096x16xf32>
    %64 = arith.addf %62, %63 : vector<4096x16xf32>
    %c4096 = arith.constant 4096 : index
    %c0_58 = arith.constant 0 : index
    %65 = vector.load %arg8[%c4096, %c0_58] : memref<16384x16xf32, #tpu.memory_space<vmem>>, vector<4096x16xf32>
    tpu.vector_store %arg8[%c4096, %c0_58], %64 {strides = array<i32>} : memref<16384x16xf32, #tpu.memory_space<vmem>>, vector<4096x16xf32>,
    %cst_59 = arith.constant dense<0.000000e+00> : vector<16xf32>
    %66 = vector.multi_reduction <add>, %64, %cst_59 [0] : vector<4096x16xf32> to vector<16xf32>
    %67 = vector.shape_cast %66 : vector<16xf32> to vector<1x16xf32>
    %68 = arith.addf %33, %67 : vector<1x16xf32>
    %69 = arith.mulf %64, %64 : vector<4096x16xf32>
    %cst_60 = arith.constant dense<0.000000e+00> : vector<16xf32>
    %70 = vector.multi_reduction <add>, %69, %cst_60 [0] : vector<4096x16xf32> to vector<16xf32>
    %71 = vector.shape_cast %70 : vector<16xf32> to vector<1x16xf32>
    %72 = arith.addf %37, %71 : vector<1x16xf32>
    %cst_61 = arith.constant 0.000000e+00 : f32
    %73 = vector.broadcast %cst_61 : f32 to vector<4096x16xf32>
    %c0_62 = arith.constant 0 : index
    %c64_63 = arith.constant 64 : index
    %c0_64 = arith.constant 0 : index
    %c0_65 = arith.constant 0 : index
    %74 = vector.load %arg1[%c0_62, %c64_63, %c0_64, %c0_65] : memref<1x129x129x64xbf16, #tpu.memory_space<vmem>>, vector<1x32x128x64xbf16>
    %75 = vector.shape_cast %74 : vector<1x32x128x64xbf16> to vector<32x128x64xbf16>
    %76 = vector.shape_cast %75 : vector<32x128x64xbf16> to vector<4096x64xbf16>
    %c0_66 = arith.constant 0 : index
    %c0_67 = arith.constant 0 : index
    %77 = vector.load %arg2[%c0_66, %c0_67] : memref<256x16xbf16, #tpu.memory_space<vmem>>, vector<64x16xbf16>
    %cst_68 = arith.constant dense<0.000000e+00> : vector<4096x16xf32>
    %78 = tpu.matmul %76, %77, %cst_68 {dimension_numbers = #tpu.dot_dimension_numbers<[1], [0], [0], [1], [0, 0, 1, 1], [], []>} : vector<4096x64xbf16>, vector<64x16xbf16>, vector<4096x16xf32> -> vector<4096x16xf32>
    %79 = arith.addf %73, %78 : vector<4096x16xf32>
    %c0_69 = arith.constant 0 : index
    %c64_70 = arith.constant 64 : index
    %c1_71 = arith.constant 1 : index
    %c0_72 = arith.constant 0 : index
    %80 = vector.load %arg1[%c0_69, %c64_70, %c1_71, %c0_72] : memref<1x129x129x64xbf16, #tpu.memory_space<vmem>>, vector<1x32x128x64xbf16>
    %81 = vector.shape_cast %80 : vector<1x32x128x64xbf16> to vector<32x128x64xbf16>
    %82 = vector.shape_cast %81 : vector<32x128x64xbf16> to vector<4096x64xbf16>
    %c64_73 = arith.constant 64 : index
    %c0_74 = arith.constant 0 : index
    %83 = vector.load %arg2[%c64_73, %c0_74] : memref<256x16xbf16, #tpu.memory_space<vmem>>, vector<64x16xbf16>
    %cst_75 = arith.constant dense<0.000000e+00> : vector<4096x16xf32>
    %84 = tpu.matmul %82, %83, %cst_75 {dimension_numbers = #tpu.dot_dimension_numbers<[1], [0], [0], [1], [0, 0, 1, 1], [], []>} : vector<4096x64xbf16>, vector<64x16xbf16>, vector<4096x16xf32> -> vector<4096x16xf32>
    %85 = arith.addf %79, %84 : vector<4096x16xf32>
    %c0_76 = arith.constant 0 : index
    %c65 = arith.constant 65 : index
    %c0_77 = arith.constant 0 : index
    %c0_78 = arith.constant 0 : index
    %86 = vector.load %arg1[%c0_76, %c65, %c0_77, %c0_78] : memref<1x129x129x64xbf16, #tpu.memory_space<vmem>>, vector<1x32x128x64xbf16>
    %87 = vector.shape_cast %86 : vector<1x32x128x64xbf16> to vector<32x128x64xbf16>
    %88 = vector.shape_cast %87 : vector<32x128x64xbf16> to vector<4096x64xbf16>
    %c128_79 = arith.constant 128 : index
    %c0_80 = arith.constant 0 : index
    %89 = vector.load %arg2[%c128_79, %c0_80] : memref<256x16xbf16, #tpu.memory_space<vmem>>, vector<64x16xbf16>
    %cst_81 = arith.constant dense<0.000000e+00> : vector<4096x16xf32>
    %90 = tpu.matmul %88, %89, %cst_81 {dimension_numbers = #tpu.dot_dimension_numbers<[1], [0], [0], [1], [0, 0, 1, 1], [], []>} : vector<4096x64xbf16>, vector<64x16xbf16>, vector<4096x16xf32> -> vector<4096x16xf32>
    %91 = arith.addf %85, %90 : vector<4096x16xf32>
    %c0_82 = arith.constant 0 : index
    %c65_83 = arith.constant 65 : index
    %c1_84 = arith.constant 1 : index
    %c0_85 = arith.constant 0 : index
    %92 = vector.load %arg1[%c0_82, %c65_83, %c1_84, %c0_85] : memref<1x129x129x64xbf16, #tpu.memory_space<vmem>>, vector<1x32x128x64xbf16>
    %93 = vector.shape_cast %92 : vector<1x32x128x64xbf16> to vector<32x128x64xbf16>
    %94 = vector.shape_cast %93 : vector<32x128x64xbf16> to vector<4096x64xbf16>
    %c192_86 = arith.constant 192 : index
    %c0_87 = arith.constant 0 : index
    %95 = vector.load %arg2[%c192_86, %c0_87] : memref<256x16xbf16, #tpu.memory_space<vmem>>, vector<64x16xbf16>
    %cst_88 = arith.constant dense<0.000000e+00> : vector<4096x16xf32>
    %96 = tpu.matmul %94, %95, %cst_88 {dimension_numbers = #tpu.dot_dimension_numbers<[1], [0], [0], [1], [0, 0, 1, 1], [], []>} : vector<4096x64xbf16>, vector<64x16xbf16>, vector<4096x16xf32> -> vector<4096x16xf32>
    %97 = arith.addf %91, %96 : vector<4096x16xf32>
    %98 = vector.broadcast %0 : vector<1x16xf32> to vector<4096x16xf32>
    %99 = arith.addf %97, %98 : vector<4096x16xf32>
    %c8192 = arith.constant 8192 : index
    %c0_89 = arith.constant 0 : index
    %100 = vector.load %arg8[%c8192, %c0_89] : memref<16384x16xf32, #tpu.memory_space<vmem>>, vector<4096x16xf32>
    tpu.vector_store %arg8[%c8192, %c0_89], %99 {strides = array<i32>} : memref<16384x16xf32, #tpu.memory_space<vmem>>, vector<4096x16xf32>,
    %cst_90 = arith.constant dense<0.000000e+00> : vector<16xf32>
    %101 = vector.multi_reduction <add>, %99, %cst_90 [0] : vector<4096x16xf32> to vector<16xf32>
    %102 = vector.shape_cast %101 : vector<16xf32> to vector<1x16xf32>
    %103 = arith.addf %68, %102 : vector<1x16xf32>
    %104 = arith.mulf %99, %99 : vector<4096x16xf32>
    %cst_91 = arith.constant dense<0.000000e+00> : vector<16xf32>
    %105 = vector.multi_reduction <add>, %104, %cst_91 [0] : vector<4096x16xf32> to vector<16xf32>
    %106 = vector.shape_cast %105 : vector<16xf32> to vector<1x16xf32>
    %107 = arith.addf %72, %106 : vector<1x16xf32>
    %cst_92 = arith.constant 0.000000e+00 : f32
    %108 = vector.broadcast %cst_92 : f32 to vector<4096x16xf32>
    %c0_93 = arith.constant 0 : index
    %c96 = arith.constant 96 : index
    %c0_94 = arith.constant 0 : index
    %c0_95 = arith.constant 0 : index
    %109 = vector.load %arg1[%c0_93, %c96, %c0_94, %c0_95] : memref<1x129x129x64xbf16, #tpu.memory_space<vmem>>, vector<1x32x128x64xbf16>
    %110 = vector.shape_cast %109 : vector<1x32x128x64xbf16> to vector<32x128x64xbf16>
    %111 = vector.shape_cast %110 : vector<32x128x64xbf16> to vector<4096x64xbf16>
    %c0_96 = arith.constant 0 : index
    %c0_97 = arith.constant 0 : index
    %112 = vector.load %arg2[%c0_96, %c0_97] : memref<256x16xbf16, #tpu.memory_space<vmem>>, vector<64x16xbf16>
    %cst_98 = arith.constant dense<0.000000e+00> : vector<4096x16xf32>
    %113 = tpu.matmul %111, %112, %cst_98 {dimension_numbers = #tpu.dot_dimension_numbers<[1], [0], [0], [1], [0, 0, 1, 1], [], []>} : vector<4096x64xbf16>, vector<64x16xbf16>, vector<4096x16xf32> -> vector<4096x16xf32>
    %114 = arith.addf %108, %113 : vector<4096x16xf32>
    %c0_99 = arith.constant 0 : index
    %c96_100 = arith.constant 96 : index
    %c1_101 = arith.constant 1 : index
    %c0_102 = arith.constant 0 : index
    %115 = vector.load %arg1[%c0_99, %c96_100, %c1_101, %c0_102] : memref<1x129x129x64xbf16, #tpu.memory_space<vmem>>, vector<1x32x128x64xbf16>
    %116 = vector.shape_cast %115 : vector<1x32x128x64xbf16> to vector<32x128x64xbf16>
    %117 = vector.shape_cast %116 : vector<32x128x64xbf16> to vector<4096x64xbf16>
    %c64_103 = arith.constant 64 : index
    %c0_104 = arith.constant 0 : index
    %118 = vector.load %arg2[%c64_103, %c0_104] : memref<256x16xbf16, #tpu.memory_space<vmem>>, vector<64x16xbf16>
    %cst_105 = arith.constant dense<0.000000e+00> : vector<4096x16xf32>
    %119 = tpu.matmul %117, %118, %cst_105 {dimension_numbers = #tpu.dot_dimension_numbers<[1], [0], [0], [1], [0, 0, 1, 1], [], []>} : vector<4096x64xbf16>, vector<64x16xbf16>, vector<4096x16xf32> -> vector<4096x16xf32>
    %120 = arith.addf %114, %119 : vector<4096x16xf32>
    %c0_106 = arith.constant 0 : index
    %c97 = arith.constant 97 : index
    %c0_107 = arith.constant 0 : index
    %c0_108 = arith.constant 0 : index
    %121 = vector.load %arg1[%c0_106, %c97, %c0_107, %c0_108] : memref<1x129x129x64xbf16, #tpu.memory_space<vmem>>, vector<1x32x128x64xbf16>
    %122 = vector.shape_cast %121 : vector<1x32x128x64xbf16> to vector<32x128x64xbf16>
    %123 = vector.shape_cast %122 : vector<32x128x64xbf16> to vector<4096x64xbf16>
    %c128_109 = arith.constant 128 : index
    %c0_110 = arith.constant 0 : index
    %124 = vector.load %arg2[%c128_109, %c0_110] : memref<256x16xbf16, #tpu.memory_space<vmem>>, vector<64x16xbf16>
    %cst_111 = arith.constant dense<0.000000e+00> : vector<4096x16xf32>
    %125 = tpu.matmul %123, %124, %cst_111 {dimension_numbers = #tpu.dot_dimension_numbers<[1], [0], [0], [1], [0, 0, 1, 1], [], []>} : vector<4096x64xbf16>, vector<64x16xbf16>, vector<4096x16xf32> -> vector<4096x16xf32>
    %126 = arith.addf %120, %125 : vector<4096x16xf32>
    %c0_112 = arith.constant 0 : index
    %c97_113 = arith.constant 97 : index
    %c1_114 = arith.constant 1 : index
    %c0_115 = arith.constant 0 : index
    %127 = vector.load %arg1[%c0_112, %c97_113, %c1_114, %c0_115] : memref<1x129x129x64xbf16, #tpu.memory_space<vmem>>, vector<1x32x128x64xbf16>
    %128 = vector.shape_cast %127 : vector<1x32x128x64xbf16> to vector<32x128x64xbf16>
    %129 = vector.shape_cast %128 : vector<32x128x64xbf16> to vector<4096x64xbf16>
    %c192_116 = arith.constant 192 : index
    %c0_117 = arith.constant 0 : index
    %130 = vector.load %arg2[%c192_116, %c0_117] : memref<256x16xbf16, #tpu.memory_space<vmem>>, vector<64x16xbf16>
    %cst_118 = arith.constant dense<0.000000e+00> : vector<4096x16xf32>
    %131 = tpu.matmul %129, %130, %cst_118 {dimension_numbers = #tpu.dot_dimension_numbers<[1], [0], [0], [1], [0, 0, 1, 1], [], []>} : vector<4096x64xbf16>, vector<64x16xbf16>, vector<4096x16xf32> -> vector<4096x16xf32>
    %132 = arith.addf %126, %131 : vector<4096x16xf32>
    %133 = vector.broadcast %0 : vector<1x16xf32> to vector<4096x16xf32>
    %134 = arith.addf %132, %133 : vector<4096x16xf32>
    %c12288 = arith.constant 12288 : index
    %c0_119 = arith.constant 0 : index
    %135 = vector.load %arg8[%c12288, %c0_119] : memref<16384x16xf32, #tpu.memory_space<vmem>>, vector<4096x16xf32>
    tpu.vector_store %arg8[%c12288, %c0_119], %134 {strides = array<i32>} : memref<16384x16xf32, #tpu.memory_space<vmem>>, vector<4096x16xf32>,
    %cst_120 = arith.constant dense<0.000000e+00> : vector<16xf32>
    %136 = vector.multi_reduction <add>, %134, %cst_120 [0] : vector<4096x16xf32> to vector<16xf32>
    %137 = vector.shape_cast %136 : vector<16xf32> to vector<1x16xf32>
    %138 = arith.addf %103, %137 : vector<1x16xf32>
    %139 = arith.mulf %134, %134 : vector<4096x16xf32>
    %cst_121 = arith.constant dense<0.000000e+00> : vector<16xf32>
    %140 = vector.multi_reduction <add>, %139, %cst_121 [0] : vector<4096x16xf32> to vector<16xf32>
    %141 = vector.shape_cast %140 : vector<16xf32> to vector<1x16xf32>
    %142 = arith.addf %107, %141 : vector<1x16xf32>
    %c0_122 = arith.constant 0 : index
    %c0_123 = arith.constant 0 : index
    %143 = vector.load %arg6[%c0_122, %c0_123] : memref<16x16xf32, #tpu.memory_space<vmem>>, vector<16x16xf32>
    %cst_124 = arith.constant dense<0.000000e+00> : vector<1x16xf32>
    %144 = tpu.matmul %138, %143, %cst_124 {dimension_numbers = #tpu.dot_dimension_numbers<[1], [0], [0], [1], [0, 0, 1, 1], [], []>} : vector<1x16xf32>, vector<16x16xf32>, vector<1x16xf32> -> vector<1x16xf32>
    %cst_125 = arith.constant 3.81469727E-6 : f32
    %145 = vector.broadcast %cst_125 : f32 to vector<1x16xf32>
    %146 = arith.mulf %144, %145 : vector<1x16xf32>
    %cst_126 = arith.constant dense<0.000000e+00> : vector<1x16xf32>
    %147 = tpu.matmul %142, %143, %cst_126 {dimension_numbers = #tpu.dot_dimension_numbers<[1], [0], [0], [1], [0, 0, 1, 1], [], []>} : vector<1x16xf32>, vector<16x16xf32>, vector<1x16xf32> -> vector<1x16xf32>
    %cst_127 = arith.constant 3.81469727E-6 : f32
    %148 = vector.broadcast %cst_127 : f32 to vector<1x16xf32>
    %149 = arith.mulf %147, %148 : vector<1x16xf32>
    %150 = arith.mulf %146, %146 : vector<1x16xf32>
    %151 = arith.subf %149, %150 : vector<1x16xf32>
    %cst_128 = arith.constant 9.99999974E-6 : f32
    %152 = vector.broadcast %cst_128 : f32 to vector<1x16xf32>
    %153 = arith.addf %151, %152 : vector<1x16xf32>
    %154 = math.rsqrt %153 : vector<1x16xf32>
    %c0_129 = arith.constant 0 : index
    %c0_130 = arith.constant 0 : index
    %155 = vector.load %arg4[%c0_129, %c0_130] : memref<1x16xf32, #tpu.memory_space<vmem>>, vector<1x16xf32>
    %156 = arith.mulf %155, %154 : vector<1x16xf32>
    %c0_131 = arith.constant 0 : index
    %c0_132 = arith.constant 0 : index
    %157 = vector.load %arg5[%c0_131, %c0_132] : memref<1x16xf32, #tpu.memory_space<vmem>>, vector<1x16xf32>
    %158 = arith.mulf %146, %156 : vector<1x16xf32>
    %159 = arith.subf %157, %158 : vector<1x16xf32>
    %c0_133 = arith.constant 0 : index
    %c0_134 = arith.constant 0 : index
    %160 = vector.load %arg8[%c0_133, %c0_134] : memref<16384x16xf32, #tpu.memory_space<vmem>>, vector<4096x16xf32>
    %161 = vector.broadcast %156 : vector<1x16xf32> to vector<4096x16xf32>
    %162 = arith.mulf %160, %161 : vector<4096x16xf32>
    %163 = vector.broadcast %159 : vector<1x16xf32> to vector<4096x16xf32>
    %164 = arith.addf %162, %163 : vector<4096x16xf32>
    %cst_135 = arith.constant 0.000000e+00 : f32
    %165 = vector.broadcast %cst_135 : f32 to vector<4096x16xf32>
    %166 = arith.maximumf %164, %165 : vector<4096x16xf32>
    %167 = vector.shape_cast %166 : vector<4096x16xf32> to vector<32x128x16xf32>
    %168 = arith.truncf %167 : vector<32x128x16xf32> to vector<32x128x16xbf16>
    %c0_136 = arith.constant 0 : index
    %c0_137 = arith.constant 0 : index
    %c0_138 = arith.constant 0 : index
    %c0_139 = arith.constant 0 : index
    %169 = vector.load %arg7[%c0_136, %c0_137, %c0_138, %c0_139] : memref<1x128x128x16xbf16, #tpu.memory_space<vmem>>, vector<1x32x128x16xbf16>
    %170 = vector.shape_cast %169 : vector<1x32x128x16xbf16> to vector<32x128x16xbf16>
    %171 = vector.shape_cast %168 : vector<32x128x16xbf16> to vector<1x32x128x16xbf16>
    tpu.vector_store %arg7[%c0_136, %c0_137, %c0_138, %c0_139], %171 {strides = array<i32>} : memref<1x128x128x16xbf16, #tpu.memory_space<vmem>>, vector<1x32x128x16xbf16>,
    %c4096_140 = arith.constant 4096 : index
    %c0_141 = arith.constant 0 : index
    %172 = vector.load %arg8[%c4096_140, %c0_141] : memref<16384x16xf32, #tpu.memory_space<vmem>>, vector<4096x16xf32>
    %173 = vector.broadcast %156 : vector<1x16xf32> to vector<4096x16xf32>
    %174 = arith.mulf %172, %173 : vector<4096x16xf32>
    %175 = vector.broadcast %159 : vector<1x16xf32> to vector<4096x16xf32>
    %176 = arith.addf %174, %175 : vector<4096x16xf32>
    %cst_142 = arith.constant 0.000000e+00 : f32
    %177 = vector.broadcast %cst_142 : f32 to vector<4096x16xf32>
    %178 = arith.maximumf %176, %177 : vector<4096x16xf32>
    %179 = vector.shape_cast %178 : vector<4096x16xf32> to vector<32x128x16xf32>
    %180 = arith.truncf %179 : vector<32x128x16xf32> to vector<32x128x16xbf16>
    %c0_143 = arith.constant 0 : index
    %c32_144 = arith.constant 32 : index
    %c0_145 = arith.constant 0 : index
    %c0_146 = arith.constant 0 : index
    %181 = vector.load %arg7[%c0_143, %c32_144, %c0_145, %c0_146] : memref<1x128x128x16xbf16, #tpu.memory_space<vmem>>, vector<1x32x128x16xbf16>
    %182 = vector.shape_cast %181 : vector<1x32x128x16xbf16> to vector<32x128x16xbf16>
    %183 = vector.shape_cast %180 : vector<32x128x16xbf16> to vector<1x32x128x16xbf16>
    tpu.vector_store %arg7[%c0_143, %c32_144, %c0_145, %c0_146], %183 {strides = array<i32>} : memref<1x128x128x16xbf16, #tpu.memory_space<vmem>>, vector<1x32x128x16xbf16>,
    %c8192_147 = arith.constant 8192 : index
    %c0_148 = arith.constant 0 : index
    %184 = vector.load %arg8[%c8192_147, %c0_148] : memref<16384x16xf32, #tpu.memory_space<vmem>>, vector<4096x16xf32>
    %185 = vector.broadcast %156 : vector<1x16xf32> to vector<4096x16xf32>
    %186 = arith.mulf %184, %185 : vector<4096x16xf32>
    %187 = vector.broadcast %159 : vector<1x16xf32> to vector<4096x16xf32>
    %188 = arith.addf %186, %187 : vector<4096x16xf32>
    %cst_149 = arith.constant 0.000000e+00 : f32
    %189 = vector.broadcast %cst_149 : f32 to vector<4096x16xf32>
    %190 = arith.maximumf %188, %189 : vector<4096x16xf32>
    %191 = vector.shape_cast %190 : vector<4096x16xf32> to vector<32x128x16xf32>
    %192 = arith.truncf %191 : vector<32x128x16xf32> to vector<32x128x16xbf16>
    %c0_150 = arith.constant 0 : index
    %c64_151 = arith.constant 64 : index
    %c0_152 = arith.constant 0 : index
    %c0_153 = arith.constant 0 : index
    %193 = vector.load %arg7[%c0_150, %c64_151, %c0_152, %c0_153] : memref<1x128x128x16xbf16, #tpu.memory_space<vmem>>, vector<1x32x128x16xbf16>
    %194 = vector.shape_cast %193 : vector<1x32x128x16xbf16> to vector<32x128x16xbf16>
    %195 = vector.shape_cast %192 : vector<32x128x16xbf16> to vector<1x32x128x16xbf16>
    tpu.vector_store %arg7[%c0_150, %c64_151, %c0_152, %c0_153], %195 {strides = array<i32>} : memref<1x128x128x16xbf16, #tpu.memory_space<vmem>>, vector<1x32x128x16xbf16>,
    %c12288_154 = arith.constant 12288 : index
    %c0_155 = arith.constant 0 : index
    %196 = vector.load %arg8[%c12288_154, %c0_155] : memref<16384x16xf32, #tpu.memory_space<vmem>>, vector<4096x16xf32>
    %197 = vector.broadcast %156 : vector<1x16xf32> to vector<4096x16xf32>
    %198 = arith.mulf %196, %197 : vector<4096x16xf32>
    %199 = vector.broadcast %159 : vector<1x16xf32> to vector<4096x16xf32>
    %200 = arith.addf %198, %199 : vector<4096x16xf32>
    %cst_156 = arith.constant 0.000000e+00 : f32
    %201 = vector.broadcast %cst_156 : f32 to vector<4096x16xf32>
    %202 = arith.maximumf %200, %201 : vector<4096x16xf32>
    %203 = vector.shape_cast %202 : vector<4096x16xf32> to vector<32x128x16xf32>
    %204 = arith.truncf %203 : vector<32x128x16xf32> to vector<32x128x16xbf16>
    %c0_157 = arith.constant 0 : index
    %c96_158 = arith.constant 96 : index
    %c0_159 = arith.constant 0 : index
    %c0_160 = arith.constant 0 : index
    %205 = vector.load %arg7[%c0_157, %c96_158, %c0_159, %c0_160] : memref<1x128x128x16xbf16, #tpu.memory_space<vmem>>, vector<1x32x128x16xbf16>
    %206 = vector.shape_cast %205 : vector<1x32x128x16xbf16> to vector<32x128x16xbf16>
    %207 = vector.shape_cast %204 : vector<32x128x16xbf16> to vector<1x32x128x16xbf16>
    tpu.vector_store %arg7[%c0_157, %c96_158, %c0_159, %c0_160], %207 {strides = array<i32>} : memref<1x128x128x16xbf16, #tpu.memory_space<vmem>>, vector<1x32x128x16xbf16>,
    return
  }
  func.func @transform_0(%arg0: i32) -> (i32, i32, i32, i32) {
    %c0_i32 = arith.constant 0 : i32
    %c0_i32_0 = arith.constant 0 : i32
    %c0_i32_1 = arith.constant 0 : i32
    %c0_i32_2 = arith.constant 0 : i32
    return %arg0, %c0_i32, %c0_i32_0, %c0_i32_1 : i32, i32, i32, i32
  }
  func.func @transform_1(%arg0: i32) -> (i32, i32) {
    %c0_i32 = arith.constant 0 : i32
    %c0_i32_0 = arith.constant 0 : i32
    %c0_i32_1 = arith.constant 0 : i32
    return %c0_i32, %c0_i32_0 : i32, i32
  }
  func.func @transform_2(%arg0: i32) -> (i32, i32) {
    %c0_i32 = arith.constant 0 : i32
    %c0_i32_0 = arith.constant 0 : i32
    %c0_i32_1 = arith.constant 0 : i32
    return %c0_i32, %c0_i32_0 : i32, i32
  }
  func.func @transform_3(%arg0: i32) -> (i32, i32) {
    %c0_i32 = arith.constant 0 : i32
    %c0_i32_0 = arith.constant 0 : i32
    %c0_i32_1 = arith.constant 0 : i32
    return %c0_i32, %c0_i32_0 : i32, i32
  }
  func.func @transform_4(%arg0: i32) -> (i32, i32) {
    %c0_i32 = arith.constant 0 : i32
    %c0_i32_0 = arith.constant 0 : i32
    %c0_i32_1 = arith.constant 0 : i32
    return %c0_i32, %c0_i32_0 : i32, i32
  }
  func.func @transform_5(%arg0: i32) -> (i32, i32) {
    %c0_i32 = arith.constant 0 : i32
    %c0_i32_0 = arith.constant 0 : i32
    %c0_i32_1 = arith.constant 0 : i32
    return %c0_i32, %c0_i32_0 : i32, i32
  }
  func.func @transform_6(%arg0: i32) -> (i32, i32, i32, i32) {
    %c0_i32 = arith.constant 0 : i32
    %c0_i32_0 = arith.constant 0 : i32
    %c0_i32_1 = arith.constant 0 : i32
    %c0_i32_2 = arith.constant 0 : i32
    return %arg0, %c0_i32, %c0_i32_0, %c0_i32_1 : i32, i32, i32, i32
  }
}

module attributes {stable_mosaic.version = 11 : i64} {
  func.func @_conv_gn_relu_kernel(%arg0: i32, %arg1: memref<1x130x130x16xbf16, #tpu.memory_space<vmem>>, %arg2: memref<144x16xbf16, #tpu.memory_space<vmem>>, %arg3: memref<1x16xf32, #tpu.memory_space<vmem>>, %arg4: memref<1x16xf32, #tpu.memory_space<vmem>>, %arg5: memref<1x16xf32, #tpu.memory_space<vmem>>, %arg6: memref<16x16xf32, #tpu.memory_space<vmem>>, %arg7: memref<1x128x128x16xbf16, #tpu.memory_space<vmem>>, %arg8: memref<16384x16xf32, #tpu.memory_space<vmem>>) attributes {dimension_semantics = [#tpu.dimension_semantics<parallel>], iteration_bounds = array<i64: 2>, scalar_prefetch = 0 : i64, scratch_operands = 1 : i64, tpu.core_type = #tpu.core_type<tc>, window_params = [{transform_indices = @transform_0, window_bounds = array<i64: 1, 130, 130, 16>}, {pipeline_mode = #tpu.pipeline_mode<synchronous>, transform_indices = @transform_1, window_bounds = array<i64: 144, 16>}, {pipeline_mode = #tpu.pipeline_mode<synchronous>, transform_indices = @transform_2, window_bounds = array<i64: 1, 16>}, {pipeline_mode = #tpu.pipeline_mode<synchronous>, transform_indices = @transform_3, window_bounds = array<i64: 1, 16>}, {pipeline_mode = #tpu.pipeline_mode<synchronous>, transform_indices = @transform_4, window_bounds = array<i64: 1, 16>}, {pipeline_mode = #tpu.pipeline_mode<synchronous>, transform_indices = @transform_5, window_bounds = array<i64: 16, 16>}, {transform_indices = @transform_6, window_bounds = array<i64: 1, 128, 128, 16>}]} {
    %c0 = arith.constant 0 : index
    %c0_0 = arith.constant 0 : index
    %0 = vector.load %arg3[%c0, %c0_0] : memref<1x16xf32, #tpu.memory_space<vmem>>, vector<1x16xf32>
    %cst = arith.constant 0.000000e+00 : f32
    %1 = vector.broadcast %cst : f32 to vector<1x16xf32>
    %cst_1 = arith.constant 0.000000e+00 : f32
    %2 = vector.broadcast %cst_1 : f32 to vector<1x16xf32>
    %cst_2 = arith.constant 0.000000e+00 : f32
    %3 = vector.broadcast %cst_2 : f32 to vector<4096x16xf32>
    %c0_3 = arith.constant 0 : index
    %c0_4 = arith.constant 0 : index
    %c0_5 = arith.constant 0 : index
    %c0_6 = arith.constant 0 : index
    %4 = vector.load %arg1[%c0_3, %c0_4, %c0_5, %c0_6] : memref<1x130x130x16xbf16, #tpu.memory_space<vmem>>, vector<1x32x128x16xbf16>
    %5 = vector.shape_cast %4 : vector<1x32x128x16xbf16> to vector<32x128x16xbf16>
    %6 = vector.shape_cast %5 : vector<32x128x16xbf16> to vector<4096x16xbf16>
    %c0_7 = arith.constant 0 : index
    %c0_8 = arith.constant 0 : index
    %7 = vector.load %arg2[%c0_7, %c0_8] : memref<144x16xbf16, #tpu.memory_space<vmem>>, vector<16x16xbf16>
    %cst_9 = arith.constant dense<0.000000e+00> : vector<4096x16xf32>
    %8 = tpu.matmul %6, %7, %cst_9 {dimension_numbers = #tpu.dot_dimension_numbers<[1], [0], [0], [1], [0, 0, 1, 1], [], []>} : vector<4096x16xbf16>, vector<16x16xbf16>, vector<4096x16xf32> -> vector<4096x16xf32>
    %9 = arith.addf %3, %8 : vector<4096x16xf32>
    %c0_10 = arith.constant 0 : index
    %c0_11 = arith.constant 0 : index
    %c1 = arith.constant 1 : index
    %c0_12 = arith.constant 0 : index
    %10 = vector.load %arg1[%c0_10, %c0_11, %c1, %c0_12] : memref<1x130x130x16xbf16, #tpu.memory_space<vmem>>, vector<1x32x128x16xbf16>
    %11 = vector.shape_cast %10 : vector<1x32x128x16xbf16> to vector<32x128x16xbf16>
    %12 = vector.shape_cast %11 : vector<32x128x16xbf16> to vector<4096x16xbf16>
    %c16 = arith.constant 16 : index
    %c0_13 = arith.constant 0 : index
    %13 = vector.load %arg2[%c16, %c0_13] : memref<144x16xbf16, #tpu.memory_space<vmem>>, vector<16x16xbf16>
    %cst_14 = arith.constant dense<0.000000e+00> : vector<4096x16xf32>
    %14 = tpu.matmul %12, %13, %cst_14 {dimension_numbers = #tpu.dot_dimension_numbers<[1], [0], [0], [1], [0, 0, 1, 1], [], []>} : vector<4096x16xbf16>, vector<16x16xbf16>, vector<4096x16xf32> -> vector<4096x16xf32>
    %15 = arith.addf %9, %14 : vector<4096x16xf32>
    %c0_15 = arith.constant 0 : index
    %c0_16 = arith.constant 0 : index
    %c2 = arith.constant 2 : index
    %c0_17 = arith.constant 0 : index
    %16 = vector.load %arg1[%c0_15, %c0_16, %c2, %c0_17] : memref<1x130x130x16xbf16, #tpu.memory_space<vmem>>, vector<1x32x128x16xbf16>
    %17 = vector.shape_cast %16 : vector<1x32x128x16xbf16> to vector<32x128x16xbf16>
    %18 = vector.shape_cast %17 : vector<32x128x16xbf16> to vector<4096x16xbf16>
    %c32 = arith.constant 32 : index
    %c0_18 = arith.constant 0 : index
    %19 = vector.load %arg2[%c32, %c0_18] : memref<144x16xbf16, #tpu.memory_space<vmem>>, vector<16x16xbf16>
    %cst_19 = arith.constant dense<0.000000e+00> : vector<4096x16xf32>
    %20 = tpu.matmul %18, %19, %cst_19 {dimension_numbers = #tpu.dot_dimension_numbers<[1], [0], [0], [1], [0, 0, 1, 1], [], []>} : vector<4096x16xbf16>, vector<16x16xbf16>, vector<4096x16xf32> -> vector<4096x16xf32>
    %21 = arith.addf %15, %20 : vector<4096x16xf32>
    %c0_20 = arith.constant 0 : index
    %c1_21 = arith.constant 1 : index
    %c0_22 = arith.constant 0 : index
    %c0_23 = arith.constant 0 : index
    %22 = vector.load %arg1[%c0_20, %c1_21, %c0_22, %c0_23] : memref<1x130x130x16xbf16, #tpu.memory_space<vmem>>, vector<1x32x128x16xbf16>
    %23 = vector.shape_cast %22 : vector<1x32x128x16xbf16> to vector<32x128x16xbf16>
    %24 = vector.shape_cast %23 : vector<32x128x16xbf16> to vector<4096x16xbf16>
    %c48 = arith.constant 48 : index
    %c0_24 = arith.constant 0 : index
    %25 = vector.load %arg2[%c48, %c0_24] : memref<144x16xbf16, #tpu.memory_space<vmem>>, vector<16x16xbf16>
    %cst_25 = arith.constant dense<0.000000e+00> : vector<4096x16xf32>
    %26 = tpu.matmul %24, %25, %cst_25 {dimension_numbers = #tpu.dot_dimension_numbers<[1], [0], [0], [1], [0, 0, 1, 1], [], []>} : vector<4096x16xbf16>, vector<16x16xbf16>, vector<4096x16xf32> -> vector<4096x16xf32>
    %27 = arith.addf %21, %26 : vector<4096x16xf32>
    %c0_26 = arith.constant 0 : index
    %c1_27 = arith.constant 1 : index
    %c1_28 = arith.constant 1 : index
    %c0_29 = arith.constant 0 : index
    %28 = vector.load %arg1[%c0_26, %c1_27, %c1_28, %c0_29] : memref<1x130x130x16xbf16, #tpu.memory_space<vmem>>, vector<1x32x128x16xbf16>
    %29 = vector.shape_cast %28 : vector<1x32x128x16xbf16> to vector<32x128x16xbf16>
    %30 = vector.shape_cast %29 : vector<32x128x16xbf16> to vector<4096x16xbf16>
    %c64 = arith.constant 64 : index
    %c0_30 = arith.constant 0 : index
    %31 = vector.load %arg2[%c64, %c0_30] : memref<144x16xbf16, #tpu.memory_space<vmem>>, vector<16x16xbf16>
    %cst_31 = arith.constant dense<0.000000e+00> : vector<4096x16xf32>
    %32 = tpu.matmul %30, %31, %cst_31 {dimension_numbers = #tpu.dot_dimension_numbers<[1], [0], [0], [1], [0, 0, 1, 1], [], []>} : vector<4096x16xbf16>, vector<16x16xbf16>, vector<4096x16xf32> -> vector<4096x16xf32>
    %33 = arith.addf %27, %32 : vector<4096x16xf32>
    %c0_32 = arith.constant 0 : index
    %c1_33 = arith.constant 1 : index
    %c2_34 = arith.constant 2 : index
    %c0_35 = arith.constant 0 : index
    %34 = vector.load %arg1[%c0_32, %c1_33, %c2_34, %c0_35] : memref<1x130x130x16xbf16, #tpu.memory_space<vmem>>, vector<1x32x128x16xbf16>
    %35 = vector.shape_cast %34 : vector<1x32x128x16xbf16> to vector<32x128x16xbf16>
    %36 = vector.shape_cast %35 : vector<32x128x16xbf16> to vector<4096x16xbf16>
    %c80 = arith.constant 80 : index
    %c0_36 = arith.constant 0 : index
    %37 = vector.load %arg2[%c80, %c0_36] : memref<144x16xbf16, #tpu.memory_space<vmem>>, vector<16x16xbf16>
    %cst_37 = arith.constant dense<0.000000e+00> : vector<4096x16xf32>
    %38 = tpu.matmul %36, %37, %cst_37 {dimension_numbers = #tpu.dot_dimension_numbers<[1], [0], [0], [1], [0, 0, 1, 1], [], []>} : vector<4096x16xbf16>, vector<16x16xbf16>, vector<4096x16xf32> -> vector<4096x16xf32>
    %39 = arith.addf %33, %38 : vector<4096x16xf32>
    %c0_38 = arith.constant 0 : index
    %c2_39 = arith.constant 2 : index
    %c0_40 = arith.constant 0 : index
    %c0_41 = arith.constant 0 : index
    %40 = vector.load %arg1[%c0_38, %c2_39, %c0_40, %c0_41] : memref<1x130x130x16xbf16, #tpu.memory_space<vmem>>, vector<1x32x128x16xbf16>
    %41 = vector.shape_cast %40 : vector<1x32x128x16xbf16> to vector<32x128x16xbf16>
    %42 = vector.shape_cast %41 : vector<32x128x16xbf16> to vector<4096x16xbf16>
    %c96 = arith.constant 96 : index
    %c0_42 = arith.constant 0 : index
    %43 = vector.load %arg2[%c96, %c0_42] : memref<144x16xbf16, #tpu.memory_space<vmem>>, vector<16x16xbf16>
    %cst_43 = arith.constant dense<0.000000e+00> : vector<4096x16xf32>
    %44 = tpu.matmul %42, %43, %cst_43 {dimension_numbers = #tpu.dot_dimension_numbers<[1], [0], [0], [1], [0, 0, 1, 1], [], []>} : vector<4096x16xbf16>, vector<16x16xbf16>, vector<4096x16xf32> -> vector<4096x16xf32>
    %45 = arith.addf %39, %44 : vector<4096x16xf32>
    %c0_44 = arith.constant 0 : index
    %c2_45 = arith.constant 2 : index
    %c1_46 = arith.constant 1 : index
    %c0_47 = arith.constant 0 : index
    %46 = vector.load %arg1[%c0_44, %c2_45, %c1_46, %c0_47] : memref<1x130x130x16xbf16, #tpu.memory_space<vmem>>, vector<1x32x128x16xbf16>
    %47 = vector.shape_cast %46 : vector<1x32x128x16xbf16> to vector<32x128x16xbf16>
    %48 = vector.shape_cast %47 : vector<32x128x16xbf16> to vector<4096x16xbf16>
    %c112 = arith.constant 112 : index
    %c0_48 = arith.constant 0 : index
    %49 = vector.load %arg2[%c112, %c0_48] : memref<144x16xbf16, #tpu.memory_space<vmem>>, vector<16x16xbf16>
    %cst_49 = arith.constant dense<0.000000e+00> : vector<4096x16xf32>
    %50 = tpu.matmul %48, %49, %cst_49 {dimension_numbers = #tpu.dot_dimension_numbers<[1], [0], [0], [1], [0, 0, 1, 1], [], []>} : vector<4096x16xbf16>, vector<16x16xbf16>, vector<4096x16xf32> -> vector<4096x16xf32>
    %51 = arith.addf %45, %50 : vector<4096x16xf32>
    %c0_50 = arith.constant 0 : index
    %c2_51 = arith.constant 2 : index
    %c2_52 = arith.constant 2 : index
    %c0_53 = arith.constant 0 : index
    %52 = vector.load %arg1[%c0_50, %c2_51, %c2_52, %c0_53] : memref<1x130x130x16xbf16, #tpu.memory_space<vmem>>, vector<1x32x128x16xbf16>
    %53 = vector.shape_cast %52 : vector<1x32x128x16xbf16> to vector<32x128x16xbf16>
    %54 = vector.shape_cast %53 : vector<32x128x16xbf16> to vector<4096x16xbf16>
    %c128 = arith.constant 128 : index
    %c0_54 = arith.constant 0 : index
    %55 = vector.load %arg2[%c128, %c0_54] : memref<144x16xbf16, #tpu.memory_space<vmem>>, vector<16x16xbf16>
    %cst_55 = arith.constant dense<0.000000e+00> : vector<4096x16xf32>
    %56 = tpu.matmul %54, %55, %cst_55 {dimension_numbers = #tpu.dot_dimension_numbers<[1], [0], [0], [1], [0, 0, 1, 1], [], []>} : vector<4096x16xbf16>, vector<16x16xbf16>, vector<4096x16xf32> -> vector<4096x16xf32>
    %57 = arith.addf %51, %56 : vector<4096x16xf32>
    %58 = vector.broadcast %0 : vector<1x16xf32> to vector<4096x16xf32>
    %59 = arith.addf %57, %58 : vector<4096x16xf32>
    %c0_56 = arith.constant 0 : index
    %c0_57 = arith.constant 0 : index
    %60 = vector.load %arg8[%c0_56, %c0_57] : memref<16384x16xf32, #tpu.memory_space<vmem>>, vector<4096x16xf32>
    tpu.vector_store %arg8[%c0_56, %c0_57], %59 {strides = array<i32>} : memref<16384x16xf32, #tpu.memory_space<vmem>>, vector<4096x16xf32>,
    %cst_58 = arith.constant dense<0.000000e+00> : vector<16xf32>
    %61 = vector.multi_reduction <add>, %59, %cst_58 [0] : vector<4096x16xf32> to vector<16xf32>
    %62 = vector.shape_cast %61 : vector<16xf32> to vector<1x16xf32>
    %63 = arith.addf %1, %62 : vector<1x16xf32>
    %64 = arith.mulf %59, %59 : vector<4096x16xf32>
    %cst_59 = arith.constant dense<0.000000e+00> : vector<16xf32>
    %65 = vector.multi_reduction <add>, %64, %cst_59 [0] : vector<4096x16xf32> to vector<16xf32>
    %66 = vector.shape_cast %65 : vector<16xf32> to vector<1x16xf32>
    %67 = arith.addf %2, %66 : vector<1x16xf32>
    %cst_60 = arith.constant 0.000000e+00 : f32
    %68 = vector.broadcast %cst_60 : f32 to vector<4096x16xf32>
    %c0_61 = arith.constant 0 : index
    %c32_62 = arith.constant 32 : index
    %c0_63 = arith.constant 0 : index
    %c0_64 = arith.constant 0 : index
    %69 = vector.load %arg1[%c0_61, %c32_62, %c0_63, %c0_64] : memref<1x130x130x16xbf16, #tpu.memory_space<vmem>>, vector<1x32x128x16xbf16>
    %70 = vector.shape_cast %69 : vector<1x32x128x16xbf16> to vector<32x128x16xbf16>
    %71 = vector.shape_cast %70 : vector<32x128x16xbf16> to vector<4096x16xbf16>
    %c0_65 = arith.constant 0 : index
    %c0_66 = arith.constant 0 : index
    %72 = vector.load %arg2[%c0_65, %c0_66] : memref<144x16xbf16, #tpu.memory_space<vmem>>, vector<16x16xbf16>
    %cst_67 = arith.constant dense<0.000000e+00> : vector<4096x16xf32>
    %73 = tpu.matmul %71, %72, %cst_67 {dimension_numbers = #tpu.dot_dimension_numbers<[1], [0], [0], [1], [0, 0, 1, 1], [], []>} : vector<4096x16xbf16>, vector<16x16xbf16>, vector<4096x16xf32> -> vector<4096x16xf32>
    %74 = arith.addf %68, %73 : vector<4096x16xf32>
    %c0_68 = arith.constant 0 : index
    %c32_69 = arith.constant 32 : index
    %c1_70 = arith.constant 1 : index
    %c0_71 = arith.constant 0 : index
    %75 = vector.load %arg1[%c0_68, %c32_69, %c1_70, %c0_71] : memref<1x130x130x16xbf16, #tpu.memory_space<vmem>>, vector<1x32x128x16xbf16>
    %76 = vector.shape_cast %75 : vector<1x32x128x16xbf16> to vector<32x128x16xbf16>
    %77 = vector.shape_cast %76 : vector<32x128x16xbf16> to vector<4096x16xbf16>
    %c16_72 = arith.constant 16 : index
    %c0_73 = arith.constant 0 : index
    %78 = vector.load %arg2[%c16_72, %c0_73] : memref<144x16xbf16, #tpu.memory_space<vmem>>, vector<16x16xbf16>
    %cst_74 = arith.constant dense<0.000000e+00> : vector<4096x16xf32>
    %79 = tpu.matmul %77, %78, %cst_74 {dimension_numbers = #tpu.dot_dimension_numbers<[1], [0], [0], [1], [0, 0, 1, 1], [], []>} : vector<4096x16xbf16>, vector<16x16xbf16>, vector<4096x16xf32> -> vector<4096x16xf32>
    %80 = arith.addf %74, %79 : vector<4096x16xf32>
    %c0_75 = arith.constant 0 : index
    %c32_76 = arith.constant 32 : index
    %c2_77 = arith.constant 2 : index
    %c0_78 = arith.constant 0 : index
    %81 = vector.load %arg1[%c0_75, %c32_76, %c2_77, %c0_78] : memref<1x130x130x16xbf16, #tpu.memory_space<vmem>>, vector<1x32x128x16xbf16>
    %82 = vector.shape_cast %81 : vector<1x32x128x16xbf16> to vector<32x128x16xbf16>
    %83 = vector.shape_cast %82 : vector<32x128x16xbf16> to vector<4096x16xbf16>
    %c32_79 = arith.constant 32 : index
    %c0_80 = arith.constant 0 : index
    %84 = vector.load %arg2[%c32_79, %c0_80] : memref<144x16xbf16, #tpu.memory_space<vmem>>, vector<16x16xbf16>
    %cst_81 = arith.constant dense<0.000000e+00> : vector<4096x16xf32>
    %85 = tpu.matmul %83, %84, %cst_81 {dimension_numbers = #tpu.dot_dimension_numbers<[1], [0], [0], [1], [0, 0, 1, 1], [], []>} : vector<4096x16xbf16>, vector<16x16xbf16>, vector<4096x16xf32> -> vector<4096x16xf32>
    %86 = arith.addf %80, %85 : vector<4096x16xf32>
    %c0_82 = arith.constant 0 : index
    %c33 = arith.constant 33 : index
    %c0_83 = arith.constant 0 : index
    %c0_84 = arith.constant 0 : index
    %87 = vector.load %arg1[%c0_82, %c33, %c0_83, %c0_84] : memref<1x130x130x16xbf16, #tpu.memory_space<vmem>>, vector<1x32x128x16xbf16>
    %88 = vector.shape_cast %87 : vector<1x32x128x16xbf16> to vector<32x128x16xbf16>
    %89 = vector.shape_cast %88 : vector<32x128x16xbf16> to vector<4096x16xbf16>
    %c48_85 = arith.constant 48 : index
    %c0_86 = arith.constant 0 : index
    %90 = vector.load %arg2[%c48_85, %c0_86] : memref<144x16xbf16, #tpu.memory_space<vmem>>, vector<16x16xbf16>
    %cst_87 = arith.constant dense<0.000000e+00> : vector<4096x16xf32>
    %91 = tpu.matmul %89, %90, %cst_87 {dimension_numbers = #tpu.dot_dimension_numbers<[1], [0], [0], [1], [0, 0, 1, 1], [], []>} : vector<4096x16xbf16>, vector<16x16xbf16>, vector<4096x16xf32> -> vector<4096x16xf32>
    %92 = arith.addf %86, %91 : vector<4096x16xf32>
    %c0_88 = arith.constant 0 : index
    %c33_89 = arith.constant 33 : index
    %c1_90 = arith.constant 1 : index
    %c0_91 = arith.constant 0 : index
    %93 = vector.load %arg1[%c0_88, %c33_89, %c1_90, %c0_91] : memref<1x130x130x16xbf16, #tpu.memory_space<vmem>>, vector<1x32x128x16xbf16>
    %94 = vector.shape_cast %93 : vector<1x32x128x16xbf16> to vector<32x128x16xbf16>
    %95 = vector.shape_cast %94 : vector<32x128x16xbf16> to vector<4096x16xbf16>
    %c64_92 = arith.constant 64 : index
    %c0_93 = arith.constant 0 : index
    %96 = vector.load %arg2[%c64_92, %c0_93] : memref<144x16xbf16, #tpu.memory_space<vmem>>, vector<16x16xbf16>
    %cst_94 = arith.constant dense<0.000000e+00> : vector<4096x16xf32>
    %97 = tpu.matmul %95, %96, %cst_94 {dimension_numbers = #tpu.dot_dimension_numbers<[1], [0], [0], [1], [0, 0, 1, 1], [], []>} : vector<4096x16xbf16>, vector<16x16xbf16>, vector<4096x16xf32> -> vector<4096x16xf32>
    %98 = arith.addf %92, %97 : vector<4096x16xf32>
    %c0_95 = arith.constant 0 : index
    %c33_96 = arith.constant 33 : index
    %c2_97 = arith.constant 2 : index
    %c0_98 = arith.constant 0 : index
    %99 = vector.load %arg1[%c0_95, %c33_96, %c2_97, %c0_98] : memref<1x130x130x16xbf16, #tpu.memory_space<vmem>>, vector<1x32x128x16xbf16>
    %100 = vector.shape_cast %99 : vector<1x32x128x16xbf16> to vector<32x128x16xbf16>
    %101 = vector.shape_cast %100 : vector<32x128x16xbf16> to vector<4096x16xbf16>
    %c80_99 = arith.constant 80 : index
    %c0_100 = arith.constant 0 : index
    %102 = vector.load %arg2[%c80_99, %c0_100] : memref<144x16xbf16, #tpu.memory_space<vmem>>, vector<16x16xbf16>
    %cst_101 = arith.constant dense<0.000000e+00> : vector<4096x16xf32>
    %103 = tpu.matmul %101, %102, %cst_101 {dimension_numbers = #tpu.dot_dimension_numbers<[1], [0], [0], [1], [0, 0, 1, 1], [], []>} : vector<4096x16xbf16>, vector<16x16xbf16>, vector<4096x16xf32> -> vector<4096x16xf32>
    %104 = arith.addf %98, %103 : vector<4096x16xf32>
    %c0_102 = arith.constant 0 : index
    %c34 = arith.constant 34 : index
    %c0_103 = arith.constant 0 : index
    %c0_104 = arith.constant 0 : index
    %105 = vector.load %arg1[%c0_102, %c34, %c0_103, %c0_104] : memref<1x130x130x16xbf16, #tpu.memory_space<vmem>>, vector<1x32x128x16xbf16>
    %106 = vector.shape_cast %105 : vector<1x32x128x16xbf16> to vector<32x128x16xbf16>
    %107 = vector.shape_cast %106 : vector<32x128x16xbf16> to vector<4096x16xbf16>
    %c96_105 = arith.constant 96 : index
    %c0_106 = arith.constant 0 : index
    %108 = vector.load %arg2[%c96_105, %c0_106] : memref<144x16xbf16, #tpu.memory_space<vmem>>, vector<16x16xbf16>
    %cst_107 = arith.constant dense<0.000000e+00> : vector<4096x16xf32>
    %109 = tpu.matmul %107, %108, %cst_107 {dimension_numbers = #tpu.dot_dimension_numbers<[1], [0], [0], [1], [0, 0, 1, 1], [], []>} : vector<4096x16xbf16>, vector<16x16xbf16>, vector<4096x16xf32> -> vector<4096x16xf32>
    %110 = arith.addf %104, %109 : vector<4096x16xf32>
    %c0_108 = arith.constant 0 : index
    %c34_109 = arith.constant 34 : index
    %c1_110 = arith.constant 1 : index
    %c0_111 = arith.constant 0 : index
    %111 = vector.load %arg1[%c0_108, %c34_109, %c1_110, %c0_111] : memref<1x130x130x16xbf16, #tpu.memory_space<vmem>>, vector<1x32x128x16xbf16>
    %112 = vector.shape_cast %111 : vector<1x32x128x16xbf16> to vector<32x128x16xbf16>
    %113 = vector.shape_cast %112 : vector<32x128x16xbf16> to vector<4096x16xbf16>
    %c112_112 = arith.constant 112 : index
    %c0_113 = arith.constant 0 : index
    %114 = vector.load %arg2[%c112_112, %c0_113] : memref<144x16xbf16, #tpu.memory_space<vmem>>, vector<16x16xbf16>
    %cst_114 = arith.constant dense<0.000000e+00> : vector<4096x16xf32>
    %115 = tpu.matmul %113, %114, %cst_114 {dimension_numbers = #tpu.dot_dimension_numbers<[1], [0], [0], [1], [0, 0, 1, 1], [], []>} : vector<4096x16xbf16>, vector<16x16xbf16>, vector<4096x16xf32> -> vector<4096x16xf32>
    %116 = arith.addf %110, %115 : vector<4096x16xf32>
    %c0_115 = arith.constant 0 : index
    %c34_116 = arith.constant 34 : index
    %c2_117 = arith.constant 2 : index
    %c0_118 = arith.constant 0 : index
    %117 = vector.load %arg1[%c0_115, %c34_116, %c2_117, %c0_118] : memref<1x130x130x16xbf16, #tpu.memory_space<vmem>>, vector<1x32x128x16xbf16>
    %118 = vector.shape_cast %117 : vector<1x32x128x16xbf16> to vector<32x128x16xbf16>
    %119 = vector.shape_cast %118 : vector<32x128x16xbf16> to vector<4096x16xbf16>
    %c128_119 = arith.constant 128 : index
    %c0_120 = arith.constant 0 : index
    %120 = vector.load %arg2[%c128_119, %c0_120] : memref<144x16xbf16, #tpu.memory_space<vmem>>, vector<16x16xbf16>
    %cst_121 = arith.constant dense<0.000000e+00> : vector<4096x16xf32>
    %121 = tpu.matmul %119, %120, %cst_121 {dimension_numbers = #tpu.dot_dimension_numbers<[1], [0], [0], [1], [0, 0, 1, 1], [], []>} : vector<4096x16xbf16>, vector<16x16xbf16>, vector<4096x16xf32> -> vector<4096x16xf32>
    %122 = arith.addf %116, %121 : vector<4096x16xf32>
    %123 = vector.broadcast %0 : vector<1x16xf32> to vector<4096x16xf32>
    %124 = arith.addf %122, %123 : vector<4096x16xf32>
    %c4096 = arith.constant 4096 : index
    %c0_122 = arith.constant 0 : index
    %125 = vector.load %arg8[%c4096, %c0_122] : memref<16384x16xf32, #tpu.memory_space<vmem>>, vector<4096x16xf32>
    tpu.vector_store %arg8[%c4096, %c0_122], %124 {strides = array<i32>} : memref<16384x16xf32, #tpu.memory_space<vmem>>, vector<4096x16xf32>,
    %cst_123 = arith.constant dense<0.000000e+00> : vector<16xf32>
    %126 = vector.multi_reduction <add>, %124, %cst_123 [0] : vector<4096x16xf32> to vector<16xf32>
    %127 = vector.shape_cast %126 : vector<16xf32> to vector<1x16xf32>
    %128 = arith.addf %63, %127 : vector<1x16xf32>
    %129 = arith.mulf %124, %124 : vector<4096x16xf32>
    %cst_124 = arith.constant dense<0.000000e+00> : vector<16xf32>
    %130 = vector.multi_reduction <add>, %129, %cst_124 [0] : vector<4096x16xf32> to vector<16xf32>
    %131 = vector.shape_cast %130 : vector<16xf32> to vector<1x16xf32>
    %132 = arith.addf %67, %131 : vector<1x16xf32>
    %cst_125 = arith.constant 0.000000e+00 : f32
    %133 = vector.broadcast %cst_125 : f32 to vector<4096x16xf32>
    %c0_126 = arith.constant 0 : index
    %c64_127 = arith.constant 64 : index
    %c0_128 = arith.constant 0 : index
    %c0_129 = arith.constant 0 : index
    %134 = vector.load %arg1[%c0_126, %c64_127, %c0_128, %c0_129] : memref<1x130x130x16xbf16, #tpu.memory_space<vmem>>, vector<1x32x128x16xbf16>
    %135 = vector.shape_cast %134 : vector<1x32x128x16xbf16> to vector<32x128x16xbf16>
    %136 = vector.shape_cast %135 : vector<32x128x16xbf16> to vector<4096x16xbf16>
    %c0_130 = arith.constant 0 : index
    %c0_131 = arith.constant 0 : index
    %137 = vector.load %arg2[%c0_130, %c0_131] : memref<144x16xbf16, #tpu.memory_space<vmem>>, vector<16x16xbf16>
    %cst_132 = arith.constant dense<0.000000e+00> : vector<4096x16xf32>
    %138 = tpu.matmul %136, %137, %cst_132 {dimension_numbers = #tpu.dot_dimension_numbers<[1], [0], [0], [1], [0, 0, 1, 1], [], []>} : vector<4096x16xbf16>, vector<16x16xbf16>, vector<4096x16xf32> -> vector<4096x16xf32>
    %139 = arith.addf %133, %138 : vector<4096x16xf32>
    %c0_133 = arith.constant 0 : index
    %c64_134 = arith.constant 64 : index
    %c1_135 = arith.constant 1 : index
    %c0_136 = arith.constant 0 : index
    %140 = vector.load %arg1[%c0_133, %c64_134, %c1_135, %c0_136] : memref<1x130x130x16xbf16, #tpu.memory_space<vmem>>, vector<1x32x128x16xbf16>
    %141 = vector.shape_cast %140 : vector<1x32x128x16xbf16> to vector<32x128x16xbf16>
    %142 = vector.shape_cast %141 : vector<32x128x16xbf16> to vector<4096x16xbf16>
    %c16_137 = arith.constant 16 : index
    %c0_138 = arith.constant 0 : index
    %143 = vector.load %arg2[%c16_137, %c0_138] : memref<144x16xbf16, #tpu.memory_space<vmem>>, vector<16x16xbf16>
    %cst_139 = arith.constant dense<0.000000e+00> : vector<4096x16xf32>
    %144 = tpu.matmul %142, %143, %cst_139 {dimension_numbers = #tpu.dot_dimension_numbers<[1], [0], [0], [1], [0, 0, 1, 1], [], []>} : vector<4096x16xbf16>, vector<16x16xbf16>, vector<4096x16xf32> -> vector<4096x16xf32>
    %145 = arith.addf %139, %144 : vector<4096x16xf32>
    %c0_140 = arith.constant 0 : index
    %c64_141 = arith.constant 64 : index
    %c2_142 = arith.constant 2 : index
    %c0_143 = arith.constant 0 : index
    %146 = vector.load %arg1[%c0_140, %c64_141, %c2_142, %c0_143] : memref<1x130x130x16xbf16, #tpu.memory_space<vmem>>, vector<1x32x128x16xbf16>
    %147 = vector.shape_cast %146 : vector<1x32x128x16xbf16> to vector<32x128x16xbf16>
    %148 = vector.shape_cast %147 : vector<32x128x16xbf16> to vector<4096x16xbf16>
    %c32_144 = arith.constant 32 : index
    %c0_145 = arith.constant 0 : index
    %149 = vector.load %arg2[%c32_144, %c0_145] : memref<144x16xbf16, #tpu.memory_space<vmem>>, vector<16x16xbf16>
    %cst_146 = arith.constant dense<0.000000e+00> : vector<4096x16xf32>
    %150 = tpu.matmul %148, %149, %cst_146 {dimension_numbers = #tpu.dot_dimension_numbers<[1], [0], [0], [1], [0, 0, 1, 1], [], []>} : vector<4096x16xbf16>, vector<16x16xbf16>, vector<4096x16xf32> -> vector<4096x16xf32>
    %151 = arith.addf %145, %150 : vector<4096x16xf32>
    %c0_147 = arith.constant 0 : index
    %c65 = arith.constant 65 : index
    %c0_148 = arith.constant 0 : index
    %c0_149 = arith.constant 0 : index
    %152 = vector.load %arg1[%c0_147, %c65, %c0_148, %c0_149] : memref<1x130x130x16xbf16, #tpu.memory_space<vmem>>, vector<1x32x128x16xbf16>
    %153 = vector.shape_cast %152 : vector<1x32x128x16xbf16> to vector<32x128x16xbf16>
    %154 = vector.shape_cast %153 : vector<32x128x16xbf16> to vector<4096x16xbf16>
    %c48_150 = arith.constant 48 : index
    %c0_151 = arith.constant 0 : index
    %155 = vector.load %arg2[%c48_150, %c0_151] : memref<144x16xbf16, #tpu.memory_space<vmem>>, vector<16x16xbf16>
    %cst_152 = arith.constant dense<0.000000e+00> : vector<4096x16xf32>
    %156 = tpu.matmul %154, %155, %cst_152 {dimension_numbers = #tpu.dot_dimension_numbers<[1], [0], [0], [1], [0, 0, 1, 1], [], []>} : vector<4096x16xbf16>, vector<16x16xbf16>, vector<4096x16xf32> -> vector<4096x16xf32>
    %157 = arith.addf %151, %156 : vector<4096x16xf32>
    %c0_153 = arith.constant 0 : index
    %c65_154 = arith.constant 65 : index
    %c1_155 = arith.constant 1 : index
    %c0_156 = arith.constant 0 : index
    %158 = vector.load %arg1[%c0_153, %c65_154, %c1_155, %c0_156] : memref<1x130x130x16xbf16, #tpu.memory_space<vmem>>, vector<1x32x128x16xbf16>
    %159 = vector.shape_cast %158 : vector<1x32x128x16xbf16> to vector<32x128x16xbf16>
    %160 = vector.shape_cast %159 : vector<32x128x16xbf16> to vector<4096x16xbf16>
    %c64_157 = arith.constant 64 : index
    %c0_158 = arith.constant 0 : index
    %161 = vector.load %arg2[%c64_157, %c0_158] : memref<144x16xbf16, #tpu.memory_space<vmem>>, vector<16x16xbf16>
    %cst_159 = arith.constant dense<0.000000e+00> : vector<4096x16xf32>
    %162 = tpu.matmul %160, %161, %cst_159 {dimension_numbers = #tpu.dot_dimension_numbers<[1], [0], [0], [1], [0, 0, 1, 1], [], []>} : vector<4096x16xbf16>, vector<16x16xbf16>, vector<4096x16xf32> -> vector<4096x16xf32>
    %163 = arith.addf %157, %162 : vector<4096x16xf32>
    %c0_160 = arith.constant 0 : index
    %c65_161 = arith.constant 65 : index
    %c2_162 = arith.constant 2 : index
    %c0_163 = arith.constant 0 : index
    %164 = vector.load %arg1[%c0_160, %c65_161, %c2_162, %c0_163] : memref<1x130x130x16xbf16, #tpu.memory_space<vmem>>, vector<1x32x128x16xbf16>
    %165 = vector.shape_cast %164 : vector<1x32x128x16xbf16> to vector<32x128x16xbf16>
    %166 = vector.shape_cast %165 : vector<32x128x16xbf16> to vector<4096x16xbf16>
    %c80_164 = arith.constant 80 : index
    %c0_165 = arith.constant 0 : index
    %167 = vector.load %arg2[%c80_164, %c0_165] : memref<144x16xbf16, #tpu.memory_space<vmem>>, vector<16x16xbf16>
    %cst_166 = arith.constant dense<0.000000e+00> : vector<4096x16xf32>
    %168 = tpu.matmul %166, %167, %cst_166 {dimension_numbers = #tpu.dot_dimension_numbers<[1], [0], [0], [1], [0, 0, 1, 1], [], []>} : vector<4096x16xbf16>, vector<16x16xbf16>, vector<4096x16xf32> -> vector<4096x16xf32>
    %169 = arith.addf %163, %168 : vector<4096x16xf32>
    %c0_167 = arith.constant 0 : index
    %c66 = arith.constant 66 : index
    %c0_168 = arith.constant 0 : index
    %c0_169 = arith.constant 0 : index
    %170 = vector.load %arg1[%c0_167, %c66, %c0_168, %c0_169] : memref<1x130x130x16xbf16, #tpu.memory_space<vmem>>, vector<1x32x128x16xbf16>
    %171 = vector.shape_cast %170 : vector<1x32x128x16xbf16> to vector<32x128x16xbf16>
    %172 = vector.shape_cast %171 : vector<32x128x16xbf16> to vector<4096x16xbf16>
    %c96_170 = arith.constant 96 : index
    %c0_171 = arith.constant 0 : index
    %173 = vector.load %arg2[%c96_170, %c0_171] : memref<144x16xbf16, #tpu.memory_space<vmem>>, vector<16x16xbf16>
    %cst_172 = arith.constant dense<0.000000e+00> : vector<4096x16xf32>
    %174 = tpu.matmul %172, %173, %cst_172 {dimension_numbers = #tpu.dot_dimension_numbers<[1], [0], [0], [1], [0, 0, 1, 1], [], []>} : vector<4096x16xbf16>, vector<16x16xbf16>, vector<4096x16xf32> -> vector<4096x16xf32>
    %175 = arith.addf %169, %174 : vector<4096x16xf32>
    %c0_173 = arith.constant 0 : index
    %c66_174 = arith.constant 66 : index
    %c1_175 = arith.constant 1 : index
    %c0_176 = arith.constant 0 : index
    %176 = vector.load %arg1[%c0_173, %c66_174, %c1_175, %c0_176] : memref<1x130x130x16xbf16, #tpu.memory_space<vmem>>, vector<1x32x128x16xbf16>
    %177 = vector.shape_cast %176 : vector<1x32x128x16xbf16> to vector<32x128x16xbf16>
    %178 = vector.shape_cast %177 : vector<32x128x16xbf16> to vector<4096x16xbf16>
    %c112_177 = arith.constant 112 : index
    %c0_178 = arith.constant 0 : index
    %179 = vector.load %arg2[%c112_177, %c0_178] : memref<144x16xbf16, #tpu.memory_space<vmem>>, vector<16x16xbf16>
    %cst_179 = arith.constant dense<0.000000e+00> : vector<4096x16xf32>
    %180 = tpu.matmul %178, %179, %cst_179 {dimension_numbers = #tpu.dot_dimension_numbers<[1], [0], [0], [1], [0, 0, 1, 1], [], []>} : vector<4096x16xbf16>, vector<16x16xbf16>, vector<4096x16xf32> -> vector<4096x16xf32>
    %181 = arith.addf %175, %180 : vector<4096x16xf32>
    %c0_180 = arith.constant 0 : index
    %c66_181 = arith.constant 66 : index
    %c2_182 = arith.constant 2 : index
    %c0_183 = arith.constant 0 : index
    %182 = vector.load %arg1[%c0_180, %c66_181, %c2_182, %c0_183] : memref<1x130x130x16xbf16, #tpu.memory_space<vmem>>, vector<1x32x128x16xbf16>
    %183 = vector.shape_cast %182 : vector<1x32x128x16xbf16> to vector<32x128x16xbf16>
    %184 = vector.shape_cast %183 : vector<32x128x16xbf16> to vector<4096x16xbf16>
    %c128_184 = arith.constant 128 : index
    %c0_185 = arith.constant 0 : index
    %185 = vector.load %arg2[%c128_184, %c0_185] : memref<144x16xbf16, #tpu.memory_space<vmem>>, vector<16x16xbf16>
    %cst_186 = arith.constant dense<0.000000e+00> : vector<4096x16xf32>
    %186 = tpu.matmul %184, %185, %cst_186 {dimension_numbers = #tpu.dot_dimension_numbers<[1], [0], [0], [1], [0, 0, 1, 1], [], []>} : vector<4096x16xbf16>, vector<16x16xbf16>, vector<4096x16xf32> -> vector<4096x16xf32>
    %187 = arith.addf %181, %186 : vector<4096x16xf32>
    %188 = vector.broadcast %0 : vector<1x16xf32> to vector<4096x16xf32>
    %189 = arith.addf %187, %188 : vector<4096x16xf32>
    %c8192 = arith.constant 8192 : index
    %c0_187 = arith.constant 0 : index
    %190 = vector.load %arg8[%c8192, %c0_187] : memref<16384x16xf32, #tpu.memory_space<vmem>>, vector<4096x16xf32>
    tpu.vector_store %arg8[%c8192, %c0_187], %189 {strides = array<i32>} : memref<16384x16xf32, #tpu.memory_space<vmem>>, vector<4096x16xf32>,
    %cst_188 = arith.constant dense<0.000000e+00> : vector<16xf32>
    %191 = vector.multi_reduction <add>, %189, %cst_188 [0] : vector<4096x16xf32> to vector<16xf32>
    %192 = vector.shape_cast %191 : vector<16xf32> to vector<1x16xf32>
    %193 = arith.addf %128, %192 : vector<1x16xf32>
    %194 = arith.mulf %189, %189 : vector<4096x16xf32>
    %cst_189 = arith.constant dense<0.000000e+00> : vector<16xf32>
    %195 = vector.multi_reduction <add>, %194, %cst_189 [0] : vector<4096x16xf32> to vector<16xf32>
    %196 = vector.shape_cast %195 : vector<16xf32> to vector<1x16xf32>
    %197 = arith.addf %132, %196 : vector<1x16xf32>
    %cst_190 = arith.constant 0.000000e+00 : f32
    %198 = vector.broadcast %cst_190 : f32 to vector<4096x16xf32>
    %c0_191 = arith.constant 0 : index
    %c96_192 = arith.constant 96 : index
    %c0_193 = arith.constant 0 : index
    %c0_194 = arith.constant 0 : index
    %199 = vector.load %arg1[%c0_191, %c96_192, %c0_193, %c0_194] : memref<1x130x130x16xbf16, #tpu.memory_space<vmem>>, vector<1x32x128x16xbf16>
    %200 = vector.shape_cast %199 : vector<1x32x128x16xbf16> to vector<32x128x16xbf16>
    %201 = vector.shape_cast %200 : vector<32x128x16xbf16> to vector<4096x16xbf16>
    %c0_195 = arith.constant 0 : index
    %c0_196 = arith.constant 0 : index
    %202 = vector.load %arg2[%c0_195, %c0_196] : memref<144x16xbf16, #tpu.memory_space<vmem>>, vector<16x16xbf16>
    %cst_197 = arith.constant dense<0.000000e+00> : vector<4096x16xf32>
    %203 = tpu.matmul %201, %202, %cst_197 {dimension_numbers = #tpu.dot_dimension_numbers<[1], [0], [0], [1], [0, 0, 1, 1], [], []>} : vector<4096x16xbf16>, vector<16x16xbf16>, vector<4096x16xf32> -> vector<4096x16xf32>
    %204 = arith.addf %198, %203 : vector<4096x16xf32>
    %c0_198 = arith.constant 0 : index
    %c96_199 = arith.constant 96 : index
    %c1_200 = arith.constant 1 : index
    %c0_201 = arith.constant 0 : index
    %205 = vector.load %arg1[%c0_198, %c96_199, %c1_200, %c0_201] : memref<1x130x130x16xbf16, #tpu.memory_space<vmem>>, vector<1x32x128x16xbf16>
    %206 = vector.shape_cast %205 : vector<1x32x128x16xbf16> to vector<32x128x16xbf16>
    %207 = vector.shape_cast %206 : vector<32x128x16xbf16> to vector<4096x16xbf16>
    %c16_202 = arith.constant 16 : index
    %c0_203 = arith.constant 0 : index
    %208 = vector.load %arg2[%c16_202, %c0_203] : memref<144x16xbf16, #tpu.memory_space<vmem>>, vector<16x16xbf16>
    %cst_204 = arith.constant dense<0.000000e+00> : vector<4096x16xf32>
    %209 = tpu.matmul %207, %208, %cst_204 {dimension_numbers = #tpu.dot_dimension_numbers<[1], [0], [0], [1], [0, 0, 1, 1], [], []>} : vector<4096x16xbf16>, vector<16x16xbf16>, vector<4096x16xf32> -> vector<4096x16xf32>
    %210 = arith.addf %204, %209 : vector<4096x16xf32>
    %c0_205 = arith.constant 0 : index
    %c96_206 = arith.constant 96 : index
    %c2_207 = arith.constant 2 : index
    %c0_208 = arith.constant 0 : index
    %211 = vector.load %arg1[%c0_205, %c96_206, %c2_207, %c0_208] : memref<1x130x130x16xbf16, #tpu.memory_space<vmem>>, vector<1x32x128x16xbf16>
    %212 = vector.shape_cast %211 : vector<1x32x128x16xbf16> to vector<32x128x16xbf16>
    %213 = vector.shape_cast %212 : vector<32x128x16xbf16> to vector<4096x16xbf16>
    %c32_209 = arith.constant 32 : index
    %c0_210 = arith.constant 0 : index
    %214 = vector.load %arg2[%c32_209, %c0_210] : memref<144x16xbf16, #tpu.memory_space<vmem>>, vector<16x16xbf16>
    %cst_211 = arith.constant dense<0.000000e+00> : vector<4096x16xf32>
    %215 = tpu.matmul %213, %214, %cst_211 {dimension_numbers = #tpu.dot_dimension_numbers<[1], [0], [0], [1], [0, 0, 1, 1], [], []>} : vector<4096x16xbf16>, vector<16x16xbf16>, vector<4096x16xf32> -> vector<4096x16xf32>
    %216 = arith.addf %210, %215 : vector<4096x16xf32>
    %c0_212 = arith.constant 0 : index
    %c97 = arith.constant 97 : index
    %c0_213 = arith.constant 0 : index
    %c0_214 = arith.constant 0 : index
    %217 = vector.load %arg1[%c0_212, %c97, %c0_213, %c0_214] : memref<1x130x130x16xbf16, #tpu.memory_space<vmem>>, vector<1x32x128x16xbf16>
    %218 = vector.shape_cast %217 : vector<1x32x128x16xbf16> to vector<32x128x16xbf16>
    %219 = vector.shape_cast %218 : vector<32x128x16xbf16> to vector<4096x16xbf16>
    %c48_215 = arith.constant 48 : index
    %c0_216 = arith.constant 0 : index
    %220 = vector.load %arg2[%c48_215, %c0_216] : memref<144x16xbf16, #tpu.memory_space<vmem>>, vector<16x16xbf16>
    %cst_217 = arith.constant dense<0.000000e+00> : vector<4096x16xf32>
    %221 = tpu.matmul %219, %220, %cst_217 {dimension_numbers = #tpu.dot_dimension_numbers<[1], [0], [0], [1], [0, 0, 1, 1], [], []>} : vector<4096x16xbf16>, vector<16x16xbf16>, vector<4096x16xf32> -> vector<4096x16xf32>
    %222 = arith.addf %216, %221 : vector<4096x16xf32>
    %c0_218 = arith.constant 0 : index
    %c97_219 = arith.constant 97 : index
    %c1_220 = arith.constant 1 : index
    %c0_221 = arith.constant 0 : index
    %223 = vector.load %arg1[%c0_218, %c97_219, %c1_220, %c0_221] : memref<1x130x130x16xbf16, #tpu.memory_space<vmem>>, vector<1x32x128x16xbf16>
    %224 = vector.shape_cast %223 : vector<1x32x128x16xbf16> to vector<32x128x16xbf16>
    %225 = vector.shape_cast %224 : vector<32x128x16xbf16> to vector<4096x16xbf16>
    %c64_222 = arith.constant 64 : index
    %c0_223 = arith.constant 0 : index
    %226 = vector.load %arg2[%c64_222, %c0_223] : memref<144x16xbf16, #tpu.memory_space<vmem>>, vector<16x16xbf16>
    %cst_224 = arith.constant dense<0.000000e+00> : vector<4096x16xf32>
    %227 = tpu.matmul %225, %226, %cst_224 {dimension_numbers = #tpu.dot_dimension_numbers<[1], [0], [0], [1], [0, 0, 1, 1], [], []>} : vector<4096x16xbf16>, vector<16x16xbf16>, vector<4096x16xf32> -> vector<4096x16xf32>
    %228 = arith.addf %222, %227 : vector<4096x16xf32>
    %c0_225 = arith.constant 0 : index
    %c97_226 = arith.constant 97 : index
    %c2_227 = arith.constant 2 : index
    %c0_228 = arith.constant 0 : index
    %229 = vector.load %arg1[%c0_225, %c97_226, %c2_227, %c0_228] : memref<1x130x130x16xbf16, #tpu.memory_space<vmem>>, vector<1x32x128x16xbf16>
    %230 = vector.shape_cast %229 : vector<1x32x128x16xbf16> to vector<32x128x16xbf16>
    %231 = vector.shape_cast %230 : vector<32x128x16xbf16> to vector<4096x16xbf16>
    %c80_229 = arith.constant 80 : index
    %c0_230 = arith.constant 0 : index
    %232 = vector.load %arg2[%c80_229, %c0_230] : memref<144x16xbf16, #tpu.memory_space<vmem>>, vector<16x16xbf16>
    %cst_231 = arith.constant dense<0.000000e+00> : vector<4096x16xf32>
    %233 = tpu.matmul %231, %232, %cst_231 {dimension_numbers = #tpu.dot_dimension_numbers<[1], [0], [0], [1], [0, 0, 1, 1], [], []>} : vector<4096x16xbf16>, vector<16x16xbf16>, vector<4096x16xf32> -> vector<4096x16xf32>
    %234 = arith.addf %228, %233 : vector<4096x16xf32>
    %c0_232 = arith.constant 0 : index
    %c98 = arith.constant 98 : index
    %c0_233 = arith.constant 0 : index
    %c0_234 = arith.constant 0 : index
    %235 = vector.load %arg1[%c0_232, %c98, %c0_233, %c0_234] : memref<1x130x130x16xbf16, #tpu.memory_space<vmem>>, vector<1x32x128x16xbf16>
    %236 = vector.shape_cast %235 : vector<1x32x128x16xbf16> to vector<32x128x16xbf16>
    %237 = vector.shape_cast %236 : vector<32x128x16xbf16> to vector<4096x16xbf16>
    %c96_235 = arith.constant 96 : index
    %c0_236 = arith.constant 0 : index
    %238 = vector.load %arg2[%c96_235, %c0_236] : memref<144x16xbf16, #tpu.memory_space<vmem>>, vector<16x16xbf16>
    %cst_237 = arith.constant dense<0.000000e+00> : vector<4096x16xf32>
    %239 = tpu.matmul %237, %238, %cst_237 {dimension_numbers = #tpu.dot_dimension_numbers<[1], [0], [0], [1], [0, 0, 1, 1], [], []>} : vector<4096x16xbf16>, vector<16x16xbf16>, vector<4096x16xf32> -> vector<4096x16xf32>
    %240 = arith.addf %234, %239 : vector<4096x16xf32>
    %c0_238 = arith.constant 0 : index
    %c98_239 = arith.constant 98 : index
    %c1_240 = arith.constant 1 : index
    %c0_241 = arith.constant 0 : index
    %241 = vector.load %arg1[%c0_238, %c98_239, %c1_240, %c0_241] : memref<1x130x130x16xbf16, #tpu.memory_space<vmem>>, vector<1x32x128x16xbf16>
    %242 = vector.shape_cast %241 : vector<1x32x128x16xbf16> to vector<32x128x16xbf16>
    %243 = vector.shape_cast %242 : vector<32x128x16xbf16> to vector<4096x16xbf16>
    %c112_242 = arith.constant 112 : index
    %c0_243 = arith.constant 0 : index
    %244 = vector.load %arg2[%c112_242, %c0_243] : memref<144x16xbf16, #tpu.memory_space<vmem>>, vector<16x16xbf16>
    %cst_244 = arith.constant dense<0.000000e+00> : vector<4096x16xf32>
    %245 = tpu.matmul %243, %244, %cst_244 {dimension_numbers = #tpu.dot_dimension_numbers<[1], [0], [0], [1], [0, 0, 1, 1], [], []>} : vector<4096x16xbf16>, vector<16x16xbf16>, vector<4096x16xf32> -> vector<4096x16xf32>
    %246 = arith.addf %240, %245 : vector<4096x16xf32>
    %c0_245 = arith.constant 0 : index
    %c98_246 = arith.constant 98 : index
    %c2_247 = arith.constant 2 : index
    %c0_248 = arith.constant 0 : index
    %247 = vector.load %arg1[%c0_245, %c98_246, %c2_247, %c0_248] : memref<1x130x130x16xbf16, #tpu.memory_space<vmem>>, vector<1x32x128x16xbf16>
    %248 = vector.shape_cast %247 : vector<1x32x128x16xbf16> to vector<32x128x16xbf16>
    %249 = vector.shape_cast %248 : vector<32x128x16xbf16> to vector<4096x16xbf16>
    %c128_249 = arith.constant 128 : index
    %c0_250 = arith.constant 0 : index
    %250 = vector.load %arg2[%c128_249, %c0_250] : memref<144x16xbf16, #tpu.memory_space<vmem>>, vector<16x16xbf16>
    %cst_251 = arith.constant dense<0.000000e+00> : vector<4096x16xf32>
    %251 = tpu.matmul %249, %250, %cst_251 {dimension_numbers = #tpu.dot_dimension_numbers<[1], [0], [0], [1], [0, 0, 1, 1], [], []>} : vector<4096x16xbf16>, vector<16x16xbf16>, vector<4096x16xf32> -> vector<4096x16xf32>
    %252 = arith.addf %246, %251 : vector<4096x16xf32>
    %253 = vector.broadcast %0 : vector<1x16xf32> to vector<4096x16xf32>
    %254 = arith.addf %252, %253 : vector<4096x16xf32>
    %c12288 = arith.constant 12288 : index
    %c0_252 = arith.constant 0 : index
    %255 = vector.load %arg8[%c12288, %c0_252] : memref<16384x16xf32, #tpu.memory_space<vmem>>, vector<4096x16xf32>
    tpu.vector_store %arg8[%c12288, %c0_252], %254 {strides = array<i32>} : memref<16384x16xf32, #tpu.memory_space<vmem>>, vector<4096x16xf32>,
    %cst_253 = arith.constant dense<0.000000e+00> : vector<16xf32>
    %256 = vector.multi_reduction <add>, %254, %cst_253 [0] : vector<4096x16xf32> to vector<16xf32>
    %257 = vector.shape_cast %256 : vector<16xf32> to vector<1x16xf32>
    %258 = arith.addf %193, %257 : vector<1x16xf32>
    %259 = arith.mulf %254, %254 : vector<4096x16xf32>
    %cst_254 = arith.constant dense<0.000000e+00> : vector<16xf32>
    %260 = vector.multi_reduction <add>, %259, %cst_254 [0] : vector<4096x16xf32> to vector<16xf32>
    %261 = vector.shape_cast %260 : vector<16xf32> to vector<1x16xf32>
    %262 = arith.addf %197, %261 : vector<1x16xf32>
    %c0_255 = arith.constant 0 : index
    %c0_256 = arith.constant 0 : index
    %263 = vector.load %arg6[%c0_255, %c0_256] : memref<16x16xf32, #tpu.memory_space<vmem>>, vector<16x16xf32>
    %cst_257 = arith.constant dense<0.000000e+00> : vector<1x16xf32>
    %264 = tpu.matmul %258, %263, %cst_257 {dimension_numbers = #tpu.dot_dimension_numbers<[1], [0], [0], [1], [0, 0, 1, 1], [], []>} : vector<1x16xf32>, vector<16x16xf32>, vector<1x16xf32> -> vector<1x16xf32>
    %cst_258 = arith.constant 3.81469727E-6 : f32
    %265 = vector.broadcast %cst_258 : f32 to vector<1x16xf32>
    %266 = arith.mulf %264, %265 : vector<1x16xf32>
    %cst_259 = arith.constant dense<0.000000e+00> : vector<1x16xf32>
    %267 = tpu.matmul %262, %263, %cst_259 {dimension_numbers = #tpu.dot_dimension_numbers<[1], [0], [0], [1], [0, 0, 1, 1], [], []>} : vector<1x16xf32>, vector<16x16xf32>, vector<1x16xf32> -> vector<1x16xf32>
    %cst_260 = arith.constant 3.81469727E-6 : f32
    %268 = vector.broadcast %cst_260 : f32 to vector<1x16xf32>
    %269 = arith.mulf %267, %268 : vector<1x16xf32>
    %270 = arith.mulf %266, %266 : vector<1x16xf32>
    %271 = arith.subf %269, %270 : vector<1x16xf32>
    %cst_261 = arith.constant 9.99999974E-6 : f32
    %272 = vector.broadcast %cst_261 : f32 to vector<1x16xf32>
    %273 = arith.addf %271, %272 : vector<1x16xf32>
    %274 = math.rsqrt %273 : vector<1x16xf32>
    %c0_262 = arith.constant 0 : index
    %c0_263 = arith.constant 0 : index
    %275 = vector.load %arg4[%c0_262, %c0_263] : memref<1x16xf32, #tpu.memory_space<vmem>>, vector<1x16xf32>
    %276 = arith.mulf %275, %274 : vector<1x16xf32>
    %c0_264 = arith.constant 0 : index
    %c0_265 = arith.constant 0 : index
    %277 = vector.load %arg5[%c0_264, %c0_265] : memref<1x16xf32, #tpu.memory_space<vmem>>, vector<1x16xf32>
    %278 = arith.mulf %266, %276 : vector<1x16xf32>
    %279 = arith.subf %277, %278 : vector<1x16xf32>
    %c0_266 = arith.constant 0 : index
    %c0_267 = arith.constant 0 : index
    %280 = vector.load %arg8[%c0_266, %c0_267] : memref<16384x16xf32, #tpu.memory_space<vmem>>, vector<4096x16xf32>
    %281 = vector.broadcast %276 : vector<1x16xf32> to vector<4096x16xf32>
    %282 = arith.mulf %280, %281 : vector<4096x16xf32>
    %283 = vector.broadcast %279 : vector<1x16xf32> to vector<4096x16xf32>
    %284 = arith.addf %282, %283 : vector<4096x16xf32>
    %cst_268 = arith.constant 0.000000e+00 : f32
    %285 = vector.broadcast %cst_268 : f32 to vector<4096x16xf32>
    %286 = arith.maximumf %284, %285 : vector<4096x16xf32>
    %287 = vector.shape_cast %286 : vector<4096x16xf32> to vector<32x128x16xf32>
    %288 = arith.truncf %287 : vector<32x128x16xf32> to vector<32x128x16xbf16>
    %c0_269 = arith.constant 0 : index
    %c0_270 = arith.constant 0 : index
    %c0_271 = arith.constant 0 : index
    %c0_272 = arith.constant 0 : index
    %289 = vector.load %arg7[%c0_269, %c0_270, %c0_271, %c0_272] : memref<1x128x128x16xbf16, #tpu.memory_space<vmem>>, vector<1x32x128x16xbf16>
    %290 = vector.shape_cast %289 : vector<1x32x128x16xbf16> to vector<32x128x16xbf16>
    %291 = vector.shape_cast %288 : vector<32x128x16xbf16> to vector<1x32x128x16xbf16>
    tpu.vector_store %arg7[%c0_269, %c0_270, %c0_271, %c0_272], %291 {strides = array<i32>} : memref<1x128x128x16xbf16, #tpu.memory_space<vmem>>, vector<1x32x128x16xbf16>,
    %c4096_273 = arith.constant 4096 : index
    %c0_274 = arith.constant 0 : index
    %292 = vector.load %arg8[%c4096_273, %c0_274] : memref<16384x16xf32, #tpu.memory_space<vmem>>, vector<4096x16xf32>
    %293 = vector.broadcast %276 : vector<1x16xf32> to vector<4096x16xf32>
    %294 = arith.mulf %292, %293 : vector<4096x16xf32>
    %295 = vector.broadcast %279 : vector<1x16xf32> to vector<4096x16xf32>
    %296 = arith.addf %294, %295 : vector<4096x16xf32>
    %cst_275 = arith.constant 0.000000e+00 : f32
    %297 = vector.broadcast %cst_275 : f32 to vector<4096x16xf32>
    %298 = arith.maximumf %296, %297 : vector<4096x16xf32>
    %299 = vector.shape_cast %298 : vector<4096x16xf32> to vector<32x128x16xf32>
    %300 = arith.truncf %299 : vector<32x128x16xf32> to vector<32x128x16xbf16>
    %c0_276 = arith.constant 0 : index
    %c32_277 = arith.constant 32 : index
    %c0_278 = arith.constant 0 : index
    %c0_279 = arith.constant 0 : index
    %301 = vector.load %arg7[%c0_276, %c32_277, %c0_278, %c0_279] : memref<1x128x128x16xbf16, #tpu.memory_space<vmem>>, vector<1x32x128x16xbf16>
    %302 = vector.shape_cast %301 : vector<1x32x128x16xbf16> to vector<32x128x16xbf16>
    %303 = vector.shape_cast %300 : vector<32x128x16xbf16> to vector<1x32x128x16xbf16>
    tpu.vector_store %arg7[%c0_276, %c32_277, %c0_278, %c0_279], %303 {strides = array<i32>} : memref<1x128x128x16xbf16, #tpu.memory_space<vmem>>, vector<1x32x128x16xbf16>,
    %c8192_280 = arith.constant 8192 : index
    %c0_281 = arith.constant 0 : index
    %304 = vector.load %arg8[%c8192_280, %c0_281] : memref<16384x16xf32, #tpu.memory_space<vmem>>, vector<4096x16xf32>
    %305 = vector.broadcast %276 : vector<1x16xf32> to vector<4096x16xf32>
    %306 = arith.mulf %304, %305 : vector<4096x16xf32>
    %307 = vector.broadcast %279 : vector<1x16xf32> to vector<4096x16xf32>
    %308 = arith.addf %306, %307 : vector<4096x16xf32>
    %cst_282 = arith.constant 0.000000e+00 : f32
    %309 = vector.broadcast %cst_282 : f32 to vector<4096x16xf32>
    %310 = arith.maximumf %308, %309 : vector<4096x16xf32>
    %311 = vector.shape_cast %310 : vector<4096x16xf32> to vector<32x128x16xf32>
    %312 = arith.truncf %311 : vector<32x128x16xf32> to vector<32x128x16xbf16>
    %c0_283 = arith.constant 0 : index
    %c64_284 = arith.constant 64 : index
    %c0_285 = arith.constant 0 : index
    %c0_286 = arith.constant 0 : index
    %313 = vector.load %arg7[%c0_283, %c64_284, %c0_285, %c0_286] : memref<1x128x128x16xbf16, #tpu.memory_space<vmem>>, vector<1x32x128x16xbf16>
    %314 = vector.shape_cast %313 : vector<1x32x128x16xbf16> to vector<32x128x16xbf16>
    %315 = vector.shape_cast %312 : vector<32x128x16xbf16> to vector<1x32x128x16xbf16>
    tpu.vector_store %arg7[%c0_283, %c64_284, %c0_285, %c0_286], %315 {strides = array<i32>} : memref<1x128x128x16xbf16, #tpu.memory_space<vmem>>, vector<1x32x128x16xbf16>,
    %c12288_287 = arith.constant 12288 : index
    %c0_288 = arith.constant 0 : index
    %316 = vector.load %arg8[%c12288_287, %c0_288] : memref<16384x16xf32, #tpu.memory_space<vmem>>, vector<4096x16xf32>
    %317 = vector.broadcast %276 : vector<1x16xf32> to vector<4096x16xf32>
    %318 = arith.mulf %316, %317 : vector<4096x16xf32>
    %319 = vector.broadcast %279 : vector<1x16xf32> to vector<4096x16xf32>
    %320 = arith.addf %318, %319 : vector<4096x16xf32>
    %cst_289 = arith.constant 0.000000e+00 : f32
    %321 = vector.broadcast %cst_289 : f32 to vector<4096x16xf32>
    %322 = arith.maximumf %320, %321 : vector<4096x16xf32>
    %323 = vector.shape_cast %322 : vector<4096x16xf32> to vector<32x128x16xf32>
    %324 = arith.truncf %323 : vector<32x128x16xf32> to vector<32x128x16xbf16>
    %c0_290 = arith.constant 0 : index
    %c96_291 = arith.constant 96 : index
    %c0_292 = arith.constant 0 : index
    %c0_293 = arith.constant 0 : index
    %325 = vector.load %arg7[%c0_290, %c96_291, %c0_292, %c0_293] : memref<1x128x128x16xbf16, #tpu.memory_space<vmem>>, vector<1x32x128x16xbf16>
    %326 = vector.shape_cast %325 : vector<1x32x128x16xbf16> to vector<32x128x16xbf16>
    %327 = vector.shape_cast %324 : vector<32x128x16xbf16> to vector<1x32x128x16xbf16>
    tpu.vector_store %arg7[%c0_290, %c96_291, %c0_292, %c0_293], %327 {strides = array<i32>} : memref<1x128x128x16xbf16, #tpu.memory_space<vmem>>, vector<1x32x128x16xbf16>,
    return
  }
  func.func @transform_0(%arg0: i32) -> (i32, i32, i32, i32) {
    %c0_i32 = arith.constant 0 : i32
    %c0_i32_0 = arith.constant 0 : i32
    %c0_i32_1 = arith.constant 0 : i32
    %c0_i32_2 = arith.constant 0 : i32
    return %arg0, %c0_i32, %c0_i32_0, %c0_i32_1 : i32, i32, i32, i32
  }
  func.func @transform_1(%arg0: i32) -> (i32, i32) {
    %c0_i32 = arith.constant 0 : i32
    %c0_i32_0 = arith.constant 0 : i32
    %c0_i32_1 = arith.constant 0 : i32
    return %c0_i32, %c0_i32_0 : i32, i32
  }
  func.func @transform_2(%arg0: i32) -> (i32, i32) {
    %c0_i32 = arith.constant 0 : i32
    %c0_i32_0 = arith.constant 0 : i32
    %c0_i32_1 = arith.constant 0 : i32
    return %c0_i32, %c0_i32_0 : i32, i32
  }
  func.func @transform_3(%arg0: i32) -> (i32, i32) {
    %c0_i32 = arith.constant 0 : i32
    %c0_i32_0 = arith.constant 0 : i32
    %c0_i32_1 = arith.constant 0 : i32
    return %c0_i32, %c0_i32_0 : i32, i32
  }
  func.func @transform_4(%arg0: i32) -> (i32, i32) {
    %c0_i32 = arith.constant 0 : i32
    %c0_i32_0 = arith.constant 0 : i32
    %c0_i32_1 = arith.constant 0 : i32
    return %c0_i32, %c0_i32_0 : i32, i32
  }
  func.func @transform_5(%arg0: i32) -> (i32, i32) {
    %c0_i32 = arith.constant 0 : i32
    %c0_i32_0 = arith.constant 0 : i32
    %c0_i32_1 = arith.constant 0 : i32
    return %c0_i32, %c0_i32_0 : i32, i32
  }
  func.func @transform_6(%arg0: i32) -> (i32, i32, i32, i32) {
    %c0_i32 = arith.constant 0 : i32
    %c0_i32_0 = arith.constant 0 : i32
    %c0_i32_1 = arith.constant 0 : i32
    %c0_i32_2 = arith.constant 0 : i32
    return %arg0, %c0_i32, %c0_i32_0, %c0_i32_1 : i32, i32, i32, i32
  }
}

module attributes {stable_mosaic.version = 11 : i64} {
  func.func @_avgpool_kernel(%arg0: i32, %arg1: memref<4096x16xbf16, #tpu.memory_space<vmem>>, %arg2: memref<4096x16xbf16, #tpu.memory_space<vmem>>, %arg3: memref<4096x16xbf16, #tpu.memory_space<vmem>>, %arg4: memref<4096x16xbf16, #tpu.memory_space<vmem>>, %arg5: memref<4096x16xbf16, #tpu.memory_space<vmem>>) attributes {dimension_semantics = [#tpu.dimension_semantics<parallel>], iteration_bounds = array<i64: 2>, scalar_prefetch = 0 : i64, scratch_operands = 0 : i64, tpu.core_type = #tpu.core_type<tc>, window_params = [{transform_indices = @transform_0, window_bounds = array<i64: 4096, 16>}, {transform_indices = @transform_1, window_bounds = array<i64: 4096, 16>}, {transform_indices = @transform_2, window_bounds = array<i64: 4096, 16>}, {transform_indices = @transform_3, window_bounds = array<i64: 4096, 16>}, {transform_indices = @transform_4, window_bounds = array<i64: 4096, 16>}]} {
    %c0 = arith.constant 0 : index
    %c0_0 = arith.constant 0 : index
    %0 = vector.load %arg1[%c0, %c0_0] : memref<4096x16xbf16, #tpu.memory_space<vmem>>, vector<4096x16xbf16>
    %1 = arith.extf %0 : vector<4096x16xbf16> to vector<4096x16xf32>
    %c0_1 = arith.constant 0 : index
    %c0_2 = arith.constant 0 : index
    %2 = vector.load %arg2[%c0_1, %c0_2] : memref<4096x16xbf16, #tpu.memory_space<vmem>>, vector<4096x16xbf16>
    %3 = arith.extf %2 : vector<4096x16xbf16> to vector<4096x16xf32>
    %4 = arith.addf %1, %3 : vector<4096x16xf32>
    %c0_3 = arith.constant 0 : index
    %c0_4 = arith.constant 0 : index
    %5 = vector.load %arg3[%c0_3, %c0_4] : memref<4096x16xbf16, #tpu.memory_space<vmem>>, vector<4096x16xbf16>
    %6 = arith.extf %5 : vector<4096x16xbf16> to vector<4096x16xf32>
    %7 = arith.addf %4, %6 : vector<4096x16xf32>
    %c0_5 = arith.constant 0 : index
    %c0_6 = arith.constant 0 : index
    %8 = vector.load %arg4[%c0_5, %c0_6] : memref<4096x16xbf16, #tpu.memory_space<vmem>>, vector<4096x16xbf16>
    %9 = arith.extf %8 : vector<4096x16xbf16> to vector<4096x16xf32>
    %10 = arith.addf %7, %9 : vector<4096x16xf32>
    %cst = arith.constant 2.500000e-01 : f32
    %11 = vector.broadcast %cst : f32 to vector<4096x16xf32>
    %12 = arith.mulf %11, %10 : vector<4096x16xf32>
    %13 = arith.truncf %12 : vector<4096x16xf32> to vector<4096x16xbf16>
    %c0_7 = arith.constant 0 : index
    %c0_8 = arith.constant 0 : index
    %14 = vector.load %arg5[%c0_7, %c0_8] : memref<4096x16xbf16, #tpu.memory_space<vmem>>, vector<4096x16xbf16>
    tpu.vector_store %arg5[%c0_7, %c0_8], %13 {strides = array<i32>} : memref<4096x16xbf16, #tpu.memory_space<vmem>>, vector<4096x16xbf16>,
    return
  }
  func.func @transform_0(%arg0: i32) -> (i32, i32) {
    %c0_i32 = arith.constant 0 : i32
    %c0_i32_0 = arith.constant 0 : i32
    return %arg0, %c0_i32 : i32, i32
  }
  func.func @transform_1(%arg0: i32) -> (i32, i32) {
    %c0_i32 = arith.constant 0 : i32
    %c0_i32_0 = arith.constant 0 : i32
    return %arg0, %c0_i32 : i32, i32
  }
  func.func @transform_2(%arg0: i32) -> (i32, i32) {
    %c0_i32 = arith.constant 0 : i32
    %c0_i32_0 = arith.constant 0 : i32
    return %arg0, %c0_i32 : i32, i32
  }
  func.func @transform_3(%arg0: i32) -> (i32, i32) {
    %c0_i32 = arith.constant 0 : i32
    %c0_i32_0 = arith.constant 0 : i32
    return %arg0, %c0_i32 : i32, i32
  }
  func.func @transform_4(%arg0: i32) -> (i32, i32) {
    %c0_i32 = arith.constant 0 : i32
    %c0_i32_0 = arith.constant 0 : i32
    return %arg0, %c0_i32 : i32, i32
  }
}

module attributes {stable_mosaic.version = 11 : i64} {
  func.func @_conv_gn_relu_kernel(%arg0: i32, %arg1: memref<1x66x66x16xbf16, #tpu.memory_space<vmem>>, %arg2: memref<144x32xbf16, #tpu.memory_space<vmem>>, %arg3: memref<1x32xf32, #tpu.memory_space<vmem>>, %arg4: memref<1x32xf32, #tpu.memory_space<vmem>>, %arg5: memref<1x32xf32, #tpu.memory_space<vmem>>, %arg6: memref<32x32xf32, #tpu.memory_space<vmem>>, %arg7: memref<1x64x64x32xbf16, #tpu.memory_space<vmem>>, %arg8: memref<4096x32xf32, #tpu.memory_space<vmem>>) attributes {dimension_semantics = [#tpu.dimension_semantics<parallel>], iteration_bounds = array<i64: 2>, scalar_prefetch = 0 : i64, scratch_operands = 1 : i64, tpu.core_type = #tpu.core_type<tc>, window_params = [{transform_indices = @transform_0, window_bounds = array<i64: 1, 66, 66, 16>}, {pipeline_mode = #tpu.pipeline_mode<synchronous>, transform_indices = @transform_1, window_bounds = array<i64: 144, 32>}, {pipeline_mode = #tpu.pipeline_mode<synchronous>, transform_indices = @transform_2, window_bounds = array<i64: 1, 32>}, {pipeline_mode = #tpu.pipeline_mode<synchronous>, transform_indices = @transform_3, window_bounds = array<i64: 1, 32>}, {pipeline_mode = #tpu.pipeline_mode<synchronous>, transform_indices = @transform_4, window_bounds = array<i64: 1, 32>}, {pipeline_mode = #tpu.pipeline_mode<synchronous>, transform_indices = @transform_5, window_bounds = array<i64: 32, 32>}, {transform_indices = @transform_6, window_bounds = array<i64: 1, 64, 64, 32>}]} {
    %c0 = arith.constant 0 : index
    %c0_0 = arith.constant 0 : index
    %0 = vector.load %arg3[%c0, %c0_0] : memref<1x32xf32, #tpu.memory_space<vmem>>, vector<1x32xf32>
    %cst = arith.constant 0.000000e+00 : f32
    %1 = vector.broadcast %cst : f32 to vector<1x32xf32>
    %cst_1 = arith.constant 0.000000e+00 : f32
    %2 = vector.broadcast %cst_1 : f32 to vector<1x32xf32>
    %cst_2 = arith.constant 0.000000e+00 : f32
    %3 = vector.broadcast %cst_2 : f32 to vector<4096x32xf32>
    %c0_3 = arith.constant 0 : index
    %c0_4 = arith.constant 0 : index
    %c0_5 = arith.constant 0 : index
    %c0_6 = arith.constant 0 : index
    %4 = vector.load %arg1[%c0_3, %c0_4, %c0_5, %c0_6] : memref<1x66x66x16xbf16, #tpu.memory_space<vmem>>, vector<1x64x64x16xbf16>
    %5 = vector.shape_cast %4 : vector<1x64x64x16xbf16> to vector<64x64x16xbf16>
    %6 = vector.shape_cast %5 : vector<64x64x16xbf16> to vector<4096x16xbf16>
    %c0_7 = arith.constant 0 : index
    %c0_8 = arith.constant 0 : index
    %7 = vector.load %arg2[%c0_7, %c0_8] : memref<144x32xbf16, #tpu.memory_space<vmem>>, vector<16x32xbf16>
    %cst_9 = arith.constant dense<0.000000e+00> : vector<4096x32xf32>
    %8 = tpu.matmul %6, %7, %cst_9 {dimension_numbers = #tpu.dot_dimension_numbers<[1], [0], [0], [1], [0, 0, 1, 1], [], []>} : vector<4096x16xbf16>, vector<16x32xbf16>, vector<4096x32xf32> -> vector<4096x32xf32>
    %9 = arith.addf %3, %8 : vector<4096x32xf32>
    %c0_10 = arith.constant 0 : index
    %c0_11 = arith.constant 0 : index
    %c1 = arith.constant 1 : index
    %c0_12 = arith.constant 0 : index
    %10 = vector.load %arg1[%c0_10, %c0_11, %c1, %c0_12] : memref<1x66x66x16xbf16, #tpu.memory_space<vmem>>, vector<1x64x64x16xbf16>
    %11 = vector.shape_cast %10 : vector<1x64x64x16xbf16> to vector<64x64x16xbf16>
    %12 = vector.shape_cast %11 : vector<64x64x16xbf16> to vector<4096x16xbf16>
    %c16 = arith.constant 16 : index
    %c0_13 = arith.constant 0 : index
    %13 = vector.load %arg2[%c16, %c0_13] : memref<144x32xbf16, #tpu.memory_space<vmem>>, vector<16x32xbf16>
    %cst_14 = arith.constant dense<0.000000e+00> : vector<4096x32xf32>
    %14 = tpu.matmul %12, %13, %cst_14 {dimension_numbers = #tpu.dot_dimension_numbers<[1], [0], [0], [1], [0, 0, 1, 1], [], []>} : vector<4096x16xbf16>, vector<16x32xbf16>, vector<4096x32xf32> -> vector<4096x32xf32>
    %15 = arith.addf %9, %14 : vector<4096x32xf32>
    %c0_15 = arith.constant 0 : index
    %c0_16 = arith.constant 0 : index
    %c2 = arith.constant 2 : index
    %c0_17 = arith.constant 0 : index
    %16 = vector.load %arg1[%c0_15, %c0_16, %c2, %c0_17] : memref<1x66x66x16xbf16, #tpu.memory_space<vmem>>, vector<1x64x64x16xbf16>
    %17 = vector.shape_cast %16 : vector<1x64x64x16xbf16> to vector<64x64x16xbf16>
    %18 = vector.shape_cast %17 : vector<64x64x16xbf16> to vector<4096x16xbf16>
    %c32 = arith.constant 32 : index
    %c0_18 = arith.constant 0 : index
    %19 = vector.load %arg2[%c32, %c0_18] : memref<144x32xbf16, #tpu.memory_space<vmem>>, vector<16x32xbf16>
    %cst_19 = arith.constant dense<0.000000e+00> : vector<4096x32xf32>
    %20 = tpu.matmul %18, %19, %cst_19 {dimension_numbers = #tpu.dot_dimension_numbers<[1], [0], [0], [1], [0, 0, 1, 1], [], []>} : vector<4096x16xbf16>, vector<16x32xbf16>, vector<4096x32xf32> -> vector<4096x32xf32>
    %21 = arith.addf %15, %20 : vector<4096x32xf32>
    %c0_20 = arith.constant 0 : index
    %c1_21 = arith.constant 1 : index
    %c0_22 = arith.constant 0 : index
    %c0_23 = arith.constant 0 : index
    %22 = vector.load %arg1[%c0_20, %c1_21, %c0_22, %c0_23] : memref<1x66x66x16xbf16, #tpu.memory_space<vmem>>, vector<1x64x64x16xbf16>
    %23 = vector.shape_cast %22 : vector<1x64x64x16xbf16> to vector<64x64x16xbf16>
    %24 = vector.shape_cast %23 : vector<64x64x16xbf16> to vector<4096x16xbf16>
    %c48 = arith.constant 48 : index
    %c0_24 = arith.constant 0 : index
    %25 = vector.load %arg2[%c48, %c0_24] : memref<144x32xbf16, #tpu.memory_space<vmem>>, vector<16x32xbf16>
    %cst_25 = arith.constant dense<0.000000e+00> : vector<4096x32xf32>
    %26 = tpu.matmul %24, %25, %cst_25 {dimension_numbers = #tpu.dot_dimension_numbers<[1], [0], [0], [1], [0, 0, 1, 1], [], []>} : vector<4096x16xbf16>, vector<16x32xbf16>, vector<4096x32xf32> -> vector<4096x32xf32>
    %27 = arith.addf %21, %26 : vector<4096x32xf32>
    %c0_26 = arith.constant 0 : index
    %c1_27 = arith.constant 1 : index
    %c1_28 = arith.constant 1 : index
    %c0_29 = arith.constant 0 : index
    %28 = vector.load %arg1[%c0_26, %c1_27, %c1_28, %c0_29] : memref<1x66x66x16xbf16, #tpu.memory_space<vmem>>, vector<1x64x64x16xbf16>
    %29 = vector.shape_cast %28 : vector<1x64x64x16xbf16> to vector<64x64x16xbf16>
    %30 = vector.shape_cast %29 : vector<64x64x16xbf16> to vector<4096x16xbf16>
    %c64 = arith.constant 64 : index
    %c0_30 = arith.constant 0 : index
    %31 = vector.load %arg2[%c64, %c0_30] : memref<144x32xbf16, #tpu.memory_space<vmem>>, vector<16x32xbf16>
    %cst_31 = arith.constant dense<0.000000e+00> : vector<4096x32xf32>
    %32 = tpu.matmul %30, %31, %cst_31 {dimension_numbers = #tpu.dot_dimension_numbers<[1], [0], [0], [1], [0, 0, 1, 1], [], []>} : vector<4096x16xbf16>, vector<16x32xbf16>, vector<4096x32xf32> -> vector<4096x32xf32>
    %33 = arith.addf %27, %32 : vector<4096x32xf32>
    %c0_32 = arith.constant 0 : index
    %c1_33 = arith.constant 1 : index
    %c2_34 = arith.constant 2 : index
    %c0_35 = arith.constant 0 : index
    %34 = vector.load %arg1[%c0_32, %c1_33, %c2_34, %c0_35] : memref<1x66x66x16xbf16, #tpu.memory_space<vmem>>, vector<1x64x64x16xbf16>
    %35 = vector.shape_cast %34 : vector<1x64x64x16xbf16> to vector<64x64x16xbf16>
    %36 = vector.shape_cast %35 : vector<64x64x16xbf16> to vector<4096x16xbf16>
    %c80 = arith.constant 80 : index
    %c0_36 = arith.constant 0 : index
    %37 = vector.load %arg2[%c80, %c0_36] : memref<144x32xbf16, #tpu.memory_space<vmem>>, vector<16x32xbf16>
    %cst_37 = arith.constant dense<0.000000e+00> : vector<4096x32xf32>
    %38 = tpu.matmul %36, %37, %cst_37 {dimension_numbers = #tpu.dot_dimension_numbers<[1], [0], [0], [1], [0, 0, 1, 1], [], []>} : vector<4096x16xbf16>, vector<16x32xbf16>, vector<4096x32xf32> -> vector<4096x32xf32>
    %39 = arith.addf %33, %38 : vector<4096x32xf32>
    %c0_38 = arith.constant 0 : index
    %c2_39 = arith.constant 2 : index
    %c0_40 = arith.constant 0 : index
    %c0_41 = arith.constant 0 : index
    %40 = vector.load %arg1[%c0_38, %c2_39, %c0_40, %c0_41] : memref<1x66x66x16xbf16, #tpu.memory_space<vmem>>, vector<1x64x64x16xbf16>
    %41 = vector.shape_cast %40 : vector<1x64x64x16xbf16> to vector<64x64x16xbf16>
    %42 = vector.shape_cast %41 : vector<64x64x16xbf16> to vector<4096x16xbf16>
    %c96 = arith.constant 96 : index
    %c0_42 = arith.constant 0 : index
    %43 = vector.load %arg2[%c96, %c0_42] : memref<144x32xbf16, #tpu.memory_space<vmem>>, vector<16x32xbf16>
    %cst_43 = arith.constant dense<0.000000e+00> : vector<4096x32xf32>
    %44 = tpu.matmul %42, %43, %cst_43 {dimension_numbers = #tpu.dot_dimension_numbers<[1], [0], [0], [1], [0, 0, 1, 1], [], []>} : vector<4096x16xbf16>, vector<16x32xbf16>, vector<4096x32xf32> -> vector<4096x32xf32>
    %45 = arith.addf %39, %44 : vector<4096x32xf32>
    %c0_44 = arith.constant 0 : index
    %c2_45 = arith.constant 2 : index
    %c1_46 = arith.constant 1 : index
    %c0_47 = arith.constant 0 : index
    %46 = vector.load %arg1[%c0_44, %c2_45, %c1_46, %c0_47] : memref<1x66x66x16xbf16, #tpu.memory_space<vmem>>, vector<1x64x64x16xbf16>
    %47 = vector.shape_cast %46 : vector<1x64x64x16xbf16> to vector<64x64x16xbf16>
    %48 = vector.shape_cast %47 : vector<64x64x16xbf16> to vector<4096x16xbf16>
    %c112 = arith.constant 112 : index
    %c0_48 = arith.constant 0 : index
    %49 = vector.load %arg2[%c112, %c0_48] : memref<144x32xbf16, #tpu.memory_space<vmem>>, vector<16x32xbf16>
    %cst_49 = arith.constant dense<0.000000e+00> : vector<4096x32xf32>
    %50 = tpu.matmul %48, %49, %cst_49 {dimension_numbers = #tpu.dot_dimension_numbers<[1], [0], [0], [1], [0, 0, 1, 1], [], []>} : vector<4096x16xbf16>, vector<16x32xbf16>, vector<4096x32xf32> -> vector<4096x32xf32>
    %51 = arith.addf %45, %50 : vector<4096x32xf32>
    %c0_50 = arith.constant 0 : index
    %c2_51 = arith.constant 2 : index
    %c2_52 = arith.constant 2 : index
    %c0_53 = arith.constant 0 : index
    %52 = vector.load %arg1[%c0_50, %c2_51, %c2_52, %c0_53] : memref<1x66x66x16xbf16, #tpu.memory_space<vmem>>, vector<1x64x64x16xbf16>
    %53 = vector.shape_cast %52 : vector<1x64x64x16xbf16> to vector<64x64x16xbf16>
    %54 = vector.shape_cast %53 : vector<64x64x16xbf16> to vector<4096x16xbf16>
    %c128 = arith.constant 128 : index
    %c0_54 = arith.constant 0 : index
    %55 = vector.load %arg2[%c128, %c0_54] : memref<144x32xbf16, #tpu.memory_space<vmem>>, vector<16x32xbf16>
    %cst_55 = arith.constant dense<0.000000e+00> : vector<4096x32xf32>
    %56 = tpu.matmul %54, %55, %cst_55 {dimension_numbers = #tpu.dot_dimension_numbers<[1], [0], [0], [1], [0, 0, 1, 1], [], []>} : vector<4096x16xbf16>, vector<16x32xbf16>, vector<4096x32xf32> -> vector<4096x32xf32>
    %57 = arith.addf %51, %56 : vector<4096x32xf32>
    %58 = vector.broadcast %0 : vector<1x32xf32> to vector<4096x32xf32>
    %59 = arith.addf %57, %58 : vector<4096x32xf32>
    %c0_56 = arith.constant 0 : index
    %c0_57 = arith.constant 0 : index
    %60 = vector.load %arg8[%c0_56, %c0_57] : memref<4096x32xf32, #tpu.memory_space<vmem>>, vector<4096x32xf32>
    tpu.vector_store %arg8[%c0_56, %c0_57], %59 {strides = array<i32>} : memref<4096x32xf32, #tpu.memory_space<vmem>>, vector<4096x32xf32>,
    %cst_58 = arith.constant dense<0.000000e+00> : vector<32xf32>
    %61 = vector.multi_reduction <add>, %59, %cst_58 [0] : vector<4096x32xf32> to vector<32xf32>
    %62 = vector.shape_cast %61 : vector<32xf32> to vector<1x32xf32>
    %63 = arith.addf %1, %62 : vector<1x32xf32>
    %64 = arith.mulf %59, %59 : vector<4096x32xf32>
    %cst_59 = arith.constant dense<0.000000e+00> : vector<32xf32>
    %65 = vector.multi_reduction <add>, %64, %cst_59 [0] : vector<4096x32xf32> to vector<32xf32>
    %66 = vector.shape_cast %65 : vector<32xf32> to vector<1x32xf32>
    %67 = arith.addf %2, %66 : vector<1x32xf32>
    %c0_60 = arith.constant 0 : index
    %c0_61 = arith.constant 0 : index
    %68 = vector.load %arg6[%c0_60, %c0_61] : memref<32x32xf32, #tpu.memory_space<vmem>>, vector<32x32xf32>
    %cst_62 = arith.constant dense<0.000000e+00> : vector<1x32xf32>
    %69 = tpu.matmul %63, %68, %cst_62 {dimension_numbers = #tpu.dot_dimension_numbers<[1], [0], [0], [1], [0, 0, 1, 1], [], []>} : vector<1x32xf32>, vector<32x32xf32>, vector<1x32xf32> -> vector<1x32xf32>
    %cst_63 = arith.constant 1.52587891E-5 : f32
    %70 = vector.broadcast %cst_63 : f32 to vector<1x32xf32>
    %71 = arith.mulf %69, %70 : vector<1x32xf32>
    %cst_64 = arith.constant dense<0.000000e+00> : vector<1x32xf32>
    %72 = tpu.matmul %67, %68, %cst_64 {dimension_numbers = #tpu.dot_dimension_numbers<[1], [0], [0], [1], [0, 0, 1, 1], [], []>} : vector<1x32xf32>, vector<32x32xf32>, vector<1x32xf32> -> vector<1x32xf32>
    %cst_65 = arith.constant 1.52587891E-5 : f32
    %73 = vector.broadcast %cst_65 : f32 to vector<1x32xf32>
    %74 = arith.mulf %72, %73 : vector<1x32xf32>
    %75 = arith.mulf %71, %71 : vector<1x32xf32>
    %76 = arith.subf %74, %75 : vector<1x32xf32>
    %cst_66 = arith.constant 9.99999974E-6 : f32
    %77 = vector.broadcast %cst_66 : f32 to vector<1x32xf32>
    %78 = arith.addf %76, %77 : vector<1x32xf32>
    %79 = math.rsqrt %78 : vector<1x32xf32>
    %c0_67 = arith.constant 0 : index
    %c0_68 = arith.constant 0 : index
    %80 = vector.load %arg4[%c0_67, %c0_68] : memref<1x32xf32, #tpu.memory_space<vmem>>, vector<1x32xf32>
    %81 = arith.mulf %80, %79 : vector<1x32xf32>
    %c0_69 = arith.constant 0 : index
    %c0_70 = arith.constant 0 : index
    %82 = vector.load %arg5[%c0_69, %c0_70] : memref<1x32xf32, #tpu.memory_space<vmem>>, vector<1x32xf32>
    %83 = arith.mulf %71, %81 : vector<1x32xf32>
    %84 = arith.subf %82, %83 : vector<1x32xf32>
    %c0_71 = arith.constant 0 : index
    %c0_72 = arith.constant 0 : index
    %85 = vector.load %arg8[%c0_71, %c0_72] : memref<4096x32xf32, #tpu.memory_space<vmem>>, vector<4096x32xf32>
    %86 = vector.broadcast %81 : vector<1x32xf32> to vector<4096x32xf32>
    %87 = arith.mulf %85, %86 : vector<4096x32xf32>
    %88 = vector.broadcast %84 : vector<1x32xf32> to vector<4096x32xf32>
    %89 = arith.addf %87, %88 : vector<4096x32xf32>
    %cst_73 = arith.constant 0.000000e+00 : f32
    %90 = vector.broadcast %cst_73 : f32 to vector<4096x32xf32>
    %91 = arith.maximumf %89, %90 : vector<4096x32xf32>
    %92 = vector.shape_cast %91 : vector<4096x32xf32> to vector<64x64x32xf32>
    %93 = arith.truncf %92 : vector<64x64x32xf32> to vector<64x64x32xbf16>
    %c0_74 = arith.constant 0 : index
    %c0_75 = arith.constant 0 : index
    %c0_76 = arith.constant 0 : index
    %c0_77 = arith.constant 0 : index
    %94 = vector.load %arg7[%c0_74, %c0_75, %c0_76, %c0_77] : memref<1x64x64x32xbf16, #tpu.memory_space<vmem>>, vector<1x64x64x32xbf16>
    %95 = vector.shape_cast %94 : vector<1x64x64x32xbf16> to vector<64x64x32xbf16>
    %96 = vector.shape_cast %93 : vector<64x64x32xbf16> to vector<1x64x64x32xbf16>
    tpu.vector_store %arg7[%c0_74, %c0_75, %c0_76, %c0_77], %96 {strides = array<i32>} : memref<1x64x64x32xbf16, #tpu.memory_space<vmem>>, vector<1x64x64x32xbf16>,
    return
  }
  func.func @transform_0(%arg0: i32) -> (i32, i32, i32, i32) {
    %c0_i32 = arith.constant 0 : i32
    %c0_i32_0 = arith.constant 0 : i32
    %c0_i32_1 = arith.constant 0 : i32
    %c0_i32_2 = arith.constant 0 : i32
    return %arg0, %c0_i32, %c0_i32_0, %c0_i32_1 : i32, i32, i32, i32
  }
  func.func @transform_1(%arg0: i32) -> (i32, i32) {
    %c0_i32 = arith.constant 0 : i32
    %c0_i32_0 = arith.constant 0 : i32
    %c0_i32_1 = arith.constant 0 : i32
    return %c0_i32, %c0_i32_0 : i32, i32
  }
  func.func @transform_2(%arg0: i32) -> (i32, i32) {
    %c0_i32 = arith.constant 0 : i32
    %c0_i32_0 = arith.constant 0 : i32
    %c0_i32_1 = arith.constant 0 : i32
    return %c0_i32, %c0_i32_0 : i32, i32
  }
  func.func @transform_3(%arg0: i32) -> (i32, i32) {
    %c0_i32 = arith.constant 0 : i32
    %c0_i32_0 = arith.constant 0 : i32
    %c0_i32_1 = arith.constant 0 : i32
    return %c0_i32, %c0_i32_0 : i32, i32
  }
  func.func @transform_4(%arg0: i32) -> (i32, i32) {
    %c0_i32 = arith.constant 0 : i32
    %c0_i32_0 = arith.constant 0 : i32
    %c0_i32_1 = arith.constant 0 : i32
    return %c0_i32, %c0_i32_0 : i32, i32
  }
  func.func @transform_5(%arg0: i32) -> (i32, i32) {
    %c0_i32 = arith.constant 0 : i32
    %c0_i32_0 = arith.constant 0 : i32
    %c0_i32_1 = arith.constant 0 : i32
    return %c0_i32, %c0_i32_0 : i32, i32
  }
  func.func @transform_6(%arg0: i32) -> (i32, i32, i32, i32) {
    %c0_i32 = arith.constant 0 : i32
    %c0_i32_0 = arith.constant 0 : i32
    %c0_i32_1 = arith.constant 0 : i32
    %c0_i32_2 = arith.constant 0 : i32
    return %arg0, %c0_i32, %c0_i32_0, %c0_i32_1 : i32, i32, i32, i32
  }
}

module attributes {stable_mosaic.version = 11 : i64} {
  func.func @_conv_gn_relu_kernel(%arg0: i32, %arg1: memref<1x66x66x32xbf16, #tpu.memory_space<vmem>>, %arg2: memref<288x32xbf16, #tpu.memory_space<vmem>>, %arg3: memref<1x32xf32, #tpu.memory_space<vmem>>, %arg4: memref<1x32xf32, #tpu.memory_space<vmem>>, %arg5: memref<1x32xf32, #tpu.memory_space<vmem>>, %arg6: memref<32x32xf32, #tpu.memory_space<vmem>>, %arg7: memref<1x64x64x32xbf16, #tpu.memory_space<vmem>>, %arg8: memref<4096x32xf32, #tpu.memory_space<vmem>>) attributes {dimension_semantics = [#tpu.dimension_semantics<parallel>], iteration_bounds = array<i64: 2>, scalar_prefetch = 0 : i64, scratch_operands = 1 : i64, tpu.core_type = #tpu.core_type<tc>, window_params = [{transform_indices = @transform_0, window_bounds = array<i64: 1, 66, 66, 32>}, {pipeline_mode = #tpu.pipeline_mode<synchronous>, transform_indices = @transform_1, window_bounds = array<i64: 288, 32>}, {pipeline_mode = #tpu.pipeline_mode<synchronous>, transform_indices = @transform_2, window_bounds = array<i64: 1, 32>}, {pipeline_mode = #tpu.pipeline_mode<synchronous>, transform_indices = @transform_3, window_bounds = array<i64: 1, 32>}, {pipeline_mode = #tpu.pipeline_mode<synchronous>, transform_indices = @transform_4, window_bounds = array<i64: 1, 32>}, {pipeline_mode = #tpu.pipeline_mode<synchronous>, transform_indices = @transform_5, window_bounds = array<i64: 32, 32>}, {transform_indices = @transform_6, window_bounds = array<i64: 1, 64, 64, 32>}]} {
    %c0 = arith.constant 0 : index
    %c0_0 = arith.constant 0 : index
    %0 = vector.load %arg3[%c0, %c0_0] : memref<1x32xf32, #tpu.memory_space<vmem>>, vector<1x32xf32>
    %cst = arith.constant 0.000000e+00 : f32
    %1 = vector.broadcast %cst : f32 to vector<1x32xf32>
    %cst_1 = arith.constant 0.000000e+00 : f32
    %2 = vector.broadcast %cst_1 : f32 to vector<1x32xf32>
    %cst_2 = arith.constant 0.000000e+00 : f32
    %3 = vector.broadcast %cst_2 : f32 to vector<4096x32xf32>
    %c0_3 = arith.constant 0 : index
    %c0_4 = arith.constant 0 : index
    %c0_5 = arith.constant 0 : index
    %c0_6 = arith.constant 0 : index
    %4 = vector.load %arg1[%c0_3, %c0_4, %c0_5, %c0_6] : memref<1x66x66x32xbf16, #tpu.memory_space<vmem>>, vector<1x64x64x32xbf16>
    %5 = vector.shape_cast %4 : vector<1x64x64x32xbf16> to vector<64x64x32xbf16>
    %6 = vector.shape_cast %5 : vector<64x64x32xbf16> to vector<4096x32xbf16>
    %c0_7 = arith.constant 0 : index
    %c0_8 = arith.constant 0 : index
    %7 = vector.load %arg2[%c0_7, %c0_8] : memref<288x32xbf16, #tpu.memory_space<vmem>>, vector<32x32xbf16>
    %cst_9 = arith.constant dense<0.000000e+00> : vector<4096x32xf32>
    %8 = tpu.matmul %6, %7, %cst_9 {dimension_numbers = #tpu.dot_dimension_numbers<[1], [0], [0], [1], [0, 0, 1, 1], [], []>} : vector<4096x32xbf16>, vector<32x32xbf16>, vector<4096x32xf32> -> vector<4096x32xf32>
    %9 = arith.addf %3, %8 : vector<4096x32xf32>
    %c0_10 = arith.constant 0 : index
    %c0_11 = arith.constant 0 : index
    %c1 = arith.constant 1 : index
    %c0_12 = arith.constant 0 : index
    %10 = vector.load %arg1[%c0_10, %c0_11, %c1, %c0_12] : memref<1x66x66x32xbf16, #tpu.memory_space<vmem>>, vector<1x64x64x32xbf16>
    %11 = vector.shape_cast %10 : vector<1x64x64x32xbf16> to vector<64x64x32xbf16>
    %12 = vector.shape_cast %11 : vector<64x64x32xbf16> to vector<4096x32xbf16>
    %c32 = arith.constant 32 : index
    %c0_13 = arith.constant 0 : index
    %13 = vector.load %arg2[%c32, %c0_13] : memref<288x32xbf16, #tpu.memory_space<vmem>>, vector<32x32xbf16>
    %cst_14 = arith.constant dense<0.000000e+00> : vector<4096x32xf32>
    %14 = tpu.matmul %12, %13, %cst_14 {dimension_numbers = #tpu.dot_dimension_numbers<[1], [0], [0], [1], [0, 0, 1, 1], [], []>} : vector<4096x32xbf16>, vector<32x32xbf16>, vector<4096x32xf32> -> vector<4096x32xf32>
    %15 = arith.addf %9, %14 : vector<4096x32xf32>
    %c0_15 = arith.constant 0 : index
    %c0_16 = arith.constant 0 : index
    %c2 = arith.constant 2 : index
    %c0_17 = arith.constant 0 : index
    %16 = vector.load %arg1[%c0_15, %c0_16, %c2, %c0_17] : memref<1x66x66x32xbf16, #tpu.memory_space<vmem>>, vector<1x64x64x32xbf16>
    %17 = vector.shape_cast %16 : vector<1x64x64x32xbf16> to vector<64x64x32xbf16>
    %18 = vector.shape_cast %17 : vector<64x64x32xbf16> to vector<4096x32xbf16>
    %c64 = arith.constant 64 : index
    %c0_18 = arith.constant 0 : index
    %19 = vector.load %arg2[%c64, %c0_18] : memref<288x32xbf16, #tpu.memory_space<vmem>>, vector<32x32xbf16>
    %cst_19 = arith.constant dense<0.000000e+00> : vector<4096x32xf32>
    %20 = tpu.matmul %18, %19, %cst_19 {dimension_numbers = #tpu.dot_dimension_numbers<[1], [0], [0], [1], [0, 0, 1, 1], [], []>} : vector<4096x32xbf16>, vector<32x32xbf16>, vector<4096x32xf32> -> vector<4096x32xf32>
    %21 = arith.addf %15, %20 : vector<4096x32xf32>
    %c0_20 = arith.constant 0 : index
    %c1_21 = arith.constant 1 : index
    %c0_22 = arith.constant 0 : index
    %c0_23 = arith.constant 0 : index
    %22 = vector.load %arg1[%c0_20, %c1_21, %c0_22, %c0_23] : memref<1x66x66x32xbf16, #tpu.memory_space<vmem>>, vector<1x64x64x32xbf16>
    %23 = vector.shape_cast %22 : vector<1x64x64x32xbf16> to vector<64x64x32xbf16>
    %24 = vector.shape_cast %23 : vector<64x64x32xbf16> to vector<4096x32xbf16>
    %c96 = arith.constant 96 : index
    %c0_24 = arith.constant 0 : index
    %25 = vector.load %arg2[%c96, %c0_24] : memref<288x32xbf16, #tpu.memory_space<vmem>>, vector<32x32xbf16>
    %cst_25 = arith.constant dense<0.000000e+00> : vector<4096x32xf32>
    %26 = tpu.matmul %24, %25, %cst_25 {dimension_numbers = #tpu.dot_dimension_numbers<[1], [0], [0], [1], [0, 0, 1, 1], [], []>} : vector<4096x32xbf16>, vector<32x32xbf16>, vector<4096x32xf32> -> vector<4096x32xf32>
    %27 = arith.addf %21, %26 : vector<4096x32xf32>
    %c0_26 = arith.constant 0 : index
    %c1_27 = arith.constant 1 : index
    %c1_28 = arith.constant 1 : index
    %c0_29 = arith.constant 0 : index
    %28 = vector.load %arg1[%c0_26, %c1_27, %c1_28, %c0_29] : memref<1x66x66x32xbf16, #tpu.memory_space<vmem>>, vector<1x64x64x32xbf16>
    %29 = vector.shape_cast %28 : vector<1x64x64x32xbf16> to vector<64x64x32xbf16>
    %30 = vector.shape_cast %29 : vector<64x64x32xbf16> to vector<4096x32xbf16>
    %c128 = arith.constant 128 : index
    %c0_30 = arith.constant 0 : index
    %31 = vector.load %arg2[%c128, %c0_30] : memref<288x32xbf16, #tpu.memory_space<vmem>>, vector<32x32xbf16>
    %cst_31 = arith.constant dense<0.000000e+00> : vector<4096x32xf32>
    %32 = tpu.matmul %30, %31, %cst_31 {dimension_numbers = #tpu.dot_dimension_numbers<[1], [0], [0], [1], [0, 0, 1, 1], [], []>} : vector<4096x32xbf16>, vector<32x32xbf16>, vector<4096x32xf32> -> vector<4096x32xf32>
    %33 = arith.addf %27, %32 : vector<4096x32xf32>
    %c0_32 = arith.constant 0 : index
    %c1_33 = arith.constant 1 : index
    %c2_34 = arith.constant 2 : index
    %c0_35 = arith.constant 0 : index
    %34 = vector.load %arg1[%c0_32, %c1_33, %c2_34, %c0_35] : memref<1x66x66x32xbf16, #tpu.memory_space<vmem>>, vector<1x64x64x32xbf16>
    %35 = vector.shape_cast %34 : vector<1x64x64x32xbf16> to vector<64x64x32xbf16>
    %36 = vector.shape_cast %35 : vector<64x64x32xbf16> to vector<4096x32xbf16>
    %c160 = arith.constant 160 : index
    %c0_36 = arith.constant 0 : index
    %37 = vector.load %arg2[%c160, %c0_36] : memref<288x32xbf16, #tpu.memory_space<vmem>>, vector<32x32xbf16>
    %cst_37 = arith.constant dense<0.000000e+00> : vector<4096x32xf32>
    %38 = tpu.matmul %36, %37, %cst_37 {dimension_numbers = #tpu.dot_dimension_numbers<[1], [0], [0], [1], [0, 0, 1, 1], [], []>} : vector<4096x32xbf16>, vector<32x32xbf16>, vector<4096x32xf32> -> vector<4096x32xf32>
    %39 = arith.addf %33, %38 : vector<4096x32xf32>
    %c0_38 = arith.constant 0 : index
    %c2_39 = arith.constant 2 : index
    %c0_40 = arith.constant 0 : index
    %c0_41 = arith.constant 0 : index
    %40 = vector.load %arg1[%c0_38, %c2_39, %c0_40, %c0_41] : memref<1x66x66x32xbf16, #tpu.memory_space<vmem>>, vector<1x64x64x32xbf16>
    %41 = vector.shape_cast %40 : vector<1x64x64x32xbf16> to vector<64x64x32xbf16>
    %42 = vector.shape_cast %41 : vector<64x64x32xbf16> to vector<4096x32xbf16>
    %c192 = arith.constant 192 : index
    %c0_42 = arith.constant 0 : index
    %43 = vector.load %arg2[%c192, %c0_42] : memref<288x32xbf16, #tpu.memory_space<vmem>>, vector<32x32xbf16>
    %cst_43 = arith.constant dense<0.000000e+00> : vector<4096x32xf32>
    %44 = tpu.matmul %42, %43, %cst_43 {dimension_numbers = #tpu.dot_dimension_numbers<[1], [0], [0], [1], [0, 0, 1, 1], [], []>} : vector<4096x32xbf16>, vector<32x32xbf16>, vector<4096x32xf32> -> vector<4096x32xf32>
    %45 = arith.addf %39, %44 : vector<4096x32xf32>
    %c0_44 = arith.constant 0 : index
    %c2_45 = arith.constant 2 : index
    %c1_46 = arith.constant 1 : index
    %c0_47 = arith.constant 0 : index
    %46 = vector.load %arg1[%c0_44, %c2_45, %c1_46, %c0_47] : memref<1x66x66x32xbf16, #tpu.memory_space<vmem>>, vector<1x64x64x32xbf16>
    %47 = vector.shape_cast %46 : vector<1x64x64x32xbf16> to vector<64x64x32xbf16>
    %48 = vector.shape_cast %47 : vector<64x64x32xbf16> to vector<4096x32xbf16>
    %c224 = arith.constant 224 : index
    %c0_48 = arith.constant 0 : index
    %49 = vector.load %arg2[%c224, %c0_48] : memref<288x32xbf16, #tpu.memory_space<vmem>>, vector<32x32xbf16>
    %cst_49 = arith.constant dense<0.000000e+00> : vector<4096x32xf32>
    %50 = tpu.matmul %48, %49, %cst_49 {dimension_numbers = #tpu.dot_dimension_numbers<[1], [0], [0], [1], [0, 0, 1, 1], [], []>} : vector<4096x32xbf16>, vector<32x32xbf16>, vector<4096x32xf32> -> vector<4096x32xf32>
    %51 = arith.addf %45, %50 : vector<4096x32xf32>
    %c0_50 = arith.constant 0 : index
    %c2_51 = arith.constant 2 : index
    %c2_52 = arith.constant 2 : index
    %c0_53 = arith.constant 0 : index
    %52 = vector.load %arg1[%c0_50, %c2_51, %c2_52, %c0_53] : memref<1x66x66x32xbf16, #tpu.memory_space<vmem>>, vector<1x64x64x32xbf16>
    %53 = vector.shape_cast %52 : vector<1x64x64x32xbf16> to vector<64x64x32xbf16>
    %54 = vector.shape_cast %53 : vector<64x64x32xbf16> to vector<4096x32xbf16>
    %c256 = arith.constant 256 : index
    %c0_54 = arith.constant 0 : index
    %55 = vector.load %arg2[%c256, %c0_54] : memref<288x32xbf16, #tpu.memory_space<vmem>>, vector<32x32xbf16>
    %cst_55 = arith.constant dense<0.000000e+00> : vector<4096x32xf32>
    %56 = tpu.matmul %54, %55, %cst_55 {dimension_numbers = #tpu.dot_dimension_numbers<[1], [0], [0], [1], [0, 0, 1, 1], [], []>} : vector<4096x32xbf16>, vector<32x32xbf16>, vector<4096x32xf32> -> vector<4096x32xf32>
    %57 = arith.addf %51, %56 : vector<4096x32xf32>
    %58 = vector.broadcast %0 : vector<1x32xf32> to vector<4096x32xf32>
    %59 = arith.addf %57, %58 : vector<4096x32xf32>
    %c0_56 = arith.constant 0 : index
    %c0_57 = arith.constant 0 : index
    %60 = vector.load %arg8[%c0_56, %c0_57] : memref<4096x32xf32, #tpu.memory_space<vmem>>, vector<4096x32xf32>
    tpu.vector_store %arg8[%c0_56, %c0_57], %59 {strides = array<i32>} : memref<4096x32xf32, #tpu.memory_space<vmem>>, vector<4096x32xf32>,
    %cst_58 = arith.constant dense<0.000000e+00> : vector<32xf32>
    %61 = vector.multi_reduction <add>, %59, %cst_58 [0] : vector<4096x32xf32> to vector<32xf32>
    %62 = vector.shape_cast %61 : vector<32xf32> to vector<1x32xf32>
    %63 = arith.addf %1, %62 : vector<1x32xf32>
    %64 = arith.mulf %59, %59 : vector<4096x32xf32>
    %cst_59 = arith.constant dense<0.000000e+00> : vector<32xf32>
    %65 = vector.multi_reduction <add>, %64, %cst_59 [0] : vector<4096x32xf32> to vector<32xf32>
    %66 = vector.shape_cast %65 : vector<32xf32> to vector<1x32xf32>
    %67 = arith.addf %2, %66 : vector<1x32xf32>
    %c0_60 = arith.constant 0 : index
    %c0_61 = arith.constant 0 : index
    %68 = vector.load %arg6[%c0_60, %c0_61] : memref<32x32xf32, #tpu.memory_space<vmem>>, vector<32x32xf32>
    %cst_62 = arith.constant dense<0.000000e+00> : vector<1x32xf32>
    %69 = tpu.matmul %63, %68, %cst_62 {dimension_numbers = #tpu.dot_dimension_numbers<[1], [0], [0], [1], [0, 0, 1, 1], [], []>} : vector<1x32xf32>, vector<32x32xf32>, vector<1x32xf32> -> vector<1x32xf32>
    %cst_63 = arith.constant 1.52587891E-5 : f32
    %70 = vector.broadcast %cst_63 : f32 to vector<1x32xf32>
    %71 = arith.mulf %69, %70 : vector<1x32xf32>
    %cst_64 = arith.constant dense<0.000000e+00> : vector<1x32xf32>
    %72 = tpu.matmul %67, %68, %cst_64 {dimension_numbers = #tpu.dot_dimension_numbers<[1], [0], [0], [1], [0, 0, 1, 1], [], []>} : vector<1x32xf32>, vector<32x32xf32>, vector<1x32xf32> -> vector<1x32xf32>
    %cst_65 = arith.constant 1.52587891E-5 : f32
    %73 = vector.broadcast %cst_65 : f32 to vector<1x32xf32>
    %74 = arith.mulf %72, %73 : vector<1x32xf32>
    %75 = arith.mulf %71, %71 : vector<1x32xf32>
    %76 = arith.subf %74, %75 : vector<1x32xf32>
    %cst_66 = arith.constant 9.99999974E-6 : f32
    %77 = vector.broadcast %cst_66 : f32 to vector<1x32xf32>
    %78 = arith.addf %76, %77 : vector<1x32xf32>
    %79 = math.rsqrt %78 : vector<1x32xf32>
    %c0_67 = arith.constant 0 : index
    %c0_68 = arith.constant 0 : index
    %80 = vector.load %arg4[%c0_67, %c0_68] : memref<1x32xf32, #tpu.memory_space<vmem>>, vector<1x32xf32>
    %81 = arith.mulf %80, %79 : vector<1x32xf32>
    %c0_69 = arith.constant 0 : index
    %c0_70 = arith.constant 0 : index
    %82 = vector.load %arg5[%c0_69, %c0_70] : memref<1x32xf32, #tpu.memory_space<vmem>>, vector<1x32xf32>
    %83 = arith.mulf %71, %81 : vector<1x32xf32>
    %84 = arith.subf %82, %83 : vector<1x32xf32>
    %c0_71 = arith.constant 0 : index
    %c0_72 = arith.constant 0 : index
    %85 = vector.load %arg8[%c0_71, %c0_72] : memref<4096x32xf32, #tpu.memory_space<vmem>>, vector<4096x32xf32>
    %86 = vector.broadcast %81 : vector<1x32xf32> to vector<4096x32xf32>
    %87 = arith.mulf %85, %86 : vector<4096x32xf32>
    %88 = vector.broadcast %84 : vector<1x32xf32> to vector<4096x32xf32>
    %89 = arith.addf %87, %88 : vector<4096x32xf32>
    %cst_73 = arith.constant 0.000000e+00 : f32
    %90 = vector.broadcast %cst_73 : f32 to vector<4096x32xf32>
    %91 = arith.maximumf %89, %90 : vector<4096x32xf32>
    %92 = vector.shape_cast %91 : vector<4096x32xf32> to vector<64x64x32xf32>
    %93 = arith.truncf %92 : vector<64x64x32xf32> to vector<64x64x32xbf16>
    %c0_74 = arith.constant 0 : index
    %c0_75 = arith.constant 0 : index
    %c0_76 = arith.constant 0 : index
    %c0_77 = arith.constant 0 : index
    %94 = vector.load %arg7[%c0_74, %c0_75, %c0_76, %c0_77] : memref<1x64x64x32xbf16, #tpu.memory_space<vmem>>, vector<1x64x64x32xbf16>
    %95 = vector.shape_cast %94 : vector<1x64x64x32xbf16> to vector<64x64x32xbf16>
    %96 = vector.shape_cast %93 : vector<64x64x32xbf16> to vector<1x64x64x32xbf16>
    tpu.vector_store %arg7[%c0_74, %c0_75, %c0_76, %c0_77], %96 {strides = array<i32>} : memref<1x64x64x32xbf16, #tpu.memory_space<vmem>>, vector<1x64x64x32xbf16>,
    return
  }
  func.func @transform_0(%arg0: i32) -> (i32, i32, i32, i32) {
    %c0_i32 = arith.constant 0 : i32
    %c0_i32_0 = arith.constant 0 : i32
    %c0_i32_1 = arith.constant 0 : i32
    %c0_i32_2 = arith.constant 0 : i32
    return %arg0, %c0_i32, %c0_i32_0, %c0_i32_1 : i32, i32, i32, i32
  }
  func.func @transform_1(%arg0: i32) -> (i32, i32) {
    %c0_i32 = arith.constant 0 : i32
    %c0_i32_0 = arith.constant 0 : i32
    %c0_i32_1 = arith.constant 0 : i32
    return %c0_i32, %c0_i32_0 : i32, i32
  }
  func.func @transform_2(%arg0: i32) -> (i32, i32) {
    %c0_i32 = arith.constant 0 : i32
    %c0_i32_0 = arith.constant 0 : i32
    %c0_i32_1 = arith.constant 0 : i32
    return %c0_i32, %c0_i32_0 : i32, i32
  }
  func.func @transform_3(%arg0: i32) -> (i32, i32) {
    %c0_i32 = arith.constant 0 : i32
    %c0_i32_0 = arith.constant 0 : i32
    %c0_i32_1 = arith.constant 0 : i32
    return %c0_i32, %c0_i32_0 : i32, i32
  }
  func.func @transform_4(%arg0: i32) -> (i32, i32) {
    %c0_i32 = arith.constant 0 : i32
    %c0_i32_0 = arith.constant 0 : i32
    %c0_i32_1 = arith.constant 0 : i32
    return %c0_i32, %c0_i32_0 : i32, i32
  }
  func.func @transform_5(%arg0: i32) -> (i32, i32) {
    %c0_i32 = arith.constant 0 : i32
    %c0_i32_0 = arith.constant 0 : i32
    %c0_i32_1 = arith.constant 0 : i32
    return %c0_i32, %c0_i32_0 : i32, i32
  }
  func.func @transform_6(%arg0: i32) -> (i32, i32, i32, i32) {
    %c0_i32 = arith.constant 0 : i32
    %c0_i32_0 = arith.constant 0 : i32
    %c0_i32_1 = arith.constant 0 : i32
    %c0_i32_2 = arith.constant 0 : i32
    return %arg0, %c0_i32, %c0_i32_0, %c0_i32_1 : i32, i32, i32, i32
  }
}

module attributes {stable_mosaic.version = 11 : i64} {
  func.func @_avgpool_kernel(%arg0: i32, %arg1: memref<2048x32xbf16, #tpu.memory_space<vmem>>, %arg2: memref<2048x32xbf16, #tpu.memory_space<vmem>>, %arg3: memref<2048x32xbf16, #tpu.memory_space<vmem>>, %arg4: memref<2048x32xbf16, #tpu.memory_space<vmem>>, %arg5: memref<2048x32xbf16, #tpu.memory_space<vmem>>) attributes {dimension_semantics = [#tpu.dimension_semantics<parallel>], iteration_bounds = array<i64: 1>, scalar_prefetch = 0 : i64, scratch_operands = 0 : i64, tpu.core_type = #tpu.core_type<tc>, window_params = [{transform_indices = @transform_0, window_bounds = array<i64: 2048, 32>}, {transform_indices = @transform_1, window_bounds = array<i64: 2048, 32>}, {transform_indices = @transform_2, window_bounds = array<i64: 2048, 32>}, {transform_indices = @transform_3, window_bounds = array<i64: 2048, 32>}, {transform_indices = @transform_4, window_bounds = array<i64: 2048, 32>}]} {
    %c0 = arith.constant 0 : index
    %c0_0 = arith.constant 0 : index
    %0 = vector.load %arg1[%c0, %c0_0] : memref<2048x32xbf16, #tpu.memory_space<vmem>>, vector<2048x32xbf16>
    %1 = arith.extf %0 : vector<2048x32xbf16> to vector<2048x32xf32>
    %c0_1 = arith.constant 0 : index
    %c0_2 = arith.constant 0 : index
    %2 = vector.load %arg2[%c0_1, %c0_2] : memref<2048x32xbf16, #tpu.memory_space<vmem>>, vector<2048x32xbf16>
    %3 = arith.extf %2 : vector<2048x32xbf16> to vector<2048x32xf32>
    %4 = arith.addf %1, %3 : vector<2048x32xf32>
    %c0_3 = arith.constant 0 : index
    %c0_4 = arith.constant 0 : index
    %5 = vector.load %arg3[%c0_3, %c0_4] : memref<2048x32xbf16, #tpu.memory_space<vmem>>, vector<2048x32xbf16>
    %6 = arith.extf %5 : vector<2048x32xbf16> to vector<2048x32xf32>
    %7 = arith.addf %4, %6 : vector<2048x32xf32>
    %c0_5 = arith.constant 0 : index
    %c0_6 = arith.constant 0 : index
    %8 = vector.load %arg4[%c0_5, %c0_6] : memref<2048x32xbf16, #tpu.memory_space<vmem>>, vector<2048x32xbf16>
    %9 = arith.extf %8 : vector<2048x32xbf16> to vector<2048x32xf32>
    %10 = arith.addf %7, %9 : vector<2048x32xf32>
    %cst = arith.constant 2.500000e-01 : f32
    %11 = vector.broadcast %cst : f32 to vector<2048x32xf32>
    %12 = arith.mulf %11, %10 : vector<2048x32xf32>
    %13 = arith.truncf %12 : vector<2048x32xf32> to vector<2048x32xbf16>
    %c0_7 = arith.constant 0 : index
    %c0_8 = arith.constant 0 : index
    %14 = vector.load %arg5[%c0_7, %c0_8] : memref<2048x32xbf16, #tpu.memory_space<vmem>>, vector<2048x32xbf16>
    tpu.vector_store %arg5[%c0_7, %c0_8], %13 {strides = array<i32>} : memref<2048x32xbf16, #tpu.memory_space<vmem>>, vector<2048x32xbf16>,
    return
  }
  func.func @transform_0(%arg0: i32) -> (i32, i32) {
    %c0_i32 = arith.constant 0 : i32
    %c0_i32_0 = arith.constant 0 : i32
    return %arg0, %c0_i32 : i32, i32
  }
  func.func @transform_1(%arg0: i32) -> (i32, i32) {
    %c0_i32 = arith.constant 0 : i32
    %c0_i32_0 = arith.constant 0 : i32
    return %arg0, %c0_i32 : i32, i32
  }
  func.func @transform_2(%arg0: i32) -> (i32, i32) {
    %c0_i32 = arith.constant 0 : i32
    %c0_i32_0 = arith.constant 0 : i32
    return %arg0, %c0_i32 : i32, i32
  }
  func.func @transform_3(%arg0: i32) -> (i32, i32) {
    %c0_i32 = arith.constant 0 : i32
    %c0_i32_0 = arith.constant 0 : i32
    return %arg0, %c0_i32 : i32, i32
  }
  func.func @transform_4(%arg0: i32) -> (i32, i32) {
    %c0_i32 = arith.constant 0 : i32
    %c0_i32_0 = arith.constant 0 : i32
    return %arg0, %c0_i32 : i32, i32
  }
}

module attributes {stable_mosaic.version = 11 : i64} {
  func.func @_conv_gn_relu_kernel(%arg0: i32, %arg1: memref<1x34x34x32xbf16, #tpu.memory_space<vmem>>, %arg2: memref<288x64xbf16, #tpu.memory_space<vmem>>, %arg3: memref<1x64xf32, #tpu.memory_space<vmem>>, %arg4: memref<1x64xf32, #tpu.memory_space<vmem>>, %arg5: memref<1x64xf32, #tpu.memory_space<vmem>>, %arg6: memref<64x64xf32, #tpu.memory_space<vmem>>, %arg7: memref<1x32x32x64xbf16, #tpu.memory_space<vmem>>, %arg8: memref<1024x64xf32, #tpu.memory_space<vmem>>) attributes {dimension_semantics = [#tpu.dimension_semantics<parallel>], iteration_bounds = array<i64: 2>, scalar_prefetch = 0 : i64, scratch_operands = 1 : i64, tpu.core_type = #tpu.core_type<tc>, window_params = [{transform_indices = @transform_0, window_bounds = array<i64: 1, 34, 34, 32>}, {pipeline_mode = #tpu.pipeline_mode<synchronous>, transform_indices = @transform_1, window_bounds = array<i64: 288, 64>}, {pipeline_mode = #tpu.pipeline_mode<synchronous>, transform_indices = @transform_2, window_bounds = array<i64: 1, 64>}, {pipeline_mode = #tpu.pipeline_mode<synchronous>, transform_indices = @transform_3, window_bounds = array<i64: 1, 64>}, {pipeline_mode = #tpu.pipeline_mode<synchronous>, transform_indices = @transform_4, window_bounds = array<i64: 1, 64>}, {pipeline_mode = #tpu.pipeline_mode<synchronous>, transform_indices = @transform_5, window_bounds = array<i64: 64, 64>}, {transform_indices = @transform_6, window_bounds = array<i64: 1, 32, 32, 64>}]} {
    %c0 = arith.constant 0 : index
    %c0_0 = arith.constant 0 : index
    %0 = vector.load %arg3[%c0, %c0_0] : memref<1x64xf32, #tpu.memory_space<vmem>>, vector<1x64xf32>
    %cst = arith.constant 0.000000e+00 : f32
    %1 = vector.broadcast %cst : f32 to vector<1x64xf32>
    %cst_1 = arith.constant 0.000000e+00 : f32
    %2 = vector.broadcast %cst_1 : f32 to vector<1x64xf32>
    %cst_2 = arith.constant 0.000000e+00 : f32
    %3 = vector.broadcast %cst_2 : f32 to vector<1024x64xf32>
    %c0_3 = arith.constant 0 : index
    %c0_4 = arith.constant 0 : index
    %c0_5 = arith.constant 0 : index
    %c0_6 = arith.constant 0 : index
    %4 = vector.load %arg1[%c0_3, %c0_4, %c0_5, %c0_6] : memref<1x34x34x32xbf16, #tpu.memory_space<vmem>>, vector<1x32x32x32xbf16>
    %5 = vector.shape_cast %4 : vector<1x32x32x32xbf16> to vector<32x32x32xbf16>
    %6 = vector.shape_cast %5 : vector<32x32x32xbf16> to vector<1024x32xbf16>
    %c0_7 = arith.constant 0 : index
    %c0_8 = arith.constant 0 : index
    %7 = vector.load %arg2[%c0_7, %c0_8] : memref<288x64xbf16, #tpu.memory_space<vmem>>, vector<32x64xbf16>
    %cst_9 = arith.constant dense<0.000000e+00> : vector<1024x64xf32>
    %8 = tpu.matmul %6, %7, %cst_9 {dimension_numbers = #tpu.dot_dimension_numbers<[1], [0], [0], [1], [0, 0, 1, 1], [], []>} : vector<1024x32xbf16>, vector<32x64xbf16>, vector<1024x64xf32> -> vector<1024x64xf32>
    %9 = arith.addf %3, %8 : vector<1024x64xf32>
    %c0_10 = arith.constant 0 : index
    %c0_11 = arith.constant 0 : index
    %c1 = arith.constant 1 : index
    %c0_12 = arith.constant 0 : index
    %10 = vector.load %arg1[%c0_10, %c0_11, %c1, %c0_12] : memref<1x34x34x32xbf16, #tpu.memory_space<vmem>>, vector<1x32x32x32xbf16>
    %11 = vector.shape_cast %10 : vector<1x32x32x32xbf16> to vector<32x32x32xbf16>
    %12 = vector.shape_cast %11 : vector<32x32x32xbf16> to vector<1024x32xbf16>
    %c32 = arith.constant 32 : index
    %c0_13 = arith.constant 0 : index
    %13 = vector.load %arg2[%c32, %c0_13] : memref<288x64xbf16, #tpu.memory_space<vmem>>, vector<32x64xbf16>
    %cst_14 = arith.constant dense<0.000000e+00> : vector<1024x64xf32>
    %14 = tpu.matmul %12, %13, %cst_14 {dimension_numbers = #tpu.dot_dimension_numbers<[1], [0], [0], [1], [0, 0, 1, 1], [], []>} : vector<1024x32xbf16>, vector<32x64xbf16>, vector<1024x64xf32> -> vector<1024x64xf32>
    %15 = arith.addf %9, %14 : vector<1024x64xf32>
    %c0_15 = arith.constant 0 : index
    %c0_16 = arith.constant 0 : index
    %c2 = arith.constant 2 : index
    %c0_17 = arith.constant 0 : index
    %16 = vector.load %arg1[%c0_15, %c0_16, %c2, %c0_17] : memref<1x34x34x32xbf16, #tpu.memory_space<vmem>>, vector<1x32x32x32xbf16>
    %17 = vector.shape_cast %16 : vector<1x32x32x32xbf16> to vector<32x32x32xbf16>
    %18 = vector.shape_cast %17 : vector<32x32x32xbf16> to vector<1024x32xbf16>
    %c64 = arith.constant 64 : index
    %c0_18 = arith.constant 0 : index
    %19 = vector.load %arg2[%c64, %c0_18] : memref<288x64xbf16, #tpu.memory_space<vmem>>, vector<32x64xbf16>
    %cst_19 = arith.constant dense<0.000000e+00> : vector<1024x64xf32>
    %20 = tpu.matmul %18, %19, %cst_19 {dimension_numbers = #tpu.dot_dimension_numbers<[1], [0], [0], [1], [0, 0, 1, 1], [], []>} : vector<1024x32xbf16>, vector<32x64xbf16>, vector<1024x64xf32> -> vector<1024x64xf32>
    %21 = arith.addf %15, %20 : vector<1024x64xf32>
    %c0_20 = arith.constant 0 : index
    %c1_21 = arith.constant 1 : index
    %c0_22 = arith.constant 0 : index
    %c0_23 = arith.constant 0 : index
    %22 = vector.load %arg1[%c0_20, %c1_21, %c0_22, %c0_23] : memref<1x34x34x32xbf16, #tpu.memory_space<vmem>>, vector<1x32x32x32xbf16>
    %23 = vector.shape_cast %22 : vector<1x32x32x32xbf16> to vector<32x32x32xbf16>
    %24 = vector.shape_cast %23 : vector<32x32x32xbf16> to vector<1024x32xbf16>
    %c96 = arith.constant 96 : index
    %c0_24 = arith.constant 0 : index
    %25 = vector.load %arg2[%c96, %c0_24] : memref<288x64xbf16, #tpu.memory_space<vmem>>, vector<32x64xbf16>
    %cst_25 = arith.constant dense<0.000000e+00> : vector<1024x64xf32>
    %26 = tpu.matmul %24, %25, %cst_25 {dimension_numbers = #tpu.dot_dimension_numbers<[1], [0], [0], [1], [0, 0, 1, 1], [], []>} : vector<1024x32xbf16>, vector<32x64xbf16>, vector<1024x64xf32> -> vector<1024x64xf32>
    %27 = arith.addf %21, %26 : vector<1024x64xf32>
    %c0_26 = arith.constant 0 : index
    %c1_27 = arith.constant 1 : index
    %c1_28 = arith.constant 1 : index
    %c0_29 = arith.constant 0 : index
    %28 = vector.load %arg1[%c0_26, %c1_27, %c1_28, %c0_29] : memref<1x34x34x32xbf16, #tpu.memory_space<vmem>>, vector<1x32x32x32xbf16>
    %29 = vector.shape_cast %28 : vector<1x32x32x32xbf16> to vector<32x32x32xbf16>
    %30 = vector.shape_cast %29 : vector<32x32x32xbf16> to vector<1024x32xbf16>
    %c128 = arith.constant 128 : index
    %c0_30 = arith.constant 0 : index
    %31 = vector.load %arg2[%c128, %c0_30] : memref<288x64xbf16, #tpu.memory_space<vmem>>, vector<32x64xbf16>
    %cst_31 = arith.constant dense<0.000000e+00> : vector<1024x64xf32>
    %32 = tpu.matmul %30, %31, %cst_31 {dimension_numbers = #tpu.dot_dimension_numbers<[1], [0], [0], [1], [0, 0, 1, 1], [], []>} : vector<1024x32xbf16>, vector<32x64xbf16>, vector<1024x64xf32> -> vector<1024x64xf32>
    %33 = arith.addf %27, %32 : vector<1024x64xf32>
    %c0_32 = arith.constant 0 : index
    %c1_33 = arith.constant 1 : index
    %c2_34 = arith.constant 2 : index
    %c0_35 = arith.constant 0 : index
    %34 = vector.load %arg1[%c0_32, %c1_33, %c2_34, %c0_35] : memref<1x34x34x32xbf16, #tpu.memory_space<vmem>>, vector<1x32x32x32xbf16>
    %35 = vector.shape_cast %34 : vector<1x32x32x32xbf16> to vector<32x32x32xbf16>
    %36 = vector.shape_cast %35 : vector<32x32x32xbf16> to vector<1024x32xbf16>
    %c160 = arith.constant 160 : index
    %c0_36 = arith.constant 0 : index
    %37 = vector.load %arg2[%c160, %c0_36] : memref<288x64xbf16, #tpu.memory_space<vmem>>, vector<32x64xbf16>
    %cst_37 = arith.constant dense<0.000000e+00> : vector<1024x64xf32>
    %38 = tpu.matmul %36, %37, %cst_37 {dimension_numbers = #tpu.dot_dimension_numbers<[1], [0], [0], [1], [0, 0, 1, 1], [], []>} : vector<1024x32xbf16>, vector<32x64xbf16>, vector<1024x64xf32> -> vector<1024x64xf32>
    %39 = arith.addf %33, %38 : vector<1024x64xf32>
    %c0_38 = arith.constant 0 : index
    %c2_39 = arith.constant 2 : index
    %c0_40 = arith.constant 0 : index
    %c0_41 = arith.constant 0 : index
    %40 = vector.load %arg1[%c0_38, %c2_39, %c0_40, %c0_41] : memref<1x34x34x32xbf16, #tpu.memory_space<vmem>>, vector<1x32x32x32xbf16>
    %41 = vector.shape_cast %40 : vector<1x32x32x32xbf16> to vector<32x32x32xbf16>
    %42 = vector.shape_cast %41 : vector<32x32x32xbf16> to vector<1024x32xbf16>
    %c192 = arith.constant 192 : index
    %c0_42 = arith.constant 0 : index
    %43 = vector.load %arg2[%c192, %c0_42] : memref<288x64xbf16, #tpu.memory_space<vmem>>, vector<32x64xbf16>
    %cst_43 = arith.constant dense<0.000000e+00> : vector<1024x64xf32>
    %44 = tpu.matmul %42, %43, %cst_43 {dimension_numbers = #tpu.dot_dimension_numbers<[1], [0], [0], [1], [0, 0, 1, 1], [], []>} : vector<1024x32xbf16>, vector<32x64xbf16>, vector<1024x64xf32> -> vector<1024x64xf32>
    %45 = arith.addf %39, %44 : vector<1024x64xf32>
    %c0_44 = arith.constant 0 : index
    %c2_45 = arith.constant 2 : index
    %c1_46 = arith.constant 1 : index
    %c0_47 = arith.constant 0 : index
    %46 = vector.load %arg1[%c0_44, %c2_45, %c1_46, %c0_47] : memref<1x34x34x32xbf16, #tpu.memory_space<vmem>>, vector<1x32x32x32xbf16>
    %47 = vector.shape_cast %46 : vector<1x32x32x32xbf16> to vector<32x32x32xbf16>
    %48 = vector.shape_cast %47 : vector<32x32x32xbf16> to vector<1024x32xbf16>
    %c224 = arith.constant 224 : index
    %c0_48 = arith.constant 0 : index
    %49 = vector.load %arg2[%c224, %c0_48] : memref<288x64xbf16, #tpu.memory_space<vmem>>, vector<32x64xbf16>
    %cst_49 = arith.constant dense<0.000000e+00> : vector<1024x64xf32>
    %50 = tpu.matmul %48, %49, %cst_49 {dimension_numbers = #tpu.dot_dimension_numbers<[1], [0], [0], [1], [0, 0, 1, 1], [], []>} : vector<1024x32xbf16>, vector<32x64xbf16>, vector<1024x64xf32> -> vector<1024x64xf32>
    %51 = arith.addf %45, %50 : vector<1024x64xf32>
    %c0_50 = arith.constant 0 : index
    %c2_51 = arith.constant 2 : index
    %c2_52 = arith.constant 2 : index
    %c0_53 = arith.constant 0 : index
    %52 = vector.load %arg1[%c0_50, %c2_51, %c2_52, %c0_53] : memref<1x34x34x32xbf16, #tpu.memory_space<vmem>>, vector<1x32x32x32xbf16>
    %53 = vector.shape_cast %52 : vector<1x32x32x32xbf16> to vector<32x32x32xbf16>
    %54 = vector.shape_cast %53 : vector<32x32x32xbf16> to vector<1024x32xbf16>
    %c256 = arith.constant 256 : index
    %c0_54 = arith.constant 0 : index
    %55 = vector.load %arg2[%c256, %c0_54] : memref<288x64xbf16, #tpu.memory_space<vmem>>, vector<32x64xbf16>
    %cst_55 = arith.constant dense<0.000000e+00> : vector<1024x64xf32>
    %56 = tpu.matmul %54, %55, %cst_55 {dimension_numbers = #tpu.dot_dimension_numbers<[1], [0], [0], [1], [0, 0, 1, 1], [], []>} : vector<1024x32xbf16>, vector<32x64xbf16>, vector<1024x64xf32> -> vector<1024x64xf32>
    %57 = arith.addf %51, %56 : vector<1024x64xf32>
    %58 = vector.broadcast %0 : vector<1x64xf32> to vector<1024x64xf32>
    %59 = arith.addf %57, %58 : vector<1024x64xf32>
    %c0_56 = arith.constant 0 : index
    %c0_57 = arith.constant 0 : index
    %60 = vector.load %arg8[%c0_56, %c0_57] : memref<1024x64xf32, #tpu.memory_space<vmem>>, vector<1024x64xf32>
    tpu.vector_store %arg8[%c0_56, %c0_57], %59 {strides = array<i32>} : memref<1024x64xf32, #tpu.memory_space<vmem>>, vector<1024x64xf32>,
    %cst_58 = arith.constant dense<0.000000e+00> : vector<64xf32>
    %61 = vector.multi_reduction <add>, %59, %cst_58 [0] : vector<1024x64xf32> to vector<64xf32>
    %62 = vector.shape_cast %61 : vector<64xf32> to vector<1x64xf32>
    %63 = arith.addf %1, %62 : vector<1x64xf32>
    %64 = arith.mulf %59, %59 : vector<1024x64xf32>
    %cst_59 = arith.constant dense<0.000000e+00> : vector<64xf32>
    %65 = vector.multi_reduction <add>, %64, %cst_59 [0] : vector<1024x64xf32> to vector<64xf32>
    %66 = vector.shape_cast %65 : vector<64xf32> to vector<1x64xf32>
    %67 = arith.addf %2, %66 : vector<1x64xf32>
    %c0_60 = arith.constant 0 : index
    %c0_61 = arith.constant 0 : index
    %68 = vector.load %arg6[%c0_60, %c0_61] : memref<64x64xf32, #tpu.memory_space<vmem>>, vector<64x64xf32>
    %cst_62 = arith.constant dense<0.000000e+00> : vector<1x64xf32>
    %69 = tpu.matmul %63, %68, %cst_62 {dimension_numbers = #tpu.dot_dimension_numbers<[1], [0], [0], [1], [0, 0, 1, 1], [], []>} : vector<1x64xf32>, vector<64x64xf32>, vector<1x64xf32> -> vector<1x64xf32>
    %cst_63 = arith.constant 6.10351563E-5 : f32
    %70 = vector.broadcast %cst_63 : f32 to vector<1x64xf32>
    %71 = arith.mulf %69, %70 : vector<1x64xf32>
    %cst_64 = arith.constant dense<0.000000e+00> : vector<1x64xf32>
    %72 = tpu.matmul %67, %68, %cst_64 {dimension_numbers = #tpu.dot_dimension_numbers<[1], [0], [0], [1], [0, 0, 1, 1], [], []>} : vector<1x64xf32>, vector<64x64xf32>, vector<1x64xf32> -> vector<1x64xf32>
    %cst_65 = arith.constant 6.10351563E-5 : f32
    %73 = vector.broadcast %cst_65 : f32 to vector<1x64xf32>
    %74 = arith.mulf %72, %73 : vector<1x64xf32>
    %75 = arith.mulf %71, %71 : vector<1x64xf32>
    %76 = arith.subf %74, %75 : vector<1x64xf32>
    %cst_66 = arith.constant 9.99999974E-6 : f32
    %77 = vector.broadcast %cst_66 : f32 to vector<1x64xf32>
    %78 = arith.addf %76, %77 : vector<1x64xf32>
    %79 = math.rsqrt %78 : vector<1x64xf32>
    %c0_67 = arith.constant 0 : index
    %c0_68 = arith.constant 0 : index
    %80 = vector.load %arg4[%c0_67, %c0_68] : memref<1x64xf32, #tpu.memory_space<vmem>>, vector<1x64xf32>
    %81 = arith.mulf %80, %79 : vector<1x64xf32>
    %c0_69 = arith.constant 0 : index
    %c0_70 = arith.constant 0 : index
    %82 = vector.load %arg5[%c0_69, %c0_70] : memref<1x64xf32, #tpu.memory_space<vmem>>, vector<1x64xf32>
    %83 = arith.mulf %71, %81 : vector<1x64xf32>
    %84 = arith.subf %82, %83 : vector<1x64xf32>
    %c0_71 = arith.constant 0 : index
    %c0_72 = arith.constant 0 : index
    %85 = vector.load %arg8[%c0_71, %c0_72] : memref<1024x64xf32, #tpu.memory_space<vmem>>, vector<1024x64xf32>
    %86 = vector.broadcast %81 : vector<1x64xf32> to vector<1024x64xf32>
    %87 = arith.mulf %85, %86 : vector<1024x64xf32>
    %88 = vector.broadcast %84 : vector<1x64xf32> to vector<1024x64xf32>
    %89 = arith.addf %87, %88 : vector<1024x64xf32>
    %cst_73 = arith.constant 0.000000e+00 : f32
    %90 = vector.broadcast %cst_73 : f32 to vector<1024x64xf32>
    %91 = arith.maximumf %89, %90 : vector<1024x64xf32>
    %92 = vector.shape_cast %91 : vector<1024x64xf32> to vector<32x32x64xf32>
    %93 = arith.truncf %92 : vector<32x32x64xf32> to vector<32x32x64xbf16>
    %c0_74 = arith.constant 0 : index
    %c0_75 = arith.constant 0 : index
    %c0_76 = arith.constant 0 : index
    %c0_77 = arith.constant 0 : index
    %94 = vector.load %arg7[%c0_74, %c0_75, %c0_76, %c0_77] : memref<1x32x32x64xbf16, #tpu.memory_space<vmem>>, vector<1x32x32x64xbf16>
    %95 = vector.shape_cast %94 : vector<1x32x32x64xbf16> to vector<32x32x64xbf16>
    %96 = vector.shape_cast %93 : vector<32x32x64xbf16> to vector<1x32x32x64xbf16>
    tpu.vector_store %arg7[%c0_74, %c0_75, %c0_76, %c0_77], %96 {strides = array<i32>} : memref<1x32x32x64xbf16, #tpu.memory_space<vmem>>, vector<1x32x32x64xbf16>,
    return
  }
  func.func @transform_0(%arg0: i32) -> (i32, i32, i32, i32) {
    %c0_i32 = arith.constant 0 : i32
    %c0_i32_0 = arith.constant 0 : i32
    %c0_i32_1 = arith.constant 0 : i32
    %c0_i32_2 = arith.constant 0 : i32
    return %arg0, %c0_i32, %c0_i32_0, %c0_i32_1 : i32, i32, i32, i32
  }
  func.func @transform_1(%arg0: i32) -> (i32, i32) {
    %c0_i32 = arith.constant 0 : i32
    %c0_i32_0 = arith.constant 0 : i32
    %c0_i32_1 = arith.constant 0 : i32
    return %c0_i32, %c0_i32_0 : i32, i32
  }
  func.func @transform_2(%arg0: i32) -> (i32, i32) {
    %c0_i32 = arith.constant 0 : i32
    %c0_i32_0 = arith.constant 0 : i32
    %c0_i32_1 = arith.constant 0 : i32
    return %c0_i32, %c0_i32_0 : i32, i32
  }
  func.func @transform_3(%arg0: i32) -> (i32, i32) {
    %c0_i32 = arith.constant 0 : i32
    %c0_i32_0 = arith.constant 0 : i32
    %c0_i32_1 = arith.constant 0 : i32
    return %c0_i32, %c0_i32_0 : i32, i32
  }
  func.func @transform_4(%arg0: i32) -> (i32, i32) {
    %c0_i32 = arith.constant 0 : i32
    %c0_i32_0 = arith.constant 0 : i32
    %c0_i32_1 = arith.constant 0 : i32
    return %c0_i32, %c0_i32_0 : i32, i32
  }
  func.func @transform_5(%arg0: i32) -> (i32, i32) {
    %c0_i32 = arith.constant 0 : i32
    %c0_i32_0 = arith.constant 0 : i32
    %c0_i32_1 = arith.constant 0 : i32
    return %c0_i32, %c0_i32_0 : i32, i32
  }
  func.func @transform_6(%arg0: i32) -> (i32, i32, i32, i32) {
    %c0_i32 = arith.constant 0 : i32
    %c0_i32_0 = arith.constant 0 : i32
    %c0_i32_1 = arith.constant 0 : i32
    %c0_i32_2 = arith.constant 0 : i32
    return %arg0, %c0_i32, %c0_i32_0, %c0_i32_1 : i32, i32, i32, i32
  }
}

module attributes {stable_mosaic.version = 11 : i64} {
  func.func @_conv_gn_relu_kernel(%arg0: i32, %arg1: memref<1x34x34x64xbf16, #tpu.memory_space<vmem>>, %arg2: memref<576x64xbf16, #tpu.memory_space<vmem>>, %arg3: memref<1x64xf32, #tpu.memory_space<vmem>>, %arg4: memref<1x64xf32, #tpu.memory_space<vmem>>, %arg5: memref<1x64xf32, #tpu.memory_space<vmem>>, %arg6: memref<64x64xf32, #tpu.memory_space<vmem>>, %arg7: memref<1x32x32x64xbf16, #tpu.memory_space<vmem>>, %arg8: memref<1024x64xf32, #tpu.memory_space<vmem>>) attributes {dimension_semantics = [#tpu.dimension_semantics<parallel>], iteration_bounds = array<i64: 2>, scalar_prefetch = 0 : i64, scratch_operands = 1 : i64, tpu.core_type = #tpu.core_type<tc>, window_params = [{transform_indices = @transform_0, window_bounds = array<i64: 1, 34, 34, 64>}, {pipeline_mode = #tpu.pipeline_mode<synchronous>, transform_indices = @transform_1, window_bounds = array<i64: 576, 64>}, {pipeline_mode = #tpu.pipeline_mode<synchronous>, transform_indices = @transform_2, window_bounds = array<i64: 1, 64>}, {pipeline_mode = #tpu.pipeline_mode<synchronous>, transform_indices = @transform_3, window_bounds = array<i64: 1, 64>}, {pipeline_mode = #tpu.pipeline_mode<synchronous>, transform_indices = @transform_4, window_bounds = array<i64: 1, 64>}, {pipeline_mode = #tpu.pipeline_mode<synchronous>, transform_indices = @transform_5, window_bounds = array<i64: 64, 64>}, {transform_indices = @transform_6, window_bounds = array<i64: 1, 32, 32, 64>}]} {
    %c0 = arith.constant 0 : index
    %c0_0 = arith.constant 0 : index
    %0 = vector.load %arg3[%c0, %c0_0] : memref<1x64xf32, #tpu.memory_space<vmem>>, vector<1x64xf32>
    %cst = arith.constant 0.000000e+00 : f32
    %1 = vector.broadcast %cst : f32 to vector<1x64xf32>
    %cst_1 = arith.constant 0.000000e+00 : f32
    %2 = vector.broadcast %cst_1 : f32 to vector<1x64xf32>
    %cst_2 = arith.constant 0.000000e+00 : f32
    %3 = vector.broadcast %cst_2 : f32 to vector<1024x64xf32>
    %c0_3 = arith.constant 0 : index
    %c0_4 = arith.constant 0 : index
    %c0_5 = arith.constant 0 : index
    %c0_6 = arith.constant 0 : index
    %4 = vector.load %arg1[%c0_3, %c0_4, %c0_5, %c0_6] : memref<1x34x34x64xbf16, #tpu.memory_space<vmem>>, vector<1x32x32x64xbf16>
    %5 = vector.shape_cast %4 : vector<1x32x32x64xbf16> to vector<32x32x64xbf16>
    %6 = vector.shape_cast %5 : vector<32x32x64xbf16> to vector<1024x64xbf16>
    %c0_7 = arith.constant 0 : index
    %c0_8 = arith.constant 0 : index
    %7 = vector.load %arg2[%c0_7, %c0_8] : memref<576x64xbf16, #tpu.memory_space<vmem>>, vector<64x64xbf16>
    %cst_9 = arith.constant dense<0.000000e+00> : vector<1024x64xf32>
    %8 = tpu.matmul %6, %7, %cst_9 {dimension_numbers = #tpu.dot_dimension_numbers<[1], [0], [0], [1], [0, 0, 1, 1], [], []>} : vector<1024x64xbf16>, vector<64x64xbf16>, vector<1024x64xf32> -> vector<1024x64xf32>
    %9 = arith.addf %3, %8 : vector<1024x64xf32>
    %c0_10 = arith.constant 0 : index
    %c0_11 = arith.constant 0 : index
    %c1 = arith.constant 1 : index
    %c0_12 = arith.constant 0 : index
    %10 = vector.load %arg1[%c0_10, %c0_11, %c1, %c0_12] : memref<1x34x34x64xbf16, #tpu.memory_space<vmem>>, vector<1x32x32x64xbf16>
    %11 = vector.shape_cast %10 : vector<1x32x32x64xbf16> to vector<32x32x64xbf16>
    %12 = vector.shape_cast %11 : vector<32x32x64xbf16> to vector<1024x64xbf16>
    %c64 = arith.constant 64 : index
    %c0_13 = arith.constant 0 : index
    %13 = vector.load %arg2[%c64, %c0_13] : memref<576x64xbf16, #tpu.memory_space<vmem>>, vector<64x64xbf16>
    %cst_14 = arith.constant dense<0.000000e+00> : vector<1024x64xf32>
    %14 = tpu.matmul %12, %13, %cst_14 {dimension_numbers = #tpu.dot_dimension_numbers<[1], [0], [0], [1], [0, 0, 1, 1], [], []>} : vector<1024x64xbf16>, vector<64x64xbf16>, vector<1024x64xf32> -> vector<1024x64xf32>
    %15 = arith.addf %9, %14 : vector<1024x64xf32>
    %c0_15 = arith.constant 0 : index
    %c0_16 = arith.constant 0 : index
    %c2 = arith.constant 2 : index
    %c0_17 = arith.constant 0 : index
    %16 = vector.load %arg1[%c0_15, %c0_16, %c2, %c0_17] : memref<1x34x34x64xbf16, #tpu.memory_space<vmem>>, vector<1x32x32x64xbf16>
    %17 = vector.shape_cast %16 : vector<1x32x32x64xbf16> to vector<32x32x64xbf16>
    %18 = vector.shape_cast %17 : vector<32x32x64xbf16> to vector<1024x64xbf16>
    %c128 = arith.constant 128 : index
    %c0_18 = arith.constant 0 : index
    %19 = vector.load %arg2[%c128, %c0_18] : memref<576x64xbf16, #tpu.memory_space<vmem>>, vector<64x64xbf16>
    %cst_19 = arith.constant dense<0.000000e+00> : vector<1024x64xf32>
    %20 = tpu.matmul %18, %19, %cst_19 {dimension_numbers = #tpu.dot_dimension_numbers<[1], [0], [0], [1], [0, 0, 1, 1], [], []>} : vector<1024x64xbf16>, vector<64x64xbf16>, vector<1024x64xf32> -> vector<1024x64xf32>
    %21 = arith.addf %15, %20 : vector<1024x64xf32>
    %c0_20 = arith.constant 0 : index
    %c1_21 = arith.constant 1 : index
    %c0_22 = arith.constant 0 : index
    %c0_23 = arith.constant 0 : index
    %22 = vector.load %arg1[%c0_20, %c1_21, %c0_22, %c0_23] : memref<1x34x34x64xbf16, #tpu.memory_space<vmem>>, vector<1x32x32x64xbf16>
    %23 = vector.shape_cast %22 : vector<1x32x32x64xbf16> to vector<32x32x64xbf16>
    %24 = vector.shape_cast %23 : vector<32x32x64xbf16> to vector<1024x64xbf16>
    %c192 = arith.constant 192 : index
    %c0_24 = arith.constant 0 : index
    %25 = vector.load %arg2[%c192, %c0_24] : memref<576x64xbf16, #tpu.memory_space<vmem>>, vector<64x64xbf16>
    %cst_25 = arith.constant dense<0.000000e+00> : vector<1024x64xf32>
    %26 = tpu.matmul %24, %25, %cst_25 {dimension_numbers = #tpu.dot_dimension_numbers<[1], [0], [0], [1], [0, 0, 1, 1], [], []>} : vector<1024x64xbf16>, vector<64x64xbf16>, vector<1024x64xf32> -> vector<1024x64xf32>
    %27 = arith.addf %21, %26 : vector<1024x64xf32>
    %c0_26 = arith.constant 0 : index
    %c1_27 = arith.constant 1 : index
    %c1_28 = arith.constant 1 : index
    %c0_29 = arith.constant 0 : index
    %28 = vector.load %arg1[%c0_26, %c1_27, %c1_28, %c0_29] : memref<1x34x34x64xbf16, #tpu.memory_space<vmem>>, vector<1x32x32x64xbf16>
    %29 = vector.shape_cast %28 : vector<1x32x32x64xbf16> to vector<32x32x64xbf16>
    %30 = vector.shape_cast %29 : vector<32x32x64xbf16> to vector<1024x64xbf16>
    %c256 = arith.constant 256 : index
    %c0_30 = arith.constant 0 : index
    %31 = vector.load %arg2[%c256, %c0_30] : memref<576x64xbf16, #tpu.memory_space<vmem>>, vector<64x64xbf16>
    %cst_31 = arith.constant dense<0.000000e+00> : vector<1024x64xf32>
    %32 = tpu.matmul %30, %31, %cst_31 {dimension_numbers = #tpu.dot_dimension_numbers<[1], [0], [0], [1], [0, 0, 1, 1], [], []>} : vector<1024x64xbf16>, vector<64x64xbf16>, vector<1024x64xf32> -> vector<1024x64xf32>
    %33 = arith.addf %27, %32 : vector<1024x64xf32>
    %c0_32 = arith.constant 0 : index
    %c1_33 = arith.constant 1 : index
    %c2_34 = arith.constant 2 : index
    %c0_35 = arith.constant 0 : index
    %34 = vector.load %arg1[%c0_32, %c1_33, %c2_34, %c0_35] : memref<1x34x34x64xbf16, #tpu.memory_space<vmem>>, vector<1x32x32x64xbf16>
    %35 = vector.shape_cast %34 : vector<1x32x32x64xbf16> to vector<32x32x64xbf16>
    %36 = vector.shape_cast %35 : vector<32x32x64xbf16> to vector<1024x64xbf16>
    %c320 = arith.constant 320 : index
    %c0_36 = arith.constant 0 : index
    %37 = vector.load %arg2[%c320, %c0_36] : memref<576x64xbf16, #tpu.memory_space<vmem>>, vector<64x64xbf16>
    %cst_37 = arith.constant dense<0.000000e+00> : vector<1024x64xf32>
    %38 = tpu.matmul %36, %37, %cst_37 {dimension_numbers = #tpu.dot_dimension_numbers<[1], [0], [0], [1], [0, 0, 1, 1], [], []>} : vector<1024x64xbf16>, vector<64x64xbf16>, vector<1024x64xf32> -> vector<1024x64xf32>
    %39 = arith.addf %33, %38 : vector<1024x64xf32>
    %c0_38 = arith.constant 0 : index
    %c2_39 = arith.constant 2 : index
    %c0_40 = arith.constant 0 : index
    %c0_41 = arith.constant 0 : index
    %40 = vector.load %arg1[%c0_38, %c2_39, %c0_40, %c0_41] : memref<1x34x34x64xbf16, #tpu.memory_space<vmem>>, vector<1x32x32x64xbf16>
    %41 = vector.shape_cast %40 : vector<1x32x32x64xbf16> to vector<32x32x64xbf16>
    %42 = vector.shape_cast %41 : vector<32x32x64xbf16> to vector<1024x64xbf16>
    %c384 = arith.constant 384 : index
    %c0_42 = arith.constant 0 : index
    %43 = vector.load %arg2[%c384, %c0_42] : memref<576x64xbf16, #tpu.memory_space<vmem>>, vector<64x64xbf16>
    %cst_43 = arith.constant dense<0.000000e+00> : vector<1024x64xf32>
    %44 = tpu.matmul %42, %43, %cst_43 {dimension_numbers = #tpu.dot_dimension_numbers<[1], [0], [0], [1], [0, 0, 1, 1], [], []>} : vector<1024x64xbf16>, vector<64x64xbf16>, vector<1024x64xf32> -> vector<1024x64xf32>
    %45 = arith.addf %39, %44 : vector<1024x64xf32>
    %c0_44 = arith.constant 0 : index
    %c2_45 = arith.constant 2 : index
    %c1_46 = arith.constant 1 : index
    %c0_47 = arith.constant 0 : index
    %46 = vector.load %arg1[%c0_44, %c2_45, %c1_46, %c0_47] : memref<1x34x34x64xbf16, #tpu.memory_space<vmem>>, vector<1x32x32x64xbf16>
    %47 = vector.shape_cast %46 : vector<1x32x32x64xbf16> to vector<32x32x64xbf16>
    %48 = vector.shape_cast %47 : vector<32x32x64xbf16> to vector<1024x64xbf16>
    %c448 = arith.constant 448 : index
    %c0_48 = arith.constant 0 : index
    %49 = vector.load %arg2[%c448, %c0_48] : memref<576x64xbf16, #tpu.memory_space<vmem>>, vector<64x64xbf16>
    %cst_49 = arith.constant dense<0.000000e+00> : vector<1024x64xf32>
    %50 = tpu.matmul %48, %49, %cst_49 {dimension_numbers = #tpu.dot_dimension_numbers<[1], [0], [0], [1], [0, 0, 1, 1], [], []>} : vector<1024x64xbf16>, vector<64x64xbf16>, vector<1024x64xf32> -> vector<1024x64xf32>
    %51 = arith.addf %45, %50 : vector<1024x64xf32>
    %c0_50 = arith.constant 0 : index
    %c2_51 = arith.constant 2 : index
    %c2_52 = arith.constant 2 : index
    %c0_53 = arith.constant 0 : index
    %52 = vector.load %arg1[%c0_50, %c2_51, %c2_52, %c0_53] : memref<1x34x34x64xbf16, #tpu.memory_space<vmem>>, vector<1x32x32x64xbf16>
    %53 = vector.shape_cast %52 : vector<1x32x32x64xbf16> to vector<32x32x64xbf16>
    %54 = vector.shape_cast %53 : vector<32x32x64xbf16> to vector<1024x64xbf16>
    %c512 = arith.constant 512 : index
    %c0_54 = arith.constant 0 : index
    %55 = vector.load %arg2[%c512, %c0_54] : memref<576x64xbf16, #tpu.memory_space<vmem>>, vector<64x64xbf16>
    %cst_55 = arith.constant dense<0.000000e+00> : vector<1024x64xf32>
    %56 = tpu.matmul %54, %55, %cst_55 {dimension_numbers = #tpu.dot_dimension_numbers<[1], [0], [0], [1], [0, 0, 1, 1], [], []>} : vector<1024x64xbf16>, vector<64x64xbf16>, vector<1024x64xf32> -> vector<1024x64xf32>
    %57 = arith.addf %51, %56 : vector<1024x64xf32>
    %58 = vector.broadcast %0 : vector<1x64xf32> to vector<1024x64xf32>
    %59 = arith.addf %57, %58 : vector<1024x64xf32>
    %c0_56 = arith.constant 0 : index
    %c0_57 = arith.constant 0 : index
    %60 = vector.load %arg8[%c0_56, %c0_57] : memref<1024x64xf32, #tpu.memory_space<vmem>>, vector<1024x64xf32>
    tpu.vector_store %arg8[%c0_56, %c0_57], %59 {strides = array<i32>} : memref<1024x64xf32, #tpu.memory_space<vmem>>, vector<1024x64xf32>,
    %cst_58 = arith.constant dense<0.000000e+00> : vector<64xf32>
    %61 = vector.multi_reduction <add>, %59, %cst_58 [0] : vector<1024x64xf32> to vector<64xf32>
    %62 = vector.shape_cast %61 : vector<64xf32> to vector<1x64xf32>
    %63 = arith.addf %1, %62 : vector<1x64xf32>
    %64 = arith.mulf %59, %59 : vector<1024x64xf32>
    %cst_59 = arith.constant dense<0.000000e+00> : vector<64xf32>
    %65 = vector.multi_reduction <add>, %64, %cst_59 [0] : vector<1024x64xf32> to vector<64xf32>
    %66 = vector.shape_cast %65 : vector<64xf32> to vector<1x64xf32>
    %67 = arith.addf %2, %66 : vector<1x64xf32>
    %c0_60 = arith.constant 0 : index
    %c0_61 = arith.constant 0 : index
    %68 = vector.load %arg6[%c0_60, %c0_61] : memref<64x64xf32, #tpu.memory_space<vmem>>, vector<64x64xf32>
    %cst_62 = arith.constant dense<0.000000e+00> : vector<1x64xf32>
    %69 = tpu.matmul %63, %68, %cst_62 {dimension_numbers = #tpu.dot_dimension_numbers<[1], [0], [0], [1], [0, 0, 1, 1], [], []>} : vector<1x64xf32>, vector<64x64xf32>, vector<1x64xf32> -> vector<1x64xf32>
    %cst_63 = arith.constant 6.10351563E-5 : f32
    %70 = vector.broadcast %cst_63 : f32 to vector<1x64xf32>
    %71 = arith.mulf %69, %70 : vector<1x64xf32>
    %cst_64 = arith.constant dense<0.000000e+00> : vector<1x64xf32>
    %72 = tpu.matmul %67, %68, %cst_64 {dimension_numbers = #tpu.dot_dimension_numbers<[1], [0], [0], [1], [0, 0, 1, 1], [], []>} : vector<1x64xf32>, vector<64x64xf32>, vector<1x64xf32> -> vector<1x64xf32>
    %cst_65 = arith.constant 6.10351563E-5 : f32
    %73 = vector.broadcast %cst_65 : f32 to vector<1x64xf32>
    %74 = arith.mulf %72, %73 : vector<1x64xf32>
    %75 = arith.mulf %71, %71 : vector<1x64xf32>
    %76 = arith.subf %74, %75 : vector<1x64xf32>
    %cst_66 = arith.constant 9.99999974E-6 : f32
    %77 = vector.broadcast %cst_66 : f32 to vector<1x64xf32>
    %78 = arith.addf %76, %77 : vector<1x64xf32>
    %79 = math.rsqrt %78 : vector<1x64xf32>
    %c0_67 = arith.constant 0 : index
    %c0_68 = arith.constant 0 : index
    %80 = vector.load %arg4[%c0_67, %c0_68] : memref<1x64xf32, #tpu.memory_space<vmem>>, vector<1x64xf32>
    %81 = arith.mulf %80, %79 : vector<1x64xf32>
    %c0_69 = arith.constant 0 : index
    %c0_70 = arith.constant 0 : index
    %82 = vector.load %arg5[%c0_69, %c0_70] : memref<1x64xf32, #tpu.memory_space<vmem>>, vector<1x64xf32>
    %83 = arith.mulf %71, %81 : vector<1x64xf32>
    %84 = arith.subf %82, %83 : vector<1x64xf32>
    %c0_71 = arith.constant 0 : index
    %c0_72 = arith.constant 0 : index
    %85 = vector.load %arg8[%c0_71, %c0_72] : memref<1024x64xf32, #tpu.memory_space<vmem>>, vector<1024x64xf32>
    %86 = vector.broadcast %81 : vector<1x64xf32> to vector<1024x64xf32>
    %87 = arith.mulf %85, %86 : vector<1024x64xf32>
    %88 = vector.broadcast %84 : vector<1x64xf32> to vector<1024x64xf32>
    %89 = arith.addf %87, %88 : vector<1024x64xf32>
    %cst_73 = arith.constant 0.000000e+00 : f32
    %90 = vector.broadcast %cst_73 : f32 to vector<1024x64xf32>
    %91 = arith.maximumf %89, %90 : vector<1024x64xf32>
    %92 = vector.shape_cast %91 : vector<1024x64xf32> to vector<32x32x64xf32>
    %93 = arith.truncf %92 : vector<32x32x64xf32> to vector<32x32x64xbf16>
    %c0_74 = arith.constant 0 : index
    %c0_75 = arith.constant 0 : index
    %c0_76 = arith.constant 0 : index
    %c0_77 = arith.constant 0 : index
    %94 = vector.load %arg7[%c0_74, %c0_75, %c0_76, %c0_77] : memref<1x32x32x64xbf16, #tpu.memory_space<vmem>>, vector<1x32x32x64xbf16>
    %95 = vector.shape_cast %94 : vector<1x32x32x64xbf16> to vector<32x32x64xbf16>
    %96 = vector.shape_cast %93 : vector<32x32x64xbf16> to vector<1x32x32x64xbf16>
    tpu.vector_store %arg7[%c0_74, %c0_75, %c0_76, %c0_77], %96 {strides = array<i32>} : memref<1x32x32x64xbf16, #tpu.memory_space<vmem>>, vector<1x32x32x64xbf16>,
    return
  }
  func.func @transform_0(%arg0: i32) -> (i32, i32, i32, i32) {
    %c0_i32 = arith.constant 0 : i32
    %c0_i32_0 = arith.constant 0 : i32
    %c0_i32_1 = arith.constant 0 : i32
    %c0_i32_2 = arith.constant 0 : i32
    return %arg0, %c0_i32, %c0_i32_0, %c0_i32_1 : i32, i32, i32, i32
  }
  func.func @transform_1(%arg0: i32) -> (i32, i32) {
    %c0_i32 = arith.constant 0 : i32
    %c0_i32_0 = arith.constant 0 : i32
    %c0_i32_1 = arith.constant 0 : i32
    return %c0_i32, %c0_i32_0 : i32, i32
  }
  func.func @transform_2(%arg0: i32) -> (i32, i32) {
    %c0_i32 = arith.constant 0 : i32
    %c0_i32_0 = arith.constant 0 : i32
    %c0_i32_1 = arith.constant 0 : i32
    return %c0_i32, %c0_i32_0 : i32, i32
  }
  func.func @transform_3(%arg0: i32) -> (i32, i32) {
    %c0_i32 = arith.constant 0 : i32
    %c0_i32_0 = arith.constant 0 : i32
    %c0_i32_1 = arith.constant 0 : i32
    return %c0_i32, %c0_i32_0 : i32, i32
  }
  func.func @transform_4(%arg0: i32) -> (i32, i32) {
    %c0_i32 = arith.constant 0 : i32
    %c0_i32_0 = arith.constant 0 : i32
    %c0_i32_1 = arith.constant 0 : i32
    return %c0_i32, %c0_i32_0 : i32, i32
  }
  func.func @transform_5(%arg0: i32) -> (i32, i32) {
    %c0_i32 = arith.constant 0 : i32
    %c0_i32_0 = arith.constant 0 : i32
    %c0_i32_1 = arith.constant 0 : i32
    return %c0_i32, %c0_i32_0 : i32, i32
  }
  func.func @transform_6(%arg0: i32) -> (i32, i32, i32, i32) {
    %c0_i32 = arith.constant 0 : i32
    %c0_i32_0 = arith.constant 0 : i32
    %c0_i32_1 = arith.constant 0 : i32
    %c0_i32_2 = arith.constant 0 : i32
    return %arg0, %c0_i32, %c0_i32_0, %c0_i32_1 : i32, i32, i32, i32
  }
}

module attributes {stable_mosaic.version = 11 : i64} {
  func.func @_avgpool_kernel(%arg0: i32, %arg1: memref<512x64xbf16, #tpu.memory_space<vmem>>, %arg2: memref<512x64xbf16, #tpu.memory_space<vmem>>, %arg3: memref<512x64xbf16, #tpu.memory_space<vmem>>, %arg4: memref<512x64xbf16, #tpu.memory_space<vmem>>, %arg5: memref<512x64xbf16, #tpu.memory_space<vmem>>) attributes {dimension_semantics = [#tpu.dimension_semantics<parallel>], iteration_bounds = array<i64: 1>, scalar_prefetch = 0 : i64, scratch_operands = 0 : i64, tpu.core_type = #tpu.core_type<tc>, window_params = [{transform_indices = @transform_0, window_bounds = array<i64: 512, 64>}, {transform_indices = @transform_1, window_bounds = array<i64: 512, 64>}, {transform_indices = @transform_2, window_bounds = array<i64: 512, 64>}, {transform_indices = @transform_3, window_bounds = array<i64: 512, 64>}, {transform_indices = @transform_4, window_bounds = array<i64: 512, 64>}]} {
    %c0 = arith.constant 0 : index
    %c0_0 = arith.constant 0 : index
    %0 = vector.load %arg1[%c0, %c0_0] : memref<512x64xbf16, #tpu.memory_space<vmem>>, vector<512x64xbf16>
    %1 = arith.extf %0 : vector<512x64xbf16> to vector<512x64xf32>
    %c0_1 = arith.constant 0 : index
    %c0_2 = arith.constant 0 : index
    %2 = vector.load %arg2[%c0_1, %c0_2] : memref<512x64xbf16, #tpu.memory_space<vmem>>, vector<512x64xbf16>
    %3 = arith.extf %2 : vector<512x64xbf16> to vector<512x64xf32>
    %4 = arith.addf %1, %3 : vector<512x64xf32>
    %c0_3 = arith.constant 0 : index
    %c0_4 = arith.constant 0 : index
    %5 = vector.load %arg3[%c0_3, %c0_4] : memref<512x64xbf16, #tpu.memory_space<vmem>>, vector<512x64xbf16>
    %6 = arith.extf %5 : vector<512x64xbf16> to vector<512x64xf32>
    %7 = arith.addf %4, %6 : vector<512x64xf32>
    %c0_5 = arith.constant 0 : index
    %c0_6 = arith.constant 0 : index
    %8 = vector.load %arg4[%c0_5, %c0_6] : memref<512x64xbf16, #tpu.memory_space<vmem>>, vector<512x64xbf16>
    %9 = arith.extf %8 : vector<512x64xbf16> to vector<512x64xf32>
    %10 = arith.addf %7, %9 : vector<512x64xf32>
    %cst = arith.constant 2.500000e-01 : f32
    %11 = vector.broadcast %cst : f32 to vector<512x64xf32>
    %12 = arith.mulf %11, %10 : vector<512x64xf32>
    %13 = arith.truncf %12 : vector<512x64xf32> to vector<512x64xbf16>
    %c0_7 = arith.constant 0 : index
    %c0_8 = arith.constant 0 : index
    %14 = vector.load %arg5[%c0_7, %c0_8] : memref<512x64xbf16, #tpu.memory_space<vmem>>, vector<512x64xbf16>
    tpu.vector_store %arg5[%c0_7, %c0_8], %13 {strides = array<i32>} : memref<512x64xbf16, #tpu.memory_space<vmem>>, vector<512x64xbf16>,
    return
  }
  func.func @transform_0(%arg0: i32) -> (i32, i32) {
    %c0_i32 = arith.constant 0 : i32
    %c0_i32_0 = arith.constant 0 : i32
    return %arg0, %c0_i32 : i32, i32
  }
  func.func @transform_1(%arg0: i32) -> (i32, i32) {
    %c0_i32 = arith.constant 0 : i32
    %c0_i32_0 = arith.constant 0 : i32
    return %arg0, %c0_i32 : i32, i32
  }
  func.func @transform_2(%arg0: i32) -> (i32, i32) {
    %c0_i32 = arith.constant 0 : i32
    %c0_i32_0 = arith.constant 0 : i32
    return %arg0, %c0_i32 : i32, i32
  }
  func.func @transform_3(%arg0: i32) -> (i32, i32) {
    %c0_i32 = arith.constant 0 : i32
    %c0_i32_0 = arith.constant 0 : i32
    return %arg0, %c0_i32 : i32, i32
  }
  func.func @transform_4(%arg0: i32) -> (i32, i32) {
    %c0_i32 = arith.constant 0 : i32
    %c0_i32_0 = arith.constant 0 : i32
    return %arg0, %c0_i32 : i32, i32
  }
}

module attributes {stable_mosaic.version = 11 : i64} {
  func.func @_conv_gn_relu_kernel(%arg0: i32, %arg1: memref<1x18x18x64xbf16, #tpu.memory_space<vmem>>, %arg2: memref<576x128xbf16, #tpu.memory_space<vmem>>, %arg3: memref<1x128xf32, #tpu.memory_space<vmem>>, %arg4: memref<1x128xf32, #tpu.memory_space<vmem>>, %arg5: memref<1x128xf32, #tpu.memory_space<vmem>>, %arg6: memref<128x128xf32, #tpu.memory_space<vmem>>, %arg7: memref<1x16x16x128xbf16, #tpu.memory_space<vmem>>, %arg8: memref<256x128xf32, #tpu.memory_space<vmem>>) attributes {dimension_semantics = [#tpu.dimension_semantics<parallel>], iteration_bounds = array<i64: 2>, scalar_prefetch = 0 : i64, scratch_operands = 1 : i64, tpu.core_type = #tpu.core_type<tc>, window_params = [{transform_indices = @transform_0, window_bounds = array<i64: 1, 18, 18, 64>}, {pipeline_mode = #tpu.pipeline_mode<synchronous>, transform_indices = @transform_1, window_bounds = array<i64: 576, 128>}, {pipeline_mode = #tpu.pipeline_mode<synchronous>, transform_indices = @transform_2, window_bounds = array<i64: 1, 128>}, {pipeline_mode = #tpu.pipeline_mode<synchronous>, transform_indices = @transform_3, window_bounds = array<i64: 1, 128>}, {pipeline_mode = #tpu.pipeline_mode<synchronous>, transform_indices = @transform_4, window_bounds = array<i64: 1, 128>}, {pipeline_mode = #tpu.pipeline_mode<synchronous>, transform_indices = @transform_5, window_bounds = array<i64: 128, 128>}, {transform_indices = @transform_6, window_bounds = array<i64: 1, 16, 16, 128>}]} {
    %c0 = arith.constant 0 : index
    %c0_0 = arith.constant 0 : index
    %0 = vector.load %arg3[%c0, %c0_0] : memref<1x128xf32, #tpu.memory_space<vmem>>, vector<1x128xf32>
    %cst = arith.constant 0.000000e+00 : f32
    %1 = vector.broadcast %cst : f32 to vector<1x128xf32>
    %cst_1 = arith.constant 0.000000e+00 : f32
    %2 = vector.broadcast %cst_1 : f32 to vector<1x128xf32>
    %cst_2 = arith.constant 0.000000e+00 : f32
    %3 = vector.broadcast %cst_2 : f32 to vector<256x128xf32>
    %c0_3 = arith.constant 0 : index
    %c0_4 = arith.constant 0 : index
    %c0_5 = arith.constant 0 : index
    %c0_6 = arith.constant 0 : index
    %4 = vector.load %arg1[%c0_3, %c0_4, %c0_5, %c0_6] : memref<1x18x18x64xbf16, #tpu.memory_space<vmem>>, vector<1x16x16x64xbf16>
    %5 = vector.shape_cast %4 : vector<1x16x16x64xbf16> to vector<16x16x64xbf16>
    %6 = vector.shape_cast %5 : vector<16x16x64xbf16> to vector<256x64xbf16>
    %c0_7 = arith.constant 0 : index
    %c0_8 = arith.constant 0 : index
    %7 = vector.load %arg2[%c0_7, %c0_8] : memref<576x128xbf16, #tpu.memory_space<vmem>>, vector<64x128xbf16>
    %cst_9 = arith.constant dense<0.000000e+00> : vector<256x128xf32>
    %8 = tpu.matmul %6, %7, %cst_9 {dimension_numbers = #tpu.dot_dimension_numbers<[1], [0], [0], [1], [0, 0, 1, 1], [], []>} : vector<256x64xbf16>, vector<64x128xbf16>, vector<256x128xf32> -> vector<256x128xf32>
    %9 = arith.addf %3, %8 : vector<256x128xf32>
    %c0_10 = arith.constant 0 : index
    %c0_11 = arith.constant 0 : index
    %c1 = arith.constant 1 : index
    %c0_12 = arith.constant 0 : index
    %10 = vector.load %arg1[%c0_10, %c0_11, %c1, %c0_12] : memref<1x18x18x64xbf16, #tpu.memory_space<vmem>>, vector<1x16x16x64xbf16>
    %11 = vector.shape_cast %10 : vector<1x16x16x64xbf16> to vector<16x16x64xbf16>
    %12 = vector.shape_cast %11 : vector<16x16x64xbf16> to vector<256x64xbf16>
    %c64 = arith.constant 64 : index
    %c0_13 = arith.constant 0 : index
    %13 = vector.load %arg2[%c64, %c0_13] : memref<576x128xbf16, #tpu.memory_space<vmem>>, vector<64x128xbf16>
    %cst_14 = arith.constant dense<0.000000e+00> : vector<256x128xf32>
    %14 = tpu.matmul %12, %13, %cst_14 {dimension_numbers = #tpu.dot_dimension_numbers<[1], [0], [0], [1], [0, 0, 1, 1], [], []>} : vector<256x64xbf16>, vector<64x128xbf16>, vector<256x128xf32> -> vector<256x128xf32>
    %15 = arith.addf %9, %14 : vector<256x128xf32>
    %c0_15 = arith.constant 0 : index
    %c0_16 = arith.constant 0 : index
    %c2 = arith.constant 2 : index
    %c0_17 = arith.constant 0 : index
    %16 = vector.load %arg1[%c0_15, %c0_16, %c2, %c0_17] : memref<1x18x18x64xbf16, #tpu.memory_space<vmem>>, vector<1x16x16x64xbf16>
    %17 = vector.shape_cast %16 : vector<1x16x16x64xbf16> to vector<16x16x64xbf16>
    %18 = vector.shape_cast %17 : vector<16x16x64xbf16> to vector<256x64xbf16>
    %c128 = arith.constant 128 : index
    %c0_18 = arith.constant 0 : index
    %19 = vector.load %arg2[%c128, %c0_18] : memref<576x128xbf16, #tpu.memory_space<vmem>>, vector<64x128xbf16>
    %cst_19 = arith.constant dense<0.000000e+00> : vector<256x128xf32>
    %20 = tpu.matmul %18, %19, %cst_19 {dimension_numbers = #tpu.dot_dimension_numbers<[1], [0], [0], [1], [0, 0, 1, 1], [], []>} : vector<256x64xbf16>, vector<64x128xbf16>, vector<256x128xf32> -> vector<256x128xf32>
    %21 = arith.addf %15, %20 : vector<256x128xf32>
    %c0_20 = arith.constant 0 : index
    %c1_21 = arith.constant 1 : index
    %c0_22 = arith.constant 0 : index
    %c0_23 = arith.constant 0 : index
    %22 = vector.load %arg1[%c0_20, %c1_21, %c0_22, %c0_23] : memref<1x18x18x64xbf16, #tpu.memory_space<vmem>>, vector<1x16x16x64xbf16>
    %23 = vector.shape_cast %22 : vector<1x16x16x64xbf16> to vector<16x16x64xbf16>
    %24 = vector.shape_cast %23 : vector<16x16x64xbf16> to vector<256x64xbf16>
    %c192 = arith.constant 192 : index
    %c0_24 = arith.constant 0 : index
    %25 = vector.load %arg2[%c192, %c0_24] : memref<576x128xbf16, #tpu.memory_space<vmem>>, vector<64x128xbf16>
    %cst_25 = arith.constant dense<0.000000e+00> : vector<256x128xf32>
    %26 = tpu.matmul %24, %25, %cst_25 {dimension_numbers = #tpu.dot_dimension_numbers<[1], [0], [0], [1], [0, 0, 1, 1], [], []>} : vector<256x64xbf16>, vector<64x128xbf16>, vector<256x128xf32> -> vector<256x128xf32>
    %27 = arith.addf %21, %26 : vector<256x128xf32>
    %c0_26 = arith.constant 0 : index
    %c1_27 = arith.constant 1 : index
    %c1_28 = arith.constant 1 : index
    %c0_29 = arith.constant 0 : index
    %28 = vector.load %arg1[%c0_26, %c1_27, %c1_28, %c0_29] : memref<1x18x18x64xbf16, #tpu.memory_space<vmem>>, vector<1x16x16x64xbf16>
    %29 = vector.shape_cast %28 : vector<1x16x16x64xbf16> to vector<16x16x64xbf16>
    %30 = vector.shape_cast %29 : vector<16x16x64xbf16> to vector<256x64xbf16>
    %c256 = arith.constant 256 : index
    %c0_30 = arith.constant 0 : index
    %31 = vector.load %arg2[%c256, %c0_30] : memref<576x128xbf16, #tpu.memory_space<vmem>>, vector<64x128xbf16>
    %cst_31 = arith.constant dense<0.000000e+00> : vector<256x128xf32>
    %32 = tpu.matmul %30, %31, %cst_31 {dimension_numbers = #tpu.dot_dimension_numbers<[1], [0], [0], [1], [0, 0, 1, 1], [], []>} : vector<256x64xbf16>, vector<64x128xbf16>, vector<256x128xf32> -> vector<256x128xf32>
    %33 = arith.addf %27, %32 : vector<256x128xf32>
    %c0_32 = arith.constant 0 : index
    %c1_33 = arith.constant 1 : index
    %c2_34 = arith.constant 2 : index
    %c0_35 = arith.constant 0 : index
    %34 = vector.load %arg1[%c0_32, %c1_33, %c2_34, %c0_35] : memref<1x18x18x64xbf16, #tpu.memory_space<vmem>>, vector<1x16x16x64xbf16>
    %35 = vector.shape_cast %34 : vector<1x16x16x64xbf16> to vector<16x16x64xbf16>
    %36 = vector.shape_cast %35 : vector<16x16x64xbf16> to vector<256x64xbf16>
    %c320 = arith.constant 320 : index
    %c0_36 = arith.constant 0 : index
    %37 = vector.load %arg2[%c320, %c0_36] : memref<576x128xbf16, #tpu.memory_space<vmem>>, vector<64x128xbf16>
    %cst_37 = arith.constant dense<0.000000e+00> : vector<256x128xf32>
    %38 = tpu.matmul %36, %37, %cst_37 {dimension_numbers = #tpu.dot_dimension_numbers<[1], [0], [0], [1], [0, 0, 1, 1], [], []>} : vector<256x64xbf16>, vector<64x128xbf16>, vector<256x128xf32> -> vector<256x128xf32>
    %39 = arith.addf %33, %38 : vector<256x128xf32>
    %c0_38 = arith.constant 0 : index
    %c2_39 = arith.constant 2 : index
    %c0_40 = arith.constant 0 : index
    %c0_41 = arith.constant 0 : index
    %40 = vector.load %arg1[%c0_38, %c2_39, %c0_40, %c0_41] : memref<1x18x18x64xbf16, #tpu.memory_space<vmem>>, vector<1x16x16x64xbf16>
    %41 = vector.shape_cast %40 : vector<1x16x16x64xbf16> to vector<16x16x64xbf16>
    %42 = vector.shape_cast %41 : vector<16x16x64xbf16> to vector<256x64xbf16>
    %c384 = arith.constant 384 : index
    %c0_42 = arith.constant 0 : index
    %43 = vector.load %arg2[%c384, %c0_42] : memref<576x128xbf16, #tpu.memory_space<vmem>>, vector<64x128xbf16>
    %cst_43 = arith.constant dense<0.000000e+00> : vector<256x128xf32>
    %44 = tpu.matmul %42, %43, %cst_43 {dimension_numbers = #tpu.dot_dimension_numbers<[1], [0], [0], [1], [0, 0, 1, 1], [], []>} : vector<256x64xbf16>, vector<64x128xbf16>, vector<256x128xf32> -> vector<256x128xf32>
    %45 = arith.addf %39, %44 : vector<256x128xf32>
    %c0_44 = arith.constant 0 : index
    %c2_45 = arith.constant 2 : index
    %c1_46 = arith.constant 1 : index
    %c0_47 = arith.constant 0 : index
    %46 = vector.load %arg1[%c0_44, %c2_45, %c1_46, %c0_47] : memref<1x18x18x64xbf16, #tpu.memory_space<vmem>>, vector<1x16x16x64xbf16>
    %47 = vector.shape_cast %46 : vector<1x16x16x64xbf16> to vector<16x16x64xbf16>
    %48 = vector.shape_cast %47 : vector<16x16x64xbf16> to vector<256x64xbf16>
    %c448 = arith.constant 448 : index
    %c0_48 = arith.constant 0 : index
    %49 = vector.load %arg2[%c448, %c0_48] : memref<576x128xbf16, #tpu.memory_space<vmem>>, vector<64x128xbf16>
    %cst_49 = arith.constant dense<0.000000e+00> : vector<256x128xf32>
    %50 = tpu.matmul %48, %49, %cst_49 {dimension_numbers = #tpu.dot_dimension_numbers<[1], [0], [0], [1], [0, 0, 1, 1], [], []>} : vector<256x64xbf16>, vector<64x128xbf16>, vector<256x128xf32> -> vector<256x128xf32>
    %51 = arith.addf %45, %50 : vector<256x128xf32>
    %c0_50 = arith.constant 0 : index
    %c2_51 = arith.constant 2 : index
    %c2_52 = arith.constant 2 : index
    %c0_53 = arith.constant 0 : index
    %52 = vector.load %arg1[%c0_50, %c2_51, %c2_52, %c0_53] : memref<1x18x18x64xbf16, #tpu.memory_space<vmem>>, vector<1x16x16x64xbf16>
    %53 = vector.shape_cast %52 : vector<1x16x16x64xbf16> to vector<16x16x64xbf16>
    %54 = vector.shape_cast %53 : vector<16x16x64xbf16> to vector<256x64xbf16>
    %c512 = arith.constant 512 : index
    %c0_54 = arith.constant 0 : index
    %55 = vector.load %arg2[%c512, %c0_54] : memref<576x128xbf16, #tpu.memory_space<vmem>>, vector<64x128xbf16>
    %cst_55 = arith.constant dense<0.000000e+00> : vector<256x128xf32>
    %56 = tpu.matmul %54, %55, %cst_55 {dimension_numbers = #tpu.dot_dimension_numbers<[1], [0], [0], [1], [0, 0, 1, 1], [], []>} : vector<256x64xbf16>, vector<64x128xbf16>, vector<256x128xf32> -> vector<256x128xf32>
    %57 = arith.addf %51, %56 : vector<256x128xf32>
    %58 = vector.broadcast %0 : vector<1x128xf32> to vector<256x128xf32>
    %59 = arith.addf %57, %58 : vector<256x128xf32>
    %c0_56 = arith.constant 0 : index
    %c0_57 = arith.constant 0 : index
    %60 = vector.load %arg8[%c0_56, %c0_57] : memref<256x128xf32, #tpu.memory_space<vmem>>, vector<256x128xf32>
    tpu.vector_store %arg8[%c0_56, %c0_57], %59 {strides = array<i32>} : memref<256x128xf32, #tpu.memory_space<vmem>>, vector<256x128xf32>,
    %cst_58 = arith.constant dense<0.000000e+00> : vector<128xf32>
    %61 = vector.multi_reduction <add>, %59, %cst_58 [0] : vector<256x128xf32> to vector<128xf32>
    %62 = vector.shape_cast %61 : vector<128xf32> to vector<1x128xf32>
    %63 = arith.addf %1, %62 : vector<1x128xf32>
    %64 = arith.mulf %59, %59 : vector<256x128xf32>
    %cst_59 = arith.constant dense<0.000000e+00> : vector<128xf32>
    %65 = vector.multi_reduction <add>, %64, %cst_59 [0] : vector<256x128xf32> to vector<128xf32>
    %66 = vector.shape_cast %65 : vector<128xf32> to vector<1x128xf32>
    %67 = arith.addf %2, %66 : vector<1x128xf32>
    %c0_60 = arith.constant 0 : index
    %c0_61 = arith.constant 0 : index
    %68 = vector.load %arg6[%c0_60, %c0_61] : memref<128x128xf32, #tpu.memory_space<vmem>>, vector<128x128xf32>
    %cst_62 = arith.constant dense<0.000000e+00> : vector<1x128xf32>
    %69 = tpu.matmul %63, %68, %cst_62 {dimension_numbers = #tpu.dot_dimension_numbers<[1], [0], [0], [1], [0, 0, 1, 1], [], []>} : vector<1x128xf32>, vector<128x128xf32>, vector<1x128xf32> -> vector<1x128xf32>
    %cst_63 = arith.constant 2.44140625E-4 : f32
    %70 = vector.broadcast %cst_63 : f32 to vector<1x128xf32>
    %71 = arith.mulf %69, %70 : vector<1x128xf32>
    %cst_64 = arith.constant dense<0.000000e+00> : vector<1x128xf32>
    %72 = tpu.matmul %67, %68, %cst_64 {dimension_numbers = #tpu.dot_dimension_numbers<[1], [0], [0], [1], [0, 0, 1, 1], [], []>} : vector<1x128xf32>, vector<128x128xf32>, vector<1x128xf32> -> vector<1x128xf32>
    %cst_65 = arith.constant 2.44140625E-4 : f32
    %73 = vector.broadcast %cst_65 : f32 to vector<1x128xf32>
    %74 = arith.mulf %72, %73 : vector<1x128xf32>
    %75 = arith.mulf %71, %71 : vector<1x128xf32>
    %76 = arith.subf %74, %75 : vector<1x128xf32>
    %cst_66 = arith.constant 9.99999974E-6 : f32
    %77 = vector.broadcast %cst_66 : f32 to vector<1x128xf32>
    %78 = arith.addf %76, %77 : vector<1x128xf32>
    %79 = math.rsqrt %78 : vector<1x128xf32>
    %c0_67 = arith.constant 0 : index
    %c0_68 = arith.constant 0 : index
    %80 = vector.load %arg4[%c0_67, %c0_68] : memref<1x128xf32, #tpu.memory_space<vmem>>, vector<1x128xf32>
    %81 = arith.mulf %80, %79 : vector<1x128xf32>
    %c0_69 = arith.constant 0 : index
    %c0_70 = arith.constant 0 : index
    %82 = vector.load %arg5[%c0_69, %c0_70] : memref<1x128xf32, #tpu.memory_space<vmem>>, vector<1x128xf32>
    %83 = arith.mulf %71, %81 : vector<1x128xf32>
    %84 = arith.subf %82, %83 : vector<1x128xf32>
    %c0_71 = arith.constant 0 : index
    %c0_72 = arith.constant 0 : index
    %85 = vector.load %arg8[%c0_71, %c0_72] : memref<256x128xf32, #tpu.memory_space<vmem>>, vector<256x128xf32>
    %86 = vector.broadcast %81 : vector<1x128xf32> to vector<256x128xf32>
    %87 = arith.mulf %85, %86 : vector<256x128xf32>
    %88 = vector.broadcast %84 : vector<1x128xf32> to vector<256x128xf32>
    %89 = arith.addf %87, %88 : vector<256x128xf32>
    %cst_73 = arith.constant 0.000000e+00 : f32
    %90 = vector.broadcast %cst_73 : f32 to vector<256x128xf32>
    %91 = arith.maximumf %89, %90 : vector<256x128xf32>
    %92 = vector.shape_cast %91 : vector<256x128xf32> to vector<16x16x128xf32>
    %93 = arith.truncf %92 : vector<16x16x128xf32> to vector<16x16x128xbf16>
    %c0_74 = arith.constant 0 : index
    %c0_75 = arith.constant 0 : index
    %c0_76 = arith.constant 0 : index
    %c0_77 = arith.constant 0 : index
    %94 = vector.load %arg7[%c0_74, %c0_75, %c0_76, %c0_77] : memref<1x16x16x128xbf16, #tpu.memory_space<vmem>>, vector<1x16x16x128xbf16>
    %95 = vector.shape_cast %94 : vector<1x16x16x128xbf16> to vector<16x16x128xbf16>
    %96 = vector.shape_cast %93 : vector<16x16x128xbf16> to vector<1x16x16x128xbf16>
    tpu.vector_store %arg7[%c0_74, %c0_75, %c0_76, %c0_77], %96 {strides = array<i32>} : memref<1x16x16x128xbf16, #tpu.memory_space<vmem>>, vector<1x16x16x128xbf16>,
    return
  }
  func.func @transform_0(%arg0: i32) -> (i32, i32, i32, i32) {
    %c0_i32 = arith.constant 0 : i32
    %c0_i32_0 = arith.constant 0 : i32
    %c0_i32_1 = arith.constant 0 : i32
    %c0_i32_2 = arith.constant 0 : i32
    return %arg0, %c0_i32, %c0_i32_0, %c0_i32_1 : i32, i32, i32, i32
  }
  func.func @transform_1(%arg0: i32) -> (i32, i32) {
    %c0_i32 = arith.constant 0 : i32
    %c0_i32_0 = arith.constant 0 : i32
    %c0_i32_1 = arith.constant 0 : i32
    return %c0_i32, %c0_i32_0 : i32, i32
  }
  func.func @transform_2(%arg0: i32) -> (i32, i32) {
    %c0_i32 = arith.constant 0 : i32
    %c0_i32_0 = arith.constant 0 : i32
    %c0_i32_1 = arith.constant 0 : i32
    return %c0_i32, %c0_i32_0 : i32, i32
  }
  func.func @transform_3(%arg0: i32) -> (i32, i32) {
    %c0_i32 = arith.constant 0 : i32
    %c0_i32_0 = arith.constant 0 : i32
    %c0_i32_1 = arith.constant 0 : i32
    return %c0_i32, %c0_i32_0 : i32, i32
  }
  func.func @transform_4(%arg0: i32) -> (i32, i32) {
    %c0_i32 = arith.constant 0 : i32
    %c0_i32_0 = arith.constant 0 : i32
    %c0_i32_1 = arith.constant 0 : i32
    return %c0_i32, %c0_i32_0 : i32, i32
  }
  func.func @transform_5(%arg0: i32) -> (i32, i32) {
    %c0_i32 = arith.constant 0 : i32
    %c0_i32_0 = arith.constant 0 : i32
    %c0_i32_1 = arith.constant 0 : i32
    return %c0_i32, %c0_i32_0 : i32, i32
  }
  func.func @transform_6(%arg0: i32) -> (i32, i32, i32, i32) {
    %c0_i32 = arith.constant 0 : i32
    %c0_i32_0 = arith.constant 0 : i32
    %c0_i32_1 = arith.constant 0 : i32
    %c0_i32_2 = arith.constant 0 : i32
    return %arg0, %c0_i32, %c0_i32_0, %c0_i32_1 : i32, i32, i32, i32
  }
}

module attributes {stable_mosaic.version = 11 : i64} {
  func.func @_conv_gn_relu_kernel(%arg0: i32, %arg1: memref<1x18x18x128xbf16, #tpu.memory_space<vmem>>, %arg2: memref<1152x128xbf16, #tpu.memory_space<vmem>>, %arg3: memref<1x128xf32, #tpu.memory_space<vmem>>, %arg4: memref<1x128xf32, #tpu.memory_space<vmem>>, %arg5: memref<1x128xf32, #tpu.memory_space<vmem>>, %arg6: memref<128x128xf32, #tpu.memory_space<vmem>>, %arg7: memref<1x16x16x128xbf16, #tpu.memory_space<vmem>>, %arg8: memref<256x128xf32, #tpu.memory_space<vmem>>) attributes {dimension_semantics = [#tpu.dimension_semantics<parallel>], iteration_bounds = array<i64: 2>, scalar_prefetch = 0 : i64, scratch_operands = 1 : i64, tpu.core_type = #tpu.core_type<tc>, window_params = [{transform_indices = @transform_0, window_bounds = array<i64: 1, 18, 18, 128>}, {pipeline_mode = #tpu.pipeline_mode<synchronous>, transform_indices = @transform_1, window_bounds = array<i64: 1152, 128>}, {pipeline_mode = #tpu.pipeline_mode<synchronous>, transform_indices = @transform_2, window_bounds = array<i64: 1, 128>}, {pipeline_mode = #tpu.pipeline_mode<synchronous>, transform_indices = @transform_3, window_bounds = array<i64: 1, 128>}, {pipeline_mode = #tpu.pipeline_mode<synchronous>, transform_indices = @transform_4, window_bounds = array<i64: 1, 128>}, {pipeline_mode = #tpu.pipeline_mode<synchronous>, transform_indices = @transform_5, window_bounds = array<i64: 128, 128>}, {transform_indices = @transform_6, window_bounds = array<i64: 1, 16, 16, 128>}]} {
    %c0 = arith.constant 0 : index
    %c0_0 = arith.constant 0 : index
    %0 = vector.load %arg3[%c0, %c0_0] : memref<1x128xf32, #tpu.memory_space<vmem>>, vector<1x128xf32>
    %cst = arith.constant 0.000000e+00 : f32
    %1 = vector.broadcast %cst : f32 to vector<1x128xf32>
    %cst_1 = arith.constant 0.000000e+00 : f32
    %2 = vector.broadcast %cst_1 : f32 to vector<1x128xf32>
    %cst_2 = arith.constant 0.000000e+00 : f32
    %3 = vector.broadcast %cst_2 : f32 to vector<256x128xf32>
    %c0_3 = arith.constant 0 : index
    %c0_4 = arith.constant 0 : index
    %c0_5 = arith.constant 0 : index
    %c0_6 = arith.constant 0 : index
    %4 = vector.load %arg1[%c0_3, %c0_4, %c0_5, %c0_6] : memref<1x18x18x128xbf16, #tpu.memory_space<vmem>>, vector<1x16x16x128xbf16>
    %5 = vector.shape_cast %4 : vector<1x16x16x128xbf16> to vector<16x16x128xbf16>
    %6 = vector.shape_cast %5 : vector<16x16x128xbf16> to vector<256x128xbf16>
    %c0_7 = arith.constant 0 : index
    %c0_8 = arith.constant 0 : index
    %7 = vector.load %arg2[%c0_7, %c0_8] : memref<1152x128xbf16, #tpu.memory_space<vmem>>, vector<128x128xbf16>
    %cst_9 = arith.constant dense<0.000000e+00> : vector<256x128xf32>
    %8 = tpu.matmul %6, %7, %cst_9 {dimension_numbers = #tpu.dot_dimension_numbers<[1], [0], [0], [1], [0, 0, 1, 1], [], []>} : vector<256x128xbf16>, vector<128x128xbf16>, vector<256x128xf32> -> vector<256x128xf32>
    %9 = arith.addf %3, %8 : vector<256x128xf32>
    %c0_10 = arith.constant 0 : index
    %c0_11 = arith.constant 0 : index
    %c1 = arith.constant 1 : index
    %c0_12 = arith.constant 0 : index
    %10 = vector.load %arg1[%c0_10, %c0_11, %c1, %c0_12] : memref<1x18x18x128xbf16, #tpu.memory_space<vmem>>, vector<1x16x16x128xbf16>
    %11 = vector.shape_cast %10 : vector<1x16x16x128xbf16> to vector<16x16x128xbf16>
    %12 = vector.shape_cast %11 : vector<16x16x128xbf16> to vector<256x128xbf16>
    %c128 = arith.constant 128 : index
    %c0_13 = arith.constant 0 : index
    %13 = vector.load %arg2[%c128, %c0_13] : memref<1152x128xbf16, #tpu.memory_space<vmem>>, vector<128x128xbf16>
    %cst_14 = arith.constant dense<0.000000e+00> : vector<256x128xf32>
    %14 = tpu.matmul %12, %13, %cst_14 {dimension_numbers = #tpu.dot_dimension_numbers<[1], [0], [0], [1], [0, 0, 1, 1], [], []>} : vector<256x128xbf16>, vector<128x128xbf16>, vector<256x128xf32> -> vector<256x128xf32>
    %15 = arith.addf %9, %14 : vector<256x128xf32>
    %c0_15 = arith.constant 0 : index
    %c0_16 = arith.constant 0 : index
    %c2 = arith.constant 2 : index
    %c0_17 = arith.constant 0 : index
    %16 = vector.load %arg1[%c0_15, %c0_16, %c2, %c0_17] : memref<1x18x18x128xbf16, #tpu.memory_space<vmem>>, vector<1x16x16x128xbf16>
    %17 = vector.shape_cast %16 : vector<1x16x16x128xbf16> to vector<16x16x128xbf16>
    %18 = vector.shape_cast %17 : vector<16x16x128xbf16> to vector<256x128xbf16>
    %c256 = arith.constant 256 : index
    %c0_18 = arith.constant 0 : index
    %19 = vector.load %arg2[%c256, %c0_18] : memref<1152x128xbf16, #tpu.memory_space<vmem>>, vector<128x128xbf16>
    %cst_19 = arith.constant dense<0.000000e+00> : vector<256x128xf32>
    %20 = tpu.matmul %18, %19, %cst_19 {dimension_numbers = #tpu.dot_dimension_numbers<[1], [0], [0], [1], [0, 0, 1, 1], [], []>} : vector<256x128xbf16>, vector<128x128xbf16>, vector<256x128xf32> -> vector<256x128xf32>
    %21 = arith.addf %15, %20 : vector<256x128xf32>
    %c0_20 = arith.constant 0 : index
    %c1_21 = arith.constant 1 : index
    %c0_22 = arith.constant 0 : index
    %c0_23 = arith.constant 0 : index
    %22 = vector.load %arg1[%c0_20, %c1_21, %c0_22, %c0_23] : memref<1x18x18x128xbf16, #tpu.memory_space<vmem>>, vector<1x16x16x128xbf16>
    %23 = vector.shape_cast %22 : vector<1x16x16x128xbf16> to vector<16x16x128xbf16>
    %24 = vector.shape_cast %23 : vector<16x16x128xbf16> to vector<256x128xbf16>
    %c384 = arith.constant 384 : index
    %c0_24 = arith.constant 0 : index
    %25 = vector.load %arg2[%c384, %c0_24] : memref<1152x128xbf16, #tpu.memory_space<vmem>>, vector<128x128xbf16>
    %cst_25 = arith.constant dense<0.000000e+00> : vector<256x128xf32>
    %26 = tpu.matmul %24, %25, %cst_25 {dimension_numbers = #tpu.dot_dimension_numbers<[1], [0], [0], [1], [0, 0, 1, 1], [], []>} : vector<256x128xbf16>, vector<128x128xbf16>, vector<256x128xf32> -> vector<256x128xf32>
    %27 = arith.addf %21, %26 : vector<256x128xf32>
    %c0_26 = arith.constant 0 : index
    %c1_27 = arith.constant 1 : index
    %c1_28 = arith.constant 1 : index
    %c0_29 = arith.constant 0 : index
    %28 = vector.load %arg1[%c0_26, %c1_27, %c1_28, %c0_29] : memref<1x18x18x128xbf16, #tpu.memory_space<vmem>>, vector<1x16x16x128xbf16>
    %29 = vector.shape_cast %28 : vector<1x16x16x128xbf16> to vector<16x16x128xbf16>
    %30 = vector.shape_cast %29 : vector<16x16x128xbf16> to vector<256x128xbf16>
    %c512 = arith.constant 512 : index
    %c0_30 = arith.constant 0 : index
    %31 = vector.load %arg2[%c512, %c0_30] : memref<1152x128xbf16, #tpu.memory_space<vmem>>, vector<128x128xbf16>
    %cst_31 = arith.constant dense<0.000000e+00> : vector<256x128xf32>
    %32 = tpu.matmul %30, %31, %cst_31 {dimension_numbers = #tpu.dot_dimension_numbers<[1], [0], [0], [1], [0, 0, 1, 1], [], []>} : vector<256x128xbf16>, vector<128x128xbf16>, vector<256x128xf32> -> vector<256x128xf32>
    %33 = arith.addf %27, %32 : vector<256x128xf32>
    %c0_32 = arith.constant 0 : index
    %c1_33 = arith.constant 1 : index
    %c2_34 = arith.constant 2 : index
    %c0_35 = arith.constant 0 : index
    %34 = vector.load %arg1[%c0_32, %c1_33, %c2_34, %c0_35] : memref<1x18x18x128xbf16, #tpu.memory_space<vmem>>, vector<1x16x16x128xbf16>
    %35 = vector.shape_cast %34 : vector<1x16x16x128xbf16> to vector<16x16x128xbf16>
    %36 = vector.shape_cast %35 : vector<16x16x128xbf16> to vector<256x128xbf16>
    %c640 = arith.constant 640 : index
    %c0_36 = arith.constant 0 : index
    %37 = vector.load %arg2[%c640, %c0_36] : memref<1152x128xbf16, #tpu.memory_space<vmem>>, vector<128x128xbf16>
    %cst_37 = arith.constant dense<0.000000e+00> : vector<256x128xf32>
    %38 = tpu.matmul %36, %37, %cst_37 {dimension_numbers = #tpu.dot_dimension_numbers<[1], [0], [0], [1], [0, 0, 1, 1], [], []>} : vector<256x128xbf16>, vector<128x128xbf16>, vector<256x128xf32> -> vector<256x128xf32>
    %39 = arith.addf %33, %38 : vector<256x128xf32>
    %c0_38 = arith.constant 0 : index
    %c2_39 = arith.constant 2 : index
    %c0_40 = arith.constant 0 : index
    %c0_41 = arith.constant 0 : index
    %40 = vector.load %arg1[%c0_38, %c2_39, %c0_40, %c0_41] : memref<1x18x18x128xbf16, #tpu.memory_space<vmem>>, vector<1x16x16x128xbf16>
    %41 = vector.shape_cast %40 : vector<1x16x16x128xbf16> to vector<16x16x128xbf16>
    %42 = vector.shape_cast %41 : vector<16x16x128xbf16> to vector<256x128xbf16>
    %c768 = arith.constant 768 : index
    %c0_42 = arith.constant 0 : index
    %43 = vector.load %arg2[%c768, %c0_42] : memref<1152x128xbf16, #tpu.memory_space<vmem>>, vector<128x128xbf16>
    %cst_43 = arith.constant dense<0.000000e+00> : vector<256x128xf32>
    %44 = tpu.matmul %42, %43, %cst_43 {dimension_numbers = #tpu.dot_dimension_numbers<[1], [0], [0], [1], [0, 0, 1, 1], [], []>} : vector<256x128xbf16>, vector<128x128xbf16>, vector<256x128xf32> -> vector<256x128xf32>
    %45 = arith.addf %39, %44 : vector<256x128xf32>
    %c0_44 = arith.constant 0 : index
    %c2_45 = arith.constant 2 : index
    %c1_46 = arith.constant 1 : index
    %c0_47 = arith.constant 0 : index
    %46 = vector.load %arg1[%c0_44, %c2_45, %c1_46, %c0_47] : memref<1x18x18x128xbf16, #tpu.memory_space<vmem>>, vector<1x16x16x128xbf16>
    %47 = vector.shape_cast %46 : vector<1x16x16x128xbf16> to vector<16x16x128xbf16>
    %48 = vector.shape_cast %47 : vector<16x16x128xbf16> to vector<256x128xbf16>
    %c896 = arith.constant 896 : index
    %c0_48 = arith.constant 0 : index
    %49 = vector.load %arg2[%c896, %c0_48] : memref<1152x128xbf16, #tpu.memory_space<vmem>>, vector<128x128xbf16>
    %cst_49 = arith.constant dense<0.000000e+00> : vector<256x128xf32>
    %50 = tpu.matmul %48, %49, %cst_49 {dimension_numbers = #tpu.dot_dimension_numbers<[1], [0], [0], [1], [0, 0, 1, 1], [], []>} : vector<256x128xbf16>, vector<128x128xbf16>, vector<256x128xf32> -> vector<256x128xf32>
    %51 = arith.addf %45, %50 : vector<256x128xf32>
    %c0_50 = arith.constant 0 : index
    %c2_51 = arith.constant 2 : index
    %c2_52 = arith.constant 2 : index
    %c0_53 = arith.constant 0 : index
    %52 = vector.load %arg1[%c0_50, %c2_51, %c2_52, %c0_53] : memref<1x18x18x128xbf16, #tpu.memory_space<vmem>>, vector<1x16x16x128xbf16>
    %53 = vector.shape_cast %52 : vector<1x16x16x128xbf16> to vector<16x16x128xbf16>
    %54 = vector.shape_cast %53 : vector<16x16x128xbf16> to vector<256x128xbf16>
    %c1024 = arith.constant 1024 : index
    %c0_54 = arith.constant 0 : index
    %55 = vector.load %arg2[%c1024, %c0_54] : memref<1152x128xbf16, #tpu.memory_space<vmem>>, vector<128x128xbf16>
    %cst_55 = arith.constant dense<0.000000e+00> : vector<256x128xf32>
    %56 = tpu.matmul %54, %55, %cst_55 {dimension_numbers = #tpu.dot_dimension_numbers<[1], [0], [0], [1], [0, 0, 1, 1], [], []>} : vector<256x128xbf16>, vector<128x128xbf16>, vector<256x128xf32> -> vector<256x128xf32>
    %57 = arith.addf %51, %56 : vector<256x128xf32>
    %58 = vector.broadcast %0 : vector<1x128xf32> to vector<256x128xf32>
    %59 = arith.addf %57, %58 : vector<256x128xf32>
    %c0_56 = arith.constant 0 : index
    %c0_57 = arith.constant 0 : index
    %60 = vector.load %arg8[%c0_56, %c0_57] : memref<256x128xf32, #tpu.memory_space<vmem>>, vector<256x128xf32>
    tpu.vector_store %arg8[%c0_56, %c0_57], %59 {strides = array<i32>} : memref<256x128xf32, #tpu.memory_space<vmem>>, vector<256x128xf32>,
    %cst_58 = arith.constant dense<0.000000e+00> : vector<128xf32>
    %61 = vector.multi_reduction <add>, %59, %cst_58 [0] : vector<256x128xf32> to vector<128xf32>
    %62 = vector.shape_cast %61 : vector<128xf32> to vector<1x128xf32>
    %63 = arith.addf %1, %62 : vector<1x128xf32>
    %64 = arith.mulf %59, %59 : vector<256x128xf32>
    %cst_59 = arith.constant dense<0.000000e+00> : vector<128xf32>
    %65 = vector.multi_reduction <add>, %64, %cst_59 [0] : vector<256x128xf32> to vector<128xf32>
    %66 = vector.shape_cast %65 : vector<128xf32> to vector<1x128xf32>
    %67 = arith.addf %2, %66 : vector<1x128xf32>
    %c0_60 = arith.constant 0 : index
    %c0_61 = arith.constant 0 : index
    %68 = vector.load %arg6[%c0_60, %c0_61] : memref<128x128xf32, #tpu.memory_space<vmem>>, vector<128x128xf32>
    %cst_62 = arith.constant dense<0.000000e+00> : vector<1x128xf32>
    %69 = tpu.matmul %63, %68, %cst_62 {dimension_numbers = #tpu.dot_dimension_numbers<[1], [0], [0], [1], [0, 0, 1, 1], [], []>} : vector<1x128xf32>, vector<128x128xf32>, vector<1x128xf32> -> vector<1x128xf32>
    %cst_63 = arith.constant 2.44140625E-4 : f32
    %70 = vector.broadcast %cst_63 : f32 to vector<1x128xf32>
    %71 = arith.mulf %69, %70 : vector<1x128xf32>
    %cst_64 = arith.constant dense<0.000000e+00> : vector<1x128xf32>
    %72 = tpu.matmul %67, %68, %cst_64 {dimension_numbers = #tpu.dot_dimension_numbers<[1], [0], [0], [1], [0, 0, 1, 1], [], []>} : vector<1x128xf32>, vector<128x128xf32>, vector<1x128xf32> -> vector<1x128xf32>
    %cst_65 = arith.constant 2.44140625E-4 : f32
    %73 = vector.broadcast %cst_65 : f32 to vector<1x128xf32>
    %74 = arith.mulf %72, %73 : vector<1x128xf32>
    %75 = arith.mulf %71, %71 : vector<1x128xf32>
    %76 = arith.subf %74, %75 : vector<1x128xf32>
    %cst_66 = arith.constant 9.99999974E-6 : f32
    %77 = vector.broadcast %cst_66 : f32 to vector<1x128xf32>
    %78 = arith.addf %76, %77 : vector<1x128xf32>
    %79 = math.rsqrt %78 : vector<1x128xf32>
    %c0_67 = arith.constant 0 : index
    %c0_68 = arith.constant 0 : index
    %80 = vector.load %arg4[%c0_67, %c0_68] : memref<1x128xf32, #tpu.memory_space<vmem>>, vector<1x128xf32>
    %81 = arith.mulf %80, %79 : vector<1x128xf32>
    %c0_69 = arith.constant 0 : index
    %c0_70 = arith.constant 0 : index
    %82 = vector.load %arg5[%c0_69, %c0_70] : memref<1x128xf32, #tpu.memory_space<vmem>>, vector<1x128xf32>
    %83 = arith.mulf %71, %81 : vector<1x128xf32>
    %84 = arith.subf %82, %83 : vector<1x128xf32>
    %c0_71 = arith.constant 0 : index
    %c0_72 = arith.constant 0 : index
    %85 = vector.load %arg8[%c0_71, %c0_72] : memref<256x128xf32, #tpu.memory_space<vmem>>, vector<256x128xf32>
    %86 = vector.broadcast %81 : vector<1x128xf32> to vector<256x128xf32>
    %87 = arith.mulf %85, %86 : vector<256x128xf32>
    %88 = vector.broadcast %84 : vector<1x128xf32> to vector<256x128xf32>
    %89 = arith.addf %87, %88 : vector<256x128xf32>
    %cst_73 = arith.constant 0.000000e+00 : f32
    %90 = vector.broadcast %cst_73 : f32 to vector<256x128xf32>
    %91 = arith.maximumf %89, %90 : vector<256x128xf32>
    %92 = vector.shape_cast %91 : vector<256x128xf32> to vector<16x16x128xf32>
    %93 = arith.truncf %92 : vector<16x16x128xf32> to vector<16x16x128xbf16>
    %c0_74 = arith.constant 0 : index
    %c0_75 = arith.constant 0 : index
    %c0_76 = arith.constant 0 : index
    %c0_77 = arith.constant 0 : index
    %94 = vector.load %arg7[%c0_74, %c0_75, %c0_76, %c0_77] : memref<1x16x16x128xbf16, #tpu.memory_space<vmem>>, vector<1x16x16x128xbf16>
    %95 = vector.shape_cast %94 : vector<1x16x16x128xbf16> to vector<16x16x128xbf16>
    %96 = vector.shape_cast %93 : vector<16x16x128xbf16> to vector<1x16x16x128xbf16>
    tpu.vector_store %arg7[%c0_74, %c0_75, %c0_76, %c0_77], %96 {strides = array<i32>} : memref<1x16x16x128xbf16, #tpu.memory_space<vmem>>, vector<1x16x16x128xbf16>,
    return
  }
  func.func @transform_0(%arg0: i32) -> (i32, i32, i32, i32) {
    %c0_i32 = arith.constant 0 : i32
    %c0_i32_0 = arith.constant 0 : i32
    %c0_i32_1 = arith.constant 0 : i32
    %c0_i32_2 = arith.constant 0 : i32
    return %arg0, %c0_i32, %c0_i32_0, %c0_i32_1 : i32, i32, i32, i32
  }
  func.func @transform_1(%arg0: i32) -> (i32, i32) {
    %c0_i32 = arith.constant 0 : i32
    %c0_i32_0 = arith.constant 0 : i32
    %c0_i32_1 = arith.constant 0 : i32
    return %c0_i32, %c0_i32_0 : i32, i32
  }
  func.func @transform_2(%arg0: i32) -> (i32, i32) {
    %c0_i32 = arith.constant 0 : i32
    %c0_i32_0 = arith.constant 0 : i32
    %c0_i32_1 = arith.constant 0 : i32
    return %c0_i32, %c0_i32_0 : i32, i32
  }
  func.func @transform_3(%arg0: i32) -> (i32, i32) {
    %c0_i32 = arith.constant 0 : i32
    %c0_i32_0 = arith.constant 0 : i32
    %c0_i32_1 = arith.constant 0 : i32
    return %c0_i32, %c0_i32_0 : i32, i32
  }
  func.func @transform_4(%arg0: i32) -> (i32, i32) {
    %c0_i32 = arith.constant 0 : i32
    %c0_i32_0 = arith.constant 0 : i32
    %c0_i32_1 = arith.constant 0 : i32
    return %c0_i32, %c0_i32_0 : i32, i32
  }
  func.func @transform_5(%arg0: i32) -> (i32, i32) {
    %c0_i32 = arith.constant 0 : i32
    %c0_i32_0 = arith.constant 0 : i32
    %c0_i32_1 = arith.constant 0 : i32
    return %c0_i32, %c0_i32_0 : i32, i32
  }
  func.func @transform_6(%arg0: i32) -> (i32, i32, i32, i32) {
    %c0_i32 = arith.constant 0 : i32
    %c0_i32_0 = arith.constant 0 : i32
    %c0_i32_1 = arith.constant 0 : i32
    %c0_i32_2 = arith.constant 0 : i32
    return %arg0, %c0_i32, %c0_i32_0, %c0_i32_1 : i32, i32, i32, i32
  }
}

module attributes {stable_mosaic.version = 11 : i64} {
  func.func @_avgpool_kernel(%arg0: i32, %arg1: memref<128x128xbf16, #tpu.memory_space<vmem>>, %arg2: memref<128x128xbf16, #tpu.memory_space<vmem>>, %arg3: memref<128x128xbf16, #tpu.memory_space<vmem>>, %arg4: memref<128x128xbf16, #tpu.memory_space<vmem>>, %arg5: memref<128x128xbf16, #tpu.memory_space<vmem>>) attributes {dimension_semantics = [#tpu.dimension_semantics<parallel>], iteration_bounds = array<i64: 1>, scalar_prefetch = 0 : i64, scratch_operands = 0 : i64, tpu.core_type = #tpu.core_type<tc>, window_params = [{transform_indices = @transform_0, window_bounds = array<i64: 128, 128>}, {transform_indices = @transform_1, window_bounds = array<i64: 128, 128>}, {transform_indices = @transform_2, window_bounds = array<i64: 128, 128>}, {transform_indices = @transform_3, window_bounds = array<i64: 128, 128>}, {transform_indices = @transform_4, window_bounds = array<i64: 128, 128>}]} {
    %c0 = arith.constant 0 : index
    %c0_0 = arith.constant 0 : index
    %0 = vector.load %arg1[%c0, %c0_0] : memref<128x128xbf16, #tpu.memory_space<vmem>>, vector<128x128xbf16>
    %1 = arith.extf %0 : vector<128x128xbf16> to vector<128x128xf32>
    %c0_1 = arith.constant 0 : index
    %c0_2 = arith.constant 0 : index
    %2 = vector.load %arg2[%c0_1, %c0_2] : memref<128x128xbf16, #tpu.memory_space<vmem>>, vector<128x128xbf16>
    %3 = arith.extf %2 : vector<128x128xbf16> to vector<128x128xf32>
    %4 = arith.addf %1, %3 : vector<128x128xf32>
    %c0_3 = arith.constant 0 : index
    %c0_4 = arith.constant 0 : index
    %5 = vector.load %arg3[%c0_3, %c0_4] : memref<128x128xbf16, #tpu.memory_space<vmem>>, vector<128x128xbf16>
    %6 = arith.extf %5 : vector<128x128xbf16> to vector<128x128xf32>
    %7 = arith.addf %4, %6 : vector<128x128xf32>
    %c0_5 = arith.constant 0 : index
    %c0_6 = arith.constant 0 : index
    %8 = vector.load %arg4[%c0_5, %c0_6] : memref<128x128xbf16, #tpu.memory_space<vmem>>, vector<128x128xbf16>
    %9 = arith.extf %8 : vector<128x128xbf16> to vector<128x128xf32>
    %10 = arith.addf %7, %9 : vector<128x128xf32>
    %cst = arith.constant 2.500000e-01 : f32
    %11 = vector.broadcast %cst : f32 to vector<128x128xf32>
    %12 = arith.mulf %11, %10 : vector<128x128xf32>
    %13 = arith.truncf %12 : vector<128x128xf32> to vector<128x128xbf16>
    %c0_7 = arith.constant 0 : index
    %c0_8 = arith.constant 0 : index
    %14 = vector.load %arg5[%c0_7, %c0_8] : memref<128x128xbf16, #tpu.memory_space<vmem>>, vector<128x128xbf16>
    tpu.vector_store %arg5[%c0_7, %c0_8], %13 {strides = array<i32>} : memref<128x128xbf16, #tpu.memory_space<vmem>>, vector<128x128xbf16>,
    return
  }
  func.func @transform_0(%arg0: i32) -> (i32, i32) {
    %c0_i32 = arith.constant 0 : i32
    %c0_i32_0 = arith.constant 0 : i32
    return %arg0, %c0_i32 : i32, i32
  }
  func.func @transform_1(%arg0: i32) -> (i32, i32) {
    %c0_i32 = arith.constant 0 : i32
    %c0_i32_0 = arith.constant 0 : i32
    return %arg0, %c0_i32 : i32, i32
  }
  func.func @transform_2(%arg0: i32) -> (i32, i32) {
    %c0_i32 = arith.constant 0 : i32
    %c0_i32_0 = arith.constant 0 : i32
    return %arg0, %c0_i32 : i32, i32
  }
  func.func @transform_3(%arg0: i32) -> (i32, i32) {
    %c0_i32 = arith.constant 0 : i32
    %c0_i32_0 = arith.constant 0 : i32
    return %arg0, %c0_i32 : i32, i32
  }
  func.func @transform_4(%arg0: i32) -> (i32, i32) {
    %c0_i32 = arith.constant 0 : i32
    %c0_i32_0 = arith.constant 0 : i32
    return %arg0, %c0_i32 : i32, i32
  }
}

module attributes {stable_mosaic.version = 11 : i64} {
  func.func @_conv_gn_relu_kernel(%arg0: i32, %arg1: memref<1x10x10x128xbf16, #tpu.memory_space<vmem>>, %arg2: memref<1152x256xbf16, #tpu.memory_space<vmem>>, %arg3: memref<1x256xf32, #tpu.memory_space<vmem>>, %arg4: memref<1x256xf32, #tpu.memory_space<vmem>>, %arg5: memref<1x256xf32, #tpu.memory_space<vmem>>, %arg6: memref<256x256xf32, #tpu.memory_space<vmem>>, %arg7: memref<1x8x8x256xbf16, #tpu.memory_space<vmem>>, %arg8: memref<64x256xf32, #tpu.memory_space<vmem>>) attributes {dimension_semantics = [#tpu.dimension_semantics<parallel>], iteration_bounds = array<i64: 2>, scalar_prefetch = 0 : i64, scratch_operands = 1 : i64, tpu.core_type = #tpu.core_type<tc>, window_params = [{transform_indices = @transform_0, window_bounds = array<i64: 1, 10, 10, 128>}, {pipeline_mode = #tpu.pipeline_mode<synchronous>, transform_indices = @transform_1, window_bounds = array<i64: 1152, 256>}, {pipeline_mode = #tpu.pipeline_mode<synchronous>, transform_indices = @transform_2, window_bounds = array<i64: 1, 256>}, {pipeline_mode = #tpu.pipeline_mode<synchronous>, transform_indices = @transform_3, window_bounds = array<i64: 1, 256>}, {pipeline_mode = #tpu.pipeline_mode<synchronous>, transform_indices = @transform_4, window_bounds = array<i64: 1, 256>}, {pipeline_mode = #tpu.pipeline_mode<synchronous>, transform_indices = @transform_5, window_bounds = array<i64: 256, 256>}, {transform_indices = @transform_6, window_bounds = array<i64: 1, 8, 8, 256>}]} {
    %c0 = arith.constant 0 : index
    %c0_0 = arith.constant 0 : index
    %0 = vector.load %arg3[%c0, %c0_0] : memref<1x256xf32, #tpu.memory_space<vmem>>, vector<1x256xf32>
    %cst = arith.constant 0.000000e+00 : f32
    %1 = vector.broadcast %cst : f32 to vector<1x256xf32>
    %cst_1 = arith.constant 0.000000e+00 : f32
    %2 = vector.broadcast %cst_1 : f32 to vector<1x256xf32>
    %cst_2 = arith.constant 0.000000e+00 : f32
    %3 = vector.broadcast %cst_2 : f32 to vector<64x256xf32>
    %c0_3 = arith.constant 0 : index
    %c0_4 = arith.constant 0 : index
    %c0_5 = arith.constant 0 : index
    %c0_6 = arith.constant 0 : index
    %4 = vector.load %arg1[%c0_3, %c0_4, %c0_5, %c0_6] : memref<1x10x10x128xbf16, #tpu.memory_space<vmem>>, vector<1x8x8x128xbf16>
    %5 = vector.shape_cast %4 : vector<1x8x8x128xbf16> to vector<8x8x128xbf16>
    %6 = arith.extf %5 : vector<8x8x128xbf16> to vector<8x8x128xf32>
    %7 = vector.shape_cast %6 : vector<8x8x128xf32> to vector<64x128xf32>
    %c0_7 = arith.constant 0 : index
    %c0_8 = arith.constant 0 : index
    %8 = vector.load %arg2[%c0_7, %c0_8] : memref<1152x256xbf16, #tpu.memory_space<vmem>>, vector<128x256xbf16>
    %9 = arith.extf %8 : vector<128x256xbf16> to vector<128x256xf32>
    %cst_9 = arith.constant dense<0.000000e+00> : vector<64x256xf32>
    %10 = tpu.matmul %7, %9, %cst_9 {dimension_numbers = #tpu.dot_dimension_numbers<[1], [0], [0], [1], [0, 0, 1, 1], [], []>} : vector<64x128xf32>, vector<128x256xf32>, vector<64x256xf32> -> vector<64x256xf32>
    %11 = arith.addf %3, %10 : vector<64x256xf32>
    %c0_10 = arith.constant 0 : index
    %c0_11 = arith.constant 0 : index
    %c1 = arith.constant 1 : index
    %c0_12 = arith.constant 0 : index
    %12 = vector.load %arg1[%c0_10, %c0_11, %c1, %c0_12] : memref<1x10x10x128xbf16, #tpu.memory_space<vmem>>, vector<1x8x8x128xbf16>
    %13 = vector.shape_cast %12 : vector<1x8x8x128xbf16> to vector<8x8x128xbf16>
    %14 = arith.extf %13 : vector<8x8x128xbf16> to vector<8x8x128xf32>
    %15 = vector.shape_cast %14 : vector<8x8x128xf32> to vector<64x128xf32>
    %c128 = arith.constant 128 : index
    %c0_13 = arith.constant 0 : index
    %16 = vector.load %arg2[%c128, %c0_13] : memref<1152x256xbf16, #tpu.memory_space<vmem>>, vector<128x256xbf16>
    %17 = arith.extf %16 : vector<128x256xbf16> to vector<128x256xf32>
    %cst_14 = arith.constant dense<0.000000e+00> : vector<64x256xf32>
    %18 = tpu.matmul %15, %17, %cst_14 {dimension_numbers = #tpu.dot_dimension_numbers<[1], [0], [0], [1], [0, 0, 1, 1], [], []>} : vector<64x128xf32>, vector<128x256xf32>, vector<64x256xf32> -> vector<64x256xf32>
    %19 = arith.addf %11, %18 : vector<64x256xf32>
    %c0_15 = arith.constant 0 : index
    %c0_16 = arith.constant 0 : index
    %c2 = arith.constant 2 : index
    %c0_17 = arith.constant 0 : index
    %20 = vector.load %arg1[%c0_15, %c0_16, %c2, %c0_17] : memref<1x10x10x128xbf16, #tpu.memory_space<vmem>>, vector<1x8x8x128xbf16>
    %21 = vector.shape_cast %20 : vector<1x8x8x128xbf16> to vector<8x8x128xbf16>
    %22 = arith.extf %21 : vector<8x8x128xbf16> to vector<8x8x128xf32>
    %23 = vector.shape_cast %22 : vector<8x8x128xf32> to vector<64x128xf32>
    %c256 = arith.constant 256 : index
    %c0_18 = arith.constant 0 : index
    %24 = vector.load %arg2[%c256, %c0_18] : memref<1152x256xbf16, #tpu.memory_space<vmem>>, vector<128x256xbf16>
    %25 = arith.extf %24 : vector<128x256xbf16> to vector<128x256xf32>
    %cst_19 = arith.constant dense<0.000000e+00> : vector<64x256xf32>
    %26 = tpu.matmul %23, %25, %cst_19 {dimension_numbers = #tpu.dot_dimension_numbers<[1], [0], [0], [1], [0, 0, 1, 1], [], []>} : vector<64x128xf32>, vector<128x256xf32>, vector<64x256xf32> -> vector<64x256xf32>
    %27 = arith.addf %19, %26 : vector<64x256xf32>
    %c0_20 = arith.constant 0 : index
    %c1_21 = arith.constant 1 : index
    %c0_22 = arith.constant 0 : index
    %c0_23 = arith.constant 0 : index
    %28 = vector.load %arg1[%c0_20, %c1_21, %c0_22, %c0_23] : memref<1x10x10x128xbf16, #tpu.memory_space<vmem>>, vector<1x8x8x128xbf16>
    %29 = vector.shape_cast %28 : vector<1x8x8x128xbf16> to vector<8x8x128xbf16>
    %30 = arith.extf %29 : vector<8x8x128xbf16> to vector<8x8x128xf32>
    %31 = vector.shape_cast %30 : vector<8x8x128xf32> to vector<64x128xf32>
    %c384 = arith.constant 384 : index
    %c0_24 = arith.constant 0 : index
    %32 = vector.load %arg2[%c384, %c0_24] : memref<1152x256xbf16, #tpu.memory_space<vmem>>, vector<128x256xbf16>
    %33 = arith.extf %32 : vector<128x256xbf16> to vector<128x256xf32>
    %cst_25 = arith.constant dense<0.000000e+00> : vector<64x256xf32>
    %34 = tpu.matmul %31, %33, %cst_25 {dimension_numbers = #tpu.dot_dimension_numbers<[1], [0], [0], [1], [0, 0, 1, 1], [], []>} : vector<64x128xf32>, vector<128x256xf32>, vector<64x256xf32> -> vector<64x256xf32>
    %35 = arith.addf %27, %34 : vector<64x256xf32>
    %c0_26 = arith.constant 0 : index
    %c1_27 = arith.constant 1 : index
    %c1_28 = arith.constant 1 : index
    %c0_29 = arith.constant 0 : index
    %36 = vector.load %arg1[%c0_26, %c1_27, %c1_28, %c0_29] : memref<1x10x10x128xbf16, #tpu.memory_space<vmem>>, vector<1x8x8x128xbf16>
    %37 = vector.shape_cast %36 : vector<1x8x8x128xbf16> to vector<8x8x128xbf16>
    %38 = arith.extf %37 : vector<8x8x128xbf16> to vector<8x8x128xf32>
    %39 = vector.shape_cast %38 : vector<8x8x128xf32> to vector<64x128xf32>
    %c512 = arith.constant 512 : index
    %c0_30 = arith.constant 0 : index
    %40 = vector.load %arg2[%c512, %c0_30] : memref<1152x256xbf16, #tpu.memory_space<vmem>>, vector<128x256xbf16>
    %41 = arith.extf %40 : vector<128x256xbf16> to vector<128x256xf32>
    %cst_31 = arith.constant dense<0.000000e+00> : vector<64x256xf32>
    %42 = tpu.matmul %39, %41, %cst_31 {dimension_numbers = #tpu.dot_dimension_numbers<[1], [0], [0], [1], [0, 0, 1, 1], [], []>} : vector<64x128xf32>, vector<128x256xf32>, vector<64x256xf32> -> vector<64x256xf32>
    %43 = arith.addf %35, %42 : vector<64x256xf32>
    %c0_32 = arith.constant 0 : index
    %c1_33 = arith.constant 1 : index
    %c2_34 = arith.constant 2 : index
    %c0_35 = arith.constant 0 : index
    %44 = vector.load %arg1[%c0_32, %c1_33, %c2_34, %c0_35] : memref<1x10x10x128xbf16, #tpu.memory_space<vmem>>, vector<1x8x8x128xbf16>
    %45 = vector.shape_cast %44 : vector<1x8x8x128xbf16> to vector<8x8x128xbf16>
    %46 = arith.extf %45 : vector<8x8x128xbf16> to vector<8x8x128xf32>
    %47 = vector.shape_cast %46 : vector<8x8x128xf32> to vector<64x128xf32>
    %c640 = arith.constant 640 : index
    %c0_36 = arith.constant 0 : index
    %48 = vector.load %arg2[%c640, %c0_36] : memref<1152x256xbf16, #tpu.memory_space<vmem>>, vector<128x256xbf16>
    %49 = arith.extf %48 : vector<128x256xbf16> to vector<128x256xf32>
    %cst_37 = arith.constant dense<0.000000e+00> : vector<64x256xf32>
    %50 = tpu.matmul %47, %49, %cst_37 {dimension_numbers = #tpu.dot_dimension_numbers<[1], [0], [0], [1], [0, 0, 1, 1], [], []>} : vector<64x128xf32>, vector<128x256xf32>, vector<64x256xf32> -> vector<64x256xf32>
    %51 = arith.addf %43, %50 : vector<64x256xf32>
    %c0_38 = arith.constant 0 : index
    %c2_39 = arith.constant 2 : index
    %c0_40 = arith.constant 0 : index
    %c0_41 = arith.constant 0 : index
    %52 = vector.load %arg1[%c0_38, %c2_39, %c0_40, %c0_41] : memref<1x10x10x128xbf16, #tpu.memory_space<vmem>>, vector<1x8x8x128xbf16>
    %53 = vector.shape_cast %52 : vector<1x8x8x128xbf16> to vector<8x8x128xbf16>
    %54 = arith.extf %53 : vector<8x8x128xbf16> to vector<8x8x128xf32>
    %55 = vector.shape_cast %54 : vector<8x8x128xf32> to vector<64x128xf32>
    %c768 = arith.constant 768 : index
    %c0_42 = arith.constant 0 : index
    %56 = vector.load %arg2[%c768, %c0_42] : memref<1152x256xbf16, #tpu.memory_space<vmem>>, vector<128x256xbf16>
    %57 = arith.extf %56 : vector<128x256xbf16> to vector<128x256xf32>
    %cst_43 = arith.constant dense<0.000000e+00> : vector<64x256xf32>
    %58 = tpu.matmul %55, %57, %cst_43 {dimension_numbers = #tpu.dot_dimension_numbers<[1], [0], [0], [1], [0, 0, 1, 1], [], []>} : vector<64x128xf32>, vector<128x256xf32>, vector<64x256xf32> -> vector<64x256xf32>
    %59 = arith.addf %51, %58 : vector<64x256xf32>
    %c0_44 = arith.constant 0 : index
    %c2_45 = arith.constant 2 : index
    %c1_46 = arith.constant 1 : index
    %c0_47 = arith.constant 0 : index
    %60 = vector.load %arg1[%c0_44, %c2_45, %c1_46, %c0_47] : memref<1x10x10x128xbf16, #tpu.memory_space<vmem>>, vector<1x8x8x128xbf16>
    %61 = vector.shape_cast %60 : vector<1x8x8x128xbf16> to vector<8x8x128xbf16>
    %62 = arith.extf %61 : vector<8x8x128xbf16> to vector<8x8x128xf32>
    %63 = vector.shape_cast %62 : vector<8x8x128xf32> to vector<64x128xf32>
    %c896 = arith.constant 896 : index
    %c0_48 = arith.constant 0 : index
    %64 = vector.load %arg2[%c896, %c0_48] : memref<1152x256xbf16, #tpu.memory_space<vmem>>, vector<128x256xbf16>
    %65 = arith.extf %64 : vector<128x256xbf16> to vector<128x256xf32>
    %cst_49 = arith.constant dense<0.000000e+00> : vector<64x256xf32>
    %66 = tpu.matmul %63, %65, %cst_49 {dimension_numbers = #tpu.dot_dimension_numbers<[1], [0], [0], [1], [0, 0, 1, 1], [], []>} : vector<64x128xf32>, vector<128x256xf32>, vector<64x256xf32> -> vector<64x256xf32>
    %67 = arith.addf %59, %66 : vector<64x256xf32>
    %c0_50 = arith.constant 0 : index
    %c2_51 = arith.constant 2 : index
    %c2_52 = arith.constant 2 : index
    %c0_53 = arith.constant 0 : index
    %68 = vector.load %arg1[%c0_50, %c2_51, %c2_52, %c0_53] : memref<1x10x10x128xbf16, #tpu.memory_space<vmem>>, vector<1x8x8x128xbf16>
    %69 = vector.shape_cast %68 : vector<1x8x8x128xbf16> to vector<8x8x128xbf16>
    %70 = arith.extf %69 : vector<8x8x128xbf16> to vector<8x8x128xf32>
    %71 = vector.shape_cast %70 : vector<8x8x128xf32> to vector<64x128xf32>
    %c1024 = arith.constant 1024 : index
    %c0_54 = arith.constant 0 : index
    %72 = vector.load %arg2[%c1024, %c0_54] : memref<1152x256xbf16, #tpu.memory_space<vmem>>, vector<128x256xbf16>
    %73 = arith.extf %72 : vector<128x256xbf16> to vector<128x256xf32>
    %cst_55 = arith.constant dense<0.000000e+00> : vector<64x256xf32>
    %74 = tpu.matmul %71, %73, %cst_55 {dimension_numbers = #tpu.dot_dimension_numbers<[1], [0], [0], [1], [0, 0, 1, 1], [], []>} : vector<64x128xf32>, vector<128x256xf32>, vector<64x256xf32> -> vector<64x256xf32>
    %75 = arith.addf %67, %74 : vector<64x256xf32>
    %76 = vector.broadcast %0 : vector<1x256xf32> to vector<64x256xf32>
    %77 = arith.addf %75, %76 : vector<64x256xf32>
    %c0_56 = arith.constant 0 : index
    %c0_57 = arith.constant 0 : index
    %78 = vector.load %arg8[%c0_56, %c0_57] : memref<64x256xf32, #tpu.memory_space<vmem>>, vector<64x256xf32>
    tpu.vector_store %arg8[%c0_56, %c0_57], %77 {strides = array<i32>} : memref<64x256xf32, #tpu.memory_space<vmem>>, vector<64x256xf32>,
    %cst_58 = arith.constant dense<0.000000e+00> : vector<256xf32>
    %79 = vector.multi_reduction <add>, %77, %cst_58 [0] : vector<64x256xf32> to vector<256xf32>
    %80 = vector.shape_cast %79 : vector<256xf32> to vector<1x256xf32>
    %81 = arith.addf %1, %80 : vector<1x256xf32>
    %82 = arith.mulf %77, %77 : vector<64x256xf32>
    %cst_59 = arith.constant dense<0.000000e+00> : vector<256xf32>
    %83 = vector.multi_reduction <add>, %82, %cst_59 [0] : vector<64x256xf32> to vector<256xf32>
    %84 = vector.shape_cast %83 : vector<256xf32> to vector<1x256xf32>
    %85 = arith.addf %2, %84 : vector<1x256xf32>
    %c0_60 = arith.constant 0 : index
    %c0_61 = arith.constant 0 : index
    %86 = vector.load %arg6[%c0_60, %c0_61] : memref<256x256xf32, #tpu.memory_space<vmem>>, vector<256x256xf32>
    %cst_62 = arith.constant dense<0.000000e+00> : vector<1x256xf32>
    %87 = tpu.matmul %81, %86, %cst_62 {dimension_numbers = #tpu.dot_dimension_numbers<[1], [0], [0], [1], [0, 0, 1, 1], [], []>} : vector<1x256xf32>, vector<256x256xf32>, vector<1x256xf32> -> vector<1x256xf32>
    %cst_63 = arith.constant 9.765625E-4 : f32
    %88 = vector.broadcast %cst_63 : f32 to vector<1x256xf32>
    %89 = arith.mulf %87, %88 : vector<1x256xf32>
    %cst_64 = arith.constant dense<0.000000e+00> : vector<1x256xf32>
    %90 = tpu.matmul %85, %86, %cst_64 {dimension_numbers = #tpu.dot_dimension_numbers<[1], [0], [0], [1], [0, 0, 1, 1], [], []>} : vector<1x256xf32>, vector<256x256xf32>, vector<1x256xf32> -> vector<1x256xf32>
    %cst_65 = arith.constant 9.765625E-4 : f32
    %91 = vector.broadcast %cst_65 : f32 to vector<1x256xf32>
    %92 = arith.mulf %90, %91 : vector<1x256xf32>
    %93 = arith.mulf %89, %89 : vector<1x256xf32>
    %94 = arith.subf %92, %93 : vector<1x256xf32>
    %cst_66 = arith.constant 9.99999974E-6 : f32
    %95 = vector.broadcast %cst_66 : f32 to vector<1x256xf32>
    %96 = arith.addf %94, %95 : vector<1x256xf32>
    %97 = math.rsqrt %96 : vector<1x256xf32>
    %c0_67 = arith.constant 0 : index
    %c0_68 = arith.constant 0 : index
    %98 = vector.load %arg4[%c0_67, %c0_68] : memref<1x256xf32, #tpu.memory_space<vmem>>, vector<1x256xf32>
    %99 = arith.mulf %98, %97 : vector<1x256xf32>
    %c0_69 = arith.constant 0 : index
    %c0_70 = arith.constant 0 : index
    %100 = vector.load %arg5[%c0_69, %c0_70] : memref<1x256xf32, #tpu.memory_space<vmem>>, vector<1x256xf32>
    %101 = arith.mulf %89, %99 : vector<1x256xf32>
    %102 = arith.subf %100, %101 : vector<1x256xf32>
    %c0_71 = arith.constant 0 : index
    %c0_72 = arith.constant 0 : index
    %103 = vector.load %arg8[%c0_71, %c0_72] : memref<64x256xf32, #tpu.memory_space<vmem>>, vector<64x256xf32>
    %104 = vector.broadcast %99 : vector<1x256xf32> to vector<64x256xf32>
    %105 = arith.mulf %103, %104 : vector<64x256xf32>
    %106 = vector.broadcast %102 : vector<1x256xf32> to vector<64x256xf32>
    %107 = arith.addf %105, %106 : vector<64x256xf32>
    %cst_73 = arith.constant 0.000000e+00 : f32
    %108 = vector.broadcast %cst_73 : f32 to vector<64x256xf32>
    %109 = arith.maximumf %107, %108 : vector<64x256xf32>
    %110 = vector.shape_cast %109 : vector<64x256xf32> to vector<8x8x256xf32>
    %111 = arith.truncf %110 : vector<8x8x256xf32> to vector<8x8x256xbf16>
    %c0_74 = arith.constant 0 : index
    %c0_75 = arith.constant 0 : index
    %c0_76 = arith.constant 0 : index
    %c0_77 = arith.constant 0 : index
    %112 = vector.load %arg7[%c0_74, %c0_75, %c0_76, %c0_77] : memref<1x8x8x256xbf16, #tpu.memory_space<vmem>>, vector<1x8x8x256xbf16>
    %113 = vector.shape_cast %112 : vector<1x8x8x256xbf16> to vector<8x8x256xbf16>
    %114 = vector.shape_cast %111 : vector<8x8x256xbf16> to vector<1x8x8x256xbf16>
    tpu.vector_store %arg7[%c0_74, %c0_75, %c0_76, %c0_77], %114 {strides = array<i32>} : memref<1x8x8x256xbf16, #tpu.memory_space<vmem>>, vector<1x8x8x256xbf16>,
    return
  }
  func.func @transform_0(%arg0: i32) -> (i32, i32, i32, i32) {
    %c0_i32 = arith.constant 0 : i32
    %c0_i32_0 = arith.constant 0 : i32
    %c0_i32_1 = arith.constant 0 : i32
    %c0_i32_2 = arith.constant 0 : i32
    return %arg0, %c0_i32, %c0_i32_0, %c0_i32_1 : i32, i32, i32, i32
  }
  func.func @transform_1(%arg0: i32) -> (i32, i32) {
    %c0_i32 = arith.constant 0 : i32
    %c0_i32_0 = arith.constant 0 : i32
    %c0_i32_1 = arith.constant 0 : i32
    return %c0_i32, %c0_i32_0 : i32, i32
  }
  func.func @transform_2(%arg0: i32) -> (i32, i32) {
    %c0_i32 = arith.constant 0 : i32
    %c0_i32_0 = arith.constant 0 : i32
    %c0_i32_1 = arith.constant 0 : i32
    return %c0_i32, %c0_i32_0 : i32, i32
  }
  func.func @transform_3(%arg0: i32) -> (i32, i32) {
    %c0_i32 = arith.constant 0 : i32
    %c0_i32_0 = arith.constant 0 : i32
    %c0_i32_1 = arith.constant 0 : i32
    return %c0_i32, %c0_i32_0 : i32, i32
  }
  func.func @transform_4(%arg0: i32) -> (i32, i32) {
    %c0_i32 = arith.constant 0 : i32
    %c0_i32_0 = arith.constant 0 : i32
    %c0_i32_1 = arith.constant 0 : i32
    return %c0_i32, %c0_i32_0 : i32, i32
  }
  func.func @transform_5(%arg0: i32) -> (i32, i32) {
    %c0_i32 = arith.constant 0 : i32
    %c0_i32_0 = arith.constant 0 : i32
    %c0_i32_1 = arith.constant 0 : i32
    return %c0_i32, %c0_i32_0 : i32, i32
  }
  func.func @transform_6(%arg0: i32) -> (i32, i32, i32, i32) {
    %c0_i32 = arith.constant 0 : i32
    %c0_i32_0 = arith.constant 0 : i32
    %c0_i32_1 = arith.constant 0 : i32
    %c0_i32_2 = arith.constant 0 : i32
    return %arg0, %c0_i32, %c0_i32_0, %c0_i32_1 : i32, i32, i32, i32
  }
}

module attributes {stable_mosaic.version = 11 : i64} {
  func.func @_matmul_bias_act_kernel(%arg0: i32, %arg1: i32, %arg2: memref<2x2048xbf16, #tpu.memory_space<vmem>>, %arg3: memref<2048x512xbf16, #tpu.memory_space<vmem>>, %arg4: memref<1x512xf32, #tpu.memory_space<vmem>>, %arg5: memref<2x512xbf16, #tpu.memory_space<vmem>>, %arg6: memref<2x512xf32, #tpu.memory_space<vmem>>) attributes {dimension_semantics = [#tpu.dimension_semantics<parallel>, #tpu.dimension_semantics<arbitrary>], iteration_bounds = array<i64: 1, 8>, scalar_prefetch = 0 : i64, scratch_operands = 1 : i64, tpu.core_type = #tpu.core_type<tc>, window_params = [{transform_indices = @transform_0, window_bounds = array<i64: 2, 2048>}, {transform_indices = @transform_1, window_bounds = array<i64: 2048, 512>}, {pipeline_mode = #tpu.pipeline_mode<synchronous>, transform_indices = @transform_2, window_bounds = array<i64: 1, 512>}, {transform_indices = @transform_3, window_bounds = array<i64: 2, 512>}]} {
    %c0_i32 = arith.constant 0 : i32
    %0 = arith.cmpi eq, %arg1, %c0_i32 : i32
    %1 = arith.extui %0 : i1 to i32
    %c0_i32_0 = arith.constant 0 : i32
    %2 = arith.cmpi ne, %1, %c0_i32_0 : i32
    scf.if %2 {
      %cst_9 = arith.constant 0.000000e+00 : f32
      %12 = vector.broadcast %cst_9 : f32 to vector<2x512xf32>
      %c0_10 = arith.constant 0 : index
      %c0_11 = arith.constant 0 : index
      %13 = vector.load %arg6[%c0_10, %c0_11] : memref<2x512xf32, #tpu.memory_space<vmem>>, vector<2x512xf32>
      tpu.vector_store %arg6[%c0_10, %c0_11], %12 {strides = array<i32>} : memref<2x512xf32, #tpu.memory_space<vmem>>, vector<2x512xf32>,
    } else {
    }
    %c0 = arith.constant 0 : index
    %c0_1 = arith.constant 0 : index
    %3 = vector.load %arg6[%c0, %c0_1] : memref<2x512xf32, #tpu.memory_space<vmem>>, vector<2x512xf32>
    %c0_2 = arith.constant 0 : index
    %c0_3 = arith.constant 0 : index
    %4 = vector.load %arg2[%c0_2, %c0_3] : memref<2x2048xbf16, #tpu.memory_space<vmem>>, vector<2x2048xbf16>
    %c0_4 = arith.constant 0 : index
    %c0_5 = arith.constant 0 : index
    %5 = vector.load %arg3[%c0_4, %c0_5] : memref<2048x512xbf16, #tpu.memory_space<vmem>>, vector<2048x512xbf16>
    %cst = arith.constant dense<0.000000e+00> : vector<2x512xf32>
    %6 = tpu.matmul %4, %5, %cst {dimension_numbers = #tpu.dot_dimension_numbers<[1], [0], [0], [1], [0, 0, 1, 1], [], []>} : vector<2x2048xbf16>, vector<2048x512xbf16>, vector<2x512xf32> -> vector<2x512xf32>
    %7 = arith.addf %3, %6 : vector<2x512xf32>
    %c0_6 = arith.constant 0 : index
    %c0_7 = arith.constant 0 : index
    %8 = vector.load %arg6[%c0_6, %c0_7] : memref<2x512xf32, #tpu.memory_space<vmem>>, vector<2x512xf32>
    tpu.vector_store %arg6[%c0_6, %c0_7], %7 {strides = array<i32>} : memref<2x512xf32, #tpu.memory_space<vmem>>, vector<2x512xf32>,
    %c7_i32 = arith.constant 7 : i32
    %9 = arith.cmpi eq, %arg1, %c7_i32 : i32
    %10 = arith.extui %9 : i1 to i32
    %c0_i32_8 = arith.constant 0 : i32
    %11 = arith.cmpi ne, %10, %c0_i32_8 : i32
    scf.if %11 {
      %c0_9 = arith.constant 0 : index
      %c0_10 = arith.constant 0 : index
      %12 = vector.load %arg6[%c0_9, %c0_10] : memref<2x512xf32, #tpu.memory_space<vmem>>, vector<2x512xf32>
      %c0_11 = arith.constant 0 : index
      %c0_12 = arith.constant 0 : index
      %13 = vector.load %arg4[%c0_11, %c0_12] : memref<1x512xf32, #tpu.memory_space<vmem>>, vector<1x512xf32>
      %14 = vector.broadcast %13 : vector<1x512xf32> to vector<2x512xf32>
      %15 = arith.addf %12, %14 : vector<2x512xf32>
      %cst_13 = arith.constant 0.000000e+00 : f32
      %16 = vector.broadcast %cst_13 : f32 to vector<2x512xf32>
      %17 = arith.maximumf %15, %16 : vector<2x512xf32>
      %18 = arith.truncf %17 : vector<2x512xf32> to vector<2x512xbf16>
      %c0_14 = arith.constant 0 : index
      %c0_15 = arith.constant 0 : index
      %19 = vector.load %arg5[%c0_14, %c0_15] : memref<2x512xbf16, #tpu.memory_space<vmem>>, vector<2x512xbf16>
      tpu.vector_store %arg5[%c0_14, %c0_15], %18 {strides = array<i32>} : memref<2x512xbf16, #tpu.memory_space<vmem>>, vector<2x512xbf16>,
    } else {
    }
    return
  }
  func.func @transform_0(%arg0: i32, %arg1: i32) -> (i32, i32) {
    %c0_i32 = arith.constant 0 : i32
    return %arg0, %arg1 : i32, i32
  }
  func.func @transform_1(%arg0: i32, %arg1: i32) -> (i32, i32) {
    %c0_i32 = arith.constant 0 : i32
    %c0_i32_0 = arith.constant 0 : i32
    return %arg1, %c0_i32 : i32, i32
  }
  func.func @transform_2(%arg0: i32, %arg1: i32) -> (i32, i32) {
    %c0_i32 = arith.constant 0 : i32
    %c0_i32_0 = arith.constant 0 : i32
    %c0_i32_1 = arith.constant 0 : i32
    return %c0_i32, %c0_i32_0 : i32, i32
  }
  func.func @transform_3(%arg0: i32, %arg1: i32) -> (i32, i32) {
    %c0_i32 = arith.constant 0 : i32
    %c0_i32_0 = arith.constant 0 : i32
    return %arg0, %c0_i32 : i32, i32
  }
}

module attributes {stable_mosaic.version = 11 : i64} {
  func.func @_matmul_bias_act_kernel(%arg0: i32, %arg1: i32, %arg2: memref<2x512xbf16, #tpu.memory_space<vmem>>, %arg3: memref<512x64xbf16, #tpu.memory_space<vmem>>, %arg4: memref<1x64xf32, #tpu.memory_space<vmem>>, %arg5: memref<2x64xf32, #tpu.memory_space<vmem>>, %arg6: memref<2x64xf32, #tpu.memory_space<vmem>>) attributes {dimension_semantics = [#tpu.dimension_semantics<parallel>, #tpu.dimension_semantics<arbitrary>], iteration_bounds = array<i64: 1, 1>, scalar_prefetch = 0 : i64, scratch_operands = 1 : i64, tpu.core_type = #tpu.core_type<tc>, window_params = [{transform_indices = @transform_0, window_bounds = array<i64: 2, 512>}, {transform_indices = @transform_1, window_bounds = array<i64: 512, 64>}, {pipeline_mode = #tpu.pipeline_mode<synchronous>, transform_indices = @transform_2, window_bounds = array<i64: 1, 64>}, {transform_indices = @transform_3, window_bounds = array<i64: 2, 64>}]} {
    %c0_i32 = arith.constant 0 : i32
    %0 = arith.cmpi eq, %arg1, %c0_i32 : i32
    %1 = arith.extui %0 : i1 to i32
    %c0_i32_0 = arith.constant 0 : i32
    %2 = arith.cmpi ne, %1, %c0_i32_0 : i32
    scf.if %2 {
      %cst_10 = arith.constant 0.000000e+00 : f32
      %12 = vector.broadcast %cst_10 : f32 to vector<2x64xf32>
      %c0_11 = arith.constant 0 : index
      %c0_12 = arith.constant 0 : index
      %13 = vector.load %arg6[%c0_11, %c0_12] : memref<2x64xf32, #tpu.memory_space<vmem>>, vector<2x64xf32>
      tpu.vector_store %arg6[%c0_11, %c0_12], %12 {strides = array<i32>} : memref<2x64xf32, #tpu.memory_space<vmem>>, vector<2x64xf32>,
    } else {
    }
    %c0 = arith.constant 0 : index
    %c0_1 = arith.constant 0 : index
    %3 = vector.load %arg6[%c0, %c0_1] : memref<2x64xf32, #tpu.memory_space<vmem>>, vector<2x64xf32>
    %c0_2 = arith.constant 0 : index
    %c0_3 = arith.constant 0 : index
    %4 = vector.load %arg2[%c0_2, %c0_3] : memref<2x512xbf16, #tpu.memory_space<vmem>>, vector<2x512xbf16>
    %c0_4 = arith.constant 0 : index
    %c0_5 = arith.constant 0 : index
    %5 = vector.load %arg3[%c0_4, %c0_5] : memref<512x64xbf16, #tpu.memory_space<vmem>>, vector<512x64xbf16>
    %cst = arith.constant dense<0.000000e+00> : vector<2x64xf32>
    %6 = tpu.matmul %4, %5, %cst {dimension_numbers = #tpu.dot_dimension_numbers<[1], [0], [0], [1], [0, 0, 1, 1], [], []>} : vector<2x512xbf16>, vector<512x64xbf16>, vector<2x64xf32> -> vector<2x64xf32>
    %7 = arith.addf %3, %6 : vector<2x64xf32>
    %c0_6 = arith.constant 0 : index
    %c0_7 = arith.constant 0 : index
    %8 = vector.load %arg6[%c0_6, %c0_7] : memref<2x64xf32, #tpu.memory_space<vmem>>, vector<2x64xf32>
    tpu.vector_store %arg6[%c0_6, %c0_7], %7 {strides = array<i32>} : memref<2x64xf32, #tpu.memory_space<vmem>>, vector<2x64xf32>,
    %c0_i32_8 = arith.constant 0 : i32
    %9 = arith.cmpi eq, %arg1, %c0_i32_8 : i32
    %10 = arith.extui %9 : i1 to i32
    %c0_i32_9 = arith.constant 0 : i32
    %11 = arith.cmpi ne, %10, %c0_i32_9 : i32
    scf.if %11 {
      %c0_10 = arith.constant 0 : index
      %c0_11 = arith.constant 0 : index
      %12 = vector.load %arg6[%c0_10, %c0_11] : memref<2x64xf32, #tpu.memory_space<vmem>>, vector<2x64xf32>
      %c0_12 = arith.constant 0 : index
      %c0_13 = arith.constant 0 : index
      %13 = vector.load %arg4[%c0_12, %c0_13] : memref<1x64xf32, #tpu.memory_space<vmem>>, vector<1x64xf32>
      %14 = vector.broadcast %13 : vector<1x64xf32> to vector<2x64xf32>
      %15 = arith.addf %12, %14 : vector<2x64xf32>
      %16 = math.tanh %15 : vector<2x64xf32>
      %c0_14 = arith.constant 0 : index
      %c0_15 = arith.constant 0 : index
      %17 = vector.load %arg5[%c0_14, %c0_15] : memref<2x64xf32, #tpu.memory_space<vmem>>, vector<2x64xf32>
      tpu.vector_store %arg5[%c0_14, %c0_15], %16 {strides = array<i32>} : memref<2x64xf32, #tpu.memory_space<vmem>>, vector<2x64xf32>,
    } else {
    }
    return
  }
  func.func @transform_0(%arg0: i32, %arg1: i32) -> (i32, i32) {
    %c0_i32 = arith.constant 0 : i32
    return %arg0, %arg1 : i32, i32
  }
  func.func @transform_1(%arg0: i32, %arg1: i32) -> (i32, i32) {
    %c0_i32 = arith.constant 0 : i32
    %c0_i32_0 = arith.constant 0 : i32
    return %arg1, %c0_i32 : i32, i32
  }
  func.func @transform_2(%arg0: i32, %arg1: i32) -> (i32, i32) {
    %c0_i32 = arith.constant 0 : i32
    %c0_i32_0 = arith.constant 0 : i32
    %c0_i32_1 = arith.constant 0 : i32
    return %c0_i32, %c0_i32_0 : i32, i32
  }
  func.func @transform_3(%arg0: i32, %arg1: i32) -> (i32, i32) {
    %c0_i32 = arith.constant 0 : i32
    %c0_i32_0 = arith.constant 0 : i32
    return %arg0, %c0_i32 : i32, i32
  }
}

</mosaic_0001>

<llo_original>
// kernel: tile.13
$region0: #{tile.13}
  #allocation0 [shape = 's32[1]{0}', space=sflag, size = 0x4, scoped, tag = 'scoped memory for tile.13']
  %s0 = inlined_call_operand.vmem [shape: f32[16], index: 0, kind: input, shape index: {}]
  %s1 = inlined_call_operand.vmem [shape: f32[8,16], index: 1, kind: output, shape index: {}]
  // Predicated region
  $region2: #{tile.13} parent=0 // pred_check
    _
  $region3: #{tile.13} parent=0 // pred_check_branch
    %3 = sbr.rel (0) target = $region5
  $region4: #{tile.13} parent=0 // pred_region
    _
  $region5: #{tile.13} parent=0 // pred_fallthru
    _
  %v4 = vld [vmem:[%s0] ss:$0 sm:$0xff]
  %5 = vst [vmem:[%s1] sm:$0xff] %v4

// kernel: tile.14
$region0: #{tile.14}
  %s0 = inlined_call_operand.vmem [shape: f32[8,16], index: 0, kind: input, shape index: {}]
  %s1 = inlined_call_operand.vmem [shape: f32[1,128], index: 1, kind: output, shape index: {}]
  $region1: #{tile.14} parent=0
    #allocation0 [shape = 'u8[4096]{0}', space=vmem, size = 0x1000, scoped, tag = 'scoped mem for output reshape']
    %v2 = vld [vmem:[%s0] sm:$0x1]
    %vm3 = vcmask 130048
    %4 = vst.msk [vmem:[#allocation0] sm:$0x1] %vm3, %v2
    %s5 = scalar_lea.vmem %s0, 7
    %v6 = vld [vmem:[%s5] sm:$0x1]
    %7 = vrot.lane.b32.xlu0 %v6, 112
    %v8 = vpop.permute.xlu0 %7
    %vm9 = vcmask 1048448
    %10 = vst.msk [vmem:[#allocation0] sm:$0x1] %vm9, %v8
    %s11 = scalar_lea.vmem %s0, 6
    %v12 = vld [vmem:[%s11] sm:$0x1]
    %13 = vrot.lane.b32.xlu0 %v12, 96
    %v14 = vpop.permute.xlu0 %13
    %vm15 = vcmask 917248
    %16 = vst.msk [vmem:[#allocation0] sm:$0x1] %vm15, %v14
    %s17 = scalar_lea.vmem %s0, 5
    %v18 = vld [vmem:[%s17] sm:$0x1]
    %19 = vrot.lane.b32.xlu0 %v18, 80
    %v20 = vpop.permute.xlu0 %19
    %vm21 = vcmask 786048
    %22 = vst.msk [vmem:[#allocation0] sm:$0x1] %vm21, %v20
    %s23 = scalar_lea.vmem %s0, 4
    %v24 = vld [vmem:[%s23] sm:$0x1]
    %25 = vrot.lane.b32.xlu0 %v24, 64
    %v26 = vpop.permute.xlu0 %25
    %vm27 = vcmask 654848
    %28 = vst.msk [vmem:[#allocation0] sm:$0x1] %vm27, %v26
    %s29 = scalar_lea.vmem %s0, 3
    %v30 = vld [vmem:[%s29] sm:$0x1]
    %31 = vrot.lane.b32.xlu0 %v30, 48
    %v32 = vpop.permute.xlu0 %31
    %vm33 = vcmask 523648
    %34 = vst.msk [vmem:[#allocation0] sm:$0x1] %vm33, %v32
    %s35 = scalar_lea.vmem %s0, 2
    %v36 = vld [vmem:[%s35] sm:$0x1]
    %37 = vrot.lane.b32.xlu0 %v36, 32
    %v38 = vpop.permute.xlu0 %37
    %vm39 = vcmask 392448
    %40 = vst.msk [vmem:[#allocation0] sm:$0x1] %vm39, %v38
    %s41 = scalar_lea.vmem %s0, 1
    %v42 = vld [vmem:[%s41] sm:$0x1]
    %43 = vrot.lane.b32.xlu0 %v42, 16
    %v44 = vpop.permute.xlu0 %43
    %vm45 = vcmask 261248
    %46 = vst.msk [vmem:[#allocation0] sm:$0x1] %vm45, %v44
    %s48 = sshll.u32 1, 1
    %s49 = ssub.s32 %s48, 1
    %v51 = vld [vmem:[#allocation0] sm:%s49]
    %s52 = sshll.u32 1, 1
    %s53 = ssub.s32 %s52, 1
    %54 = vst [vmem:[%s1] sm:%s53] %v51

</llo_original>
